<compile_context>
chip_gen: v6e
topology: v6e:2x2x1
jax: 0.10.0
libtpu: 0.0.40
codegen_flags: <defaults>
</compile_context>

<pallas_src>
import functools
import math

import jax
import jax.numpy as jnp
from jax.experimental import pallas as pl
from jax.experimental.pallas import tpu as pltpu  # noqa: F401  (TPU backend)


# ------------------------------ fused kernel -------------------------------- #

def _fused_forward_kernel(tcr_ref, epi_ref,
                          wt_ref, bt_ref, pos_t_ref,
                          we_ref, be_ref, pos_e_ref,
                          wqkv_ref, bqkv_ref, wo_ref, bo_ref,
                          gamma_ref, beta_ref,
                          wout_ref, bout_ref,
                          o_ref, *, num_heads):
    B, Lt, Fin = tcr_ref.shape
    _, Le, _ = epi_ref.shape
    D = wt_ref.shape[1]
    S = Lt + Le
    num_layers = wqkv_ref.shape[0]
    H = num_heads
    Hd = D // H
    scale = 1.0 / math.sqrt(Hd)

    # ---- embeddings + positional encodings, concatenated along the sequence ----
    t_e = (jnp.dot(tcr_ref[...].reshape(B * Lt, Fin), wt_ref[...],
                   preferred_element_type=jnp.float32) + bt_ref[...]
           ).reshape(B, Lt, D) + pos_t_ref[...]
    e_e = (jnp.dot(epi_ref[...].reshape(B * Le, Fin), we_ref[...],
                   preferred_element_type=jnp.float32) + be_ref[...]
           ).reshape(B, Le, D) + pos_e_ref[...]
    x = jnp.concatenate([t_e, e_e], axis=1)                        # (B, S, D)

    # ---- transformer layers (static loop; all weights resident in VMEM) ----
    for l in range(num_layers):
        x_flat = x.reshape(B * S, D)

        # fused in-projection for the whole batch: (B*S, D) @ (D, 3D)
        qkv = jnp.dot(x_flat, wqkv_ref[l],
                      preferred_element_type=jnp.float32) + bqkv_ref[l]
        qkv = qkv.reshape(B, S, 3 * D)
        q = qkv[:, :, 0:D] * scale                                  # (B, S, D)
        k = qkv[:, :, D:2 * D]
        v = qkv[:, :, 2 * D:3 * D]

        # batched-over-B attention; short static loop over heads (Hd = 8 lanes)
        ctx_heads = []
        for h in range(H):
            qh = q[:, :, h * Hd:(h + 1) * Hd]                       # (B, S, Hd)
            kh = k[:, :, h * Hd:(h + 1) * Hd]
            vh = v[:, :, h * Hd:(h + 1) * Hd]
            s = jnp.einsum('bsd,btd->bst', qh, kh,
                           preferred_element_type=jnp.float32)      # (B, S, S)
            m = jnp.max(s, axis=-1, keepdims=True)
            p = jnp.exp(s - m)
            p = p * pl.reciprocal(jnp.sum(p, axis=-1, keepdims=True),
                                  approx=True)
            ctx_heads.append(jnp.einsum('bst,btd->bsd', p, vh,
                                        preferred_element_type=jnp.float32))
        ctx = jnp.concatenate(ctx_heads, axis=-1).reshape(B * S, D)

        # output projection + residual (dropout == identity) + LayerNorm
        attn_out = jnp.dot(ctx, wo_ref[l],
                           preferred_element_type=jnp.float32) + bo_ref[l]
        y = x_flat + attn_out
        mu = jnp.mean(y, axis=-1, keepdims=True)
        var = jnp.mean((y - mu) ** 2, axis=-1, keepdims=True)
        yn = (y - mu) * jax.lax.rsqrt(var + 1e-5)
        x = (yn * gamma_ref[l] + beta_ref[l]).reshape(B, S, D)

    # ---- mean pool over sequence + output Linear ----
    pooled = jnp.sum(x, axis=1) * (1.0 / S)                         # (B, D)
    o_ref[...] = jnp.dot(pooled, wout_ref[...],
                         preferred_element_type=jnp.float32) + bout_ref[...]


@functools.partial(jax.jit, static_argnames=("num_heads",))
def tcr_epitope_transformer(packed, tcr, epitope, *, num_heads):
    B = tcr.shape[0]
    kernel = functools.partial(_fused_forward_kernel, num_heads=num_heads)
    out = pl.pallas_call(
        kernel,
        out_shape=jax.ShapeDtypeStruct((B, 1), jnp.float32),
    )(tcr, epitope,
      packed["wt"], packed["bt"], packed["pos_t"],
      packed["we"], packed["be"], packed["pos_e"],
      packed["wqkv"], packed["bqkv"], packed["wo"], packed["bo"],
      packed["gamma"], packed["beta"],
      packed["wout"], packed["bout"])
    return out[:, 0]                                                # [B]


# -------------------------- parameters & packing ---------------------------- #

def init_params(key, embed_dim, num_layers, max_tcr_length, max_epitope_length):
    keys = jax.random.split(key, 6 + num_layers)

    def lin(k, fan_in, fan_out):
        kw, kb = jax.random.split(k)
        bound = 1.0 / math.sqrt(fan_in)
        w = jax.random.uniform(kw, (fan_out, fan_in), jnp.float32, -bound, bound)
        b = jax.random.uniform(kb, (fan_out,), jnp.float32, -bound, bound)
        return w, b

    params = {
        "tcr_emb": lin(keys[0], 512, embed_dim),
        "epi_emb": lin(keys[1], 512, embed_dim),
        "tcr_pos": jax.random.normal(keys[2], (1, max_tcr_length, embed_dim), jnp.float32),
        "epi_pos": jax.random.normal(keys[3], (1, max_epitope_length, embed_dim), jnp.float32),
        "out": lin(keys[4], embed_dim, 1),
        "layers": [],
    }
    for i in range(num_layers):
        k1, k2 = jax.random.split(keys[5 + i])
        wqkv = jax.random.normal(k1, (3 * embed_dim, embed_dim), jnp.float32) * 0.05
        bqkv = jnp.zeros((3 * embed_dim,), jnp.float32)
        wo, bo = lin(k2, embed_dim, embed_dim)
        params["layers"].append(dict(
            wqkv=wqkv, bqkv=bqkv, wo=wo, bo=bo,
            gamma=jnp.ones((embed_dim,), jnp.float32),
            beta=jnp.zeros((embed_dim,), jnp.float32),
        ))
    return params


def pack_params(params):
    """Pre-transpose / stack parameters into kernel-ready arrays (done once)."""
    layers = params["layers"]
    wt, bt = params["tcr_emb"]
    we, be = params["epi_emb"]
    wout, bout = params["out"]
    return {
        "wt": wt.T, "bt": bt.reshape(1, -1), "pos_t": params["tcr_pos"],
        "we": we.T, "be": be.reshape(1, -1), "pos_e": params["epi_pos"],
        "wqkv": jnp.stack([lp["wqkv"].T for lp in layers]),            # (L, D, 3D)
        "bqkv": jnp.stack([lp["bqkv"].reshape(1, -1) for lp in layers]),
        "wo": jnp.stack([lp["wo"].T for lp in layers]),                # (L, D, D)
        "bo": jnp.stack([lp["bo"].reshape(1, -1) for lp in layers]),
        "gamma": jnp.stack([lp["gamma"].reshape(1, -1) for lp in layers]),
        "beta": jnp.stack([lp["beta"].reshape(1, -1) for lp in layers]),
        "wout": wout.T, "bout": bout.reshape(1, 1),
    }


# ------------------------------ pure-JAX reference --------------------------- #

def _reference_forward(packed, tcr, epitope, num_heads):
    t = tcr @ packed["wt"] + packed["bt"] + packed["pos_t"]
    e = epitope @ packed["we"] + packed["be"] + packed["pos_e"]
    x = jnp.concatenate([t, e], axis=1)
    B, S, D = x.shape
    H = num_heads
    Hd = D // H
    scale = 1.0 / math.sqrt(Hd)
    for l in range(packed["wqkv"].shape[0]):
        qkv = x @ packed["wqkv"][l] + packed["bqkv"][l]
        q, k, v = qkv[..., :D], qkv[..., D:2 * D], qkv[..., 2 * D:]
        q = q.reshape(B, S, H, Hd).transpose(0, 2, 1, 3) * scale
        k = k.reshape(B, S, H, Hd).transpose(0, 2, 1, 3)
        v = v.reshape(B, S, H, Hd).transpose(0, 2, 1, 3)
        s = jnp.einsum('bhsd,bhtd->bhst', q, k)
        p = jax.nn.softmax(s, axis=-1)
        ctx = jnp.einsum('bhst,bhtd->bhsd', p, v)
        ctx = ctx.transpose(0, 2, 1, 3).reshape(B, S, D)
        attn = ctx @ packed["wo"][l] + packed["bo"][l]
        y = x + attn
        mu = y.mean(-1, keepdims=True)
        var = ((y - mu) ** 2).mean(-1, keepdims=True)
        x = (y - mu) / jnp.sqrt(var + 1e-5) * packed["gamma"][l] + packed["beta"][l]
    pooled = x.mean(axis=1)
    return (pooled @ packed["wout"] + packed["bout"])[:, 0]


# --------------------------------- main -------------------------------------- #

if __name__ == "__main__":
    embed_dim = 32
    num_heads = 4
    num_layers = 2
    max_tcr_length = 8
    max_epitope_length = 8
    batch = 2

    key = jax.random.PRNGKey(0)
    k_params, k_tcr, k_epi = jax.random.split(key, 3)

    params = init_params(k_params, embed_dim, num_layers,
                         max_tcr_length, max_epitope_length)
    packed = pack_params(params)

    tcr = jax.random.normal(k_tcr, (batch, max_tcr_length, 512), jnp.float32)
    epitope = jax.random.normal(k_epi, (batch, max_epitope_length, 512), jnp.float32)

    out = tcr_epitope_transformer(packed, tcr, epitope, num_heads=num_heads)
    jax.block_until_ready(out)
    assert out.shape == (batch,)

    ref = _reference_forward(packed, tcr, epitope, num_heads)
    max_err = float(jnp.max(jnp.abs(out - ref)))
    assert max_err < 1e-2, f"mismatch vs reference: {max_err}"

    print("KERNEL_OK")
</pallas_src>

<mosaic_0001>
module attributes {stable_mosaic.version = 11 : i64} {
  func.func @_fused_forward_kernel(%arg0: memref<2x8x512xf32, #tpu.memory_space<vmem>>, %arg1: memref<2x8x512xf32, #tpu.memory_space<vmem>>, %arg2: memref<512x32xf32, #tpu.memory_space<vmem>>, %arg3: memref<1x32xf32, #tpu.memory_space<vmem>>, %arg4: memref<1x8x32xf32, #tpu.memory_space<vmem>>, %arg5: memref<512x32xf32, #tpu.memory_space<vmem>>, %arg6: memref<1x32xf32, #tpu.memory_space<vmem>>, %arg7: memref<1x8x32xf32, #tpu.memory_space<vmem>>, %arg8: memref<2x32x96xf32, #tpu.memory_space<vmem>>, %arg9: memref<2x1x96xf32, #tpu.memory_space<vmem>>, %arg10: memref<2x32x32xf32, #tpu.memory_space<vmem>>, %arg11: memref<2x1x32xf32, #tpu.memory_space<vmem>>, %arg12: memref<2x1x32xf32, #tpu.memory_space<vmem>>, %arg13: memref<2x1x32xf32, #tpu.memory_space<vmem>>, %arg14: memref<32x1xf32, #tpu.memory_space<vmem>>, %arg15: memref<1x1xf32, #tpu.memory_space<vmem>>, %arg16: memref<2x1xf32, #tpu.memory_space<vmem>>) attributes {dimension_semantics = [], scalar_prefetch = 0 : i64, scratch_operands = 0 : i64, tpu.core_type = #tpu.core_type<tc>} {
    %c0 = arith.constant 0 : index
    %c0_0 = arith.constant 0 : index
    %c0_1 = arith.constant 0 : index
    %0 = vector.load %arg0[%c0, %c0_0, %c0_1] : memref<2x8x512xf32, #tpu.memory_space<vmem>>, vector<2x8x512xf32>
    %1 = vector.shape_cast %0 : vector<2x8x512xf32> to vector<16x512xf32>
    %c0_2 = arith.constant 0 : index
    %c0_3 = arith.constant 0 : index
    %2 = vector.load %arg2[%c0_2, %c0_3] : memref<512x32xf32, #tpu.memory_space<vmem>>, vector<512x32xf32>
    %cst = arith.constant dense<0.000000e+00> : vector<16x32xf32>
    %3 = tpu.matmul %1, %2, %cst {dimension_numbers = #tpu.dot_dimension_numbers<[1], [0], [0], [1], [0, 0, 1, 1], [], []>} : vector<16x512xf32>, vector<512x32xf32>, vector<16x32xf32> -> vector<16x32xf32>
    %c0_4 = arith.constant 0 : index
    %c0_5 = arith.constant 0 : index
    %4 = vector.load %arg3[%c0_4, %c0_5] : memref<1x32xf32, #tpu.memory_space<vmem>>, vector<1x32xf32>
    %5 = vector.broadcast %4 : vector<1x32xf32> to vector<16x32xf32>
    %6 = arith.addf %3, %5 : vector<16x32xf32>
    %7 = vector.shape_cast %6 : vector<16x32xf32> to vector<2x8x32xf32>
    %c0_6 = arith.constant 0 : index
    %c0_7 = arith.constant 0 : index
    %c0_8 = arith.constant 0 : index
    %8 = vector.load %arg4[%c0_6, %c0_7, %c0_8] : memref<1x8x32xf32, #tpu.memory_space<vmem>>, vector<1x8x32xf32>
    %9 = vector.broadcast %8 : vector<1x8x32xf32> to vector<2x8x32xf32>
    %10 = arith.addf %7, %9 : vector<2x8x32xf32>
    %c0_9 = arith.constant 0 : index
    %c0_10 = arith.constant 0 : index
    %c0_11 = arith.constant 0 : index
    %11 = vector.load %arg1[%c0_9, %c0_10, %c0_11] : memref<2x8x512xf32, #tpu.memory_space<vmem>>, vector<2x8x512xf32>
    %12 = vector.shape_cast %11 : vector<2x8x512xf32> to vector<16x512xf32>
    %c0_12 = arith.constant 0 : index
    %c0_13 = arith.constant 0 : index
    %13 = vector.load %arg5[%c0_12, %c0_13] : memref<512x32xf32, #tpu.memory_space<vmem>>, vector<512x32xf32>
    %cst_14 = arith.constant dense<0.000000e+00> : vector<16x32xf32>
    %14 = tpu.matmul %12, %13, %cst_14 {dimension_numbers = #tpu.dot_dimension_numbers<[1], [0], [0], [1], [0, 0, 1, 1], [], []>} : vector<16x512xf32>, vector<512x32xf32>, vector<16x32xf32> -> vector<16x32xf32>
    %c0_15 = arith.constant 0 : index
    %c0_16 = arith.constant 0 : index
    %15 = vector.load %arg6[%c0_15, %c0_16] : memref<1x32xf32, #tpu.memory_space<vmem>>, vector<1x32xf32>
    %16 = vector.broadcast %15 : vector<1x32xf32> to vector<16x32xf32>
    %17 = arith.addf %14, %16 : vector<16x32xf32>
    %18 = vector.shape_cast %17 : vector<16x32xf32> to vector<2x8x32xf32>
    %c0_17 = arith.constant 0 : index
    %c0_18 = arith.constant 0 : index
    %c0_19 = arith.constant 0 : index
    %19 = vector.load %arg7[%c0_17, %c0_18, %c0_19] : memref<1x8x32xf32, #tpu.memory_space<vmem>>, vector<1x8x32xf32>
    %20 = vector.broadcast %19 : vector<1x8x32xf32> to vector<2x8x32xf32>
    %21 = arith.addf %18, %20 : vector<2x8x32xf32>
    %22 = tpu.concatenate %10, %21 in 1 : vector<2x8x32xf32>, vector<2x8x32xf32> -> vector<2x16x32xf32>
    %23 = vector.shape_cast %22 : vector<2x16x32xf32> to vector<32x32xf32>
    %c0_20 = arith.constant 0 : index
    %c0_21 = arith.constant 0 : index
    %c0_22 = arith.constant 0 : index
    %24 = vector.load %arg8[%c0_20, %c0_21, %c0_22] : memref<2x32x96xf32, #tpu.memory_space<vmem>>, vector<1x32x96xf32>
    %25 = vector.shape_cast %24 : vector<1x32x96xf32> to vector<32x96xf32>
    %cst_23 = arith.constant dense<0.000000e+00> : vector<32x96xf32>
    %26 = tpu.matmul %23, %25, %cst_23 {dimension_numbers = #tpu.dot_dimension_numbers<[1], [0], [0], [1], [0, 0, 1, 1], [], []>} : vector<32x32xf32>, vector<32x96xf32>, vector<32x96xf32> -> vector<32x96xf32>
    %c0_24 = arith.constant 0 : index
    %c0_25 = arith.constant 0 : index
    %c0_26 = arith.constant 0 : index
    %27 = vector.load %arg9[%c0_24, %c0_25, %c0_26] : memref<2x1x96xf32, #tpu.memory_space<vmem>>, vector<1x1x96xf32>
    %28 = vector.shape_cast %27 : vector<1x1x96xf32> to vector<1x96xf32>
    %29 = vector.broadcast %28 : vector<1x96xf32> to vector<32x96xf32>
    %30 = arith.addf %26, %29 : vector<32x96xf32>
    %31 = vector.shape_cast %30 : vector<32x96xf32> to vector<2x16x96xf32>
    %32 = vector.extract_strided_slice %31 {offsets = [0, 0, 0], sizes = [2, 16, 32], strides = [1, 1, 1]} : vector<2x16x96xf32> to vector<2x16x32xf32>
    %cst_27 = arith.constant 0.353553385 : f32
    %33 = vector.broadcast %cst_27 : f32 to vector<2x16x32xf32>
    %34 = arith.mulf %32, %33 : vector<2x16x32xf32>
    %35 = vector.extract_strided_slice %31 {offsets = [0, 0, 32], sizes = [2, 16, 32], strides = [1, 1, 1]} : vector<2x16x96xf32> to vector<2x16x32xf32>
    %36 = vector.extract_strided_slice %31 {offsets = [0, 0, 64], sizes = [2, 16, 32], strides = [1, 1, 1]} : vector<2x16x96xf32> to vector<2x16x32xf32>
    %37 = vector.extract_strided_slice %34 {offsets = [0, 0, 0], sizes = [2, 16, 8], strides = [1, 1, 1]} : vector<2x16x32xf32> to vector<2x16x8xf32>
    %38 = vector.extract_strided_slice %35 {offsets = [0, 0, 0], sizes = [2, 16, 8], strides = [1, 1, 1]} : vector<2x16x32xf32> to vector<2x16x8xf32>
    %39 = vector.extract_strided_slice %36 {offsets = [0, 0, 0], sizes = [2, 16, 8], strides = [1, 1, 1]} : vector<2x16x32xf32> to vector<2x16x8xf32>
    "tpu.trace_start"() <{level = 10 : i32, message = "bsd,btd->bst"}> : () -> ()
    %cst_28 = arith.constant dense<0.000000e+00> : vector<2x16x16xf32>
    %40 = tpu.matmul %37, %38, %cst_28 {dimension_numbers = #tpu.dot_dimension_numbers<[2], [2], [1], [1], [0, 0, 0, 1, 1, 1], [0], [0]>} : vector<2x16x8xf32>, vector<2x16x8xf32>, vector<2x16x16xf32> -> vector<2x16x16xf32>
    "tpu.trace_stop"() : () -> ()
    %cst_29 = arith.constant dense<0xFF800000> : vector<2x16xf32>
    %41 = vector.multi_reduction <maximumf>, %40, %cst_29 [2] : vector<2x16x16xf32> to vector<2x16xf32>
    %42 = vector.shape_cast %41 : vector<2x16xf32> to vector<2x16x1xf32>
    %43 = vector.broadcast %42 : vector<2x16x1xf32> to vector<2x16x16xf32>
    %44 = arith.subf %40, %43 : vector<2x16x16xf32>
    %45 = math.exp %44 : vector<2x16x16xf32>
    %cst_30 = arith.constant dense<0.000000e+00> : vector<2x16xf32>
    %46 = vector.multi_reduction <add>, %45, %cst_30 [2] : vector<2x16x16xf32> to vector<2x16xf32>
    %47 = vector.shape_cast %46 : vector<2x16xf32> to vector<2x16x1xf32>
    %48 = tpu.reciprocal %47 {approx = true} : vector<2x16x1xf32> -> vector<2x16x1xf32>
    %49 = vector.broadcast %48 : vector<2x16x1xf32> to vector<2x16x16xf32>
    %50 = arith.mulf %45, %49 : vector<2x16x16xf32>
    "tpu.trace_start"() <{level = 10 : i32, message = "bst,btd->bsd"}> : () -> ()
    %cst_31 = arith.constant dense<0.000000e+00> : vector<2x16x8xf32>
    %51 = tpu.matmul %50, %39, %cst_31 {dimension_numbers = #tpu.dot_dimension_numbers<[2], [1], [1], [2], [0, 0, 0, 1, 1, 2], [0], [0]>} : vector<2x16x16xf32>, vector<2x16x8xf32>, vector<2x16x8xf32> -> vector<2x16x8xf32>
    "tpu.trace_stop"() : () -> ()
    %52 = vector.extract_strided_slice %34 {offsets = [0, 0, 8], sizes = [2, 16, 8], strides = [1, 1, 1]} : vector<2x16x32xf32> to vector<2x16x8xf32>
    %53 = vector.extract_strided_slice %35 {offsets = [0, 0, 8], sizes = [2, 16, 8], strides = [1, 1, 1]} : vector<2x16x32xf32> to vector<2x16x8xf32>
    %54 = vector.extract_strided_slice %36 {offsets = [0, 0, 8], sizes = [2, 16, 8], strides = [1, 1, 1]} : vector<2x16x32xf32> to vector<2x16x8xf32>
    "tpu.trace_start"() <{level = 10 : i32, message = "bsd,btd->bst"}> : () -> ()
    %cst_32 = arith.constant dense<0.000000e+00> : vector<2x16x16xf32>
    %55 = tpu.matmul %52, %53, %cst_32 {dimension_numbers = #tpu.dot_dimension_numbers<[2], [2], [1], [1], [0, 0, 0, 1, 1, 1], [0], [0]>} : vector<2x16x8xf32>, vector<2x16x8xf32>, vector<2x16x16xf32> -> vector<2x16x16xf32>
    "tpu.trace_stop"() : () -> ()
    %cst_33 = arith.constant dense<0xFF800000> : vector<2x16xf32>
    %56 = vector.multi_reduction <maximumf>, %55, %cst_33 [2] : vector<2x16x16xf32> to vector<2x16xf32>
    %57 = vector.shape_cast %56 : vector<2x16xf32> to vector<2x16x1xf32>
    %58 = vector.broadcast %57 : vector<2x16x1xf32> to vector<2x16x16xf32>
    %59 = arith.subf %55, %58 : vector<2x16x16xf32>
    %60 = math.exp %59 : vector<2x16x16xf32>
    %cst_34 = arith.constant dense<0.000000e+00> : vector<2x16xf32>
    %61 = vector.multi_reduction <add>, %60, %cst_34 [2] : vector<2x16x16xf32> to vector<2x16xf32>
    %62 = vector.shape_cast %61 : vector<2x16xf32> to vector<2x16x1xf32>
    %63 = tpu.reciprocal %62 {approx = true} : vector<2x16x1xf32> -> vector<2x16x1xf32>
    %64 = vector.broadcast %63 : vector<2x16x1xf32> to vector<2x16x16xf32>
    %65 = arith.mulf %60, %64 : vector<2x16x16xf32>
    "tpu.trace_start"() <{level = 10 : i32, message = "bst,btd->bsd"}> : () -> ()
    %cst_35 = arith.constant dense<0.000000e+00> : vector<2x16x8xf32>
    %66 = tpu.matmul %65, %54, %cst_35 {dimension_numbers = #tpu.dot_dimension_numbers<[2], [1], [1], [2], [0, 0, 0, 1, 1, 2], [0], [0]>} : vector<2x16x16xf32>, vector<2x16x8xf32>, vector<2x16x8xf32> -> vector<2x16x8xf32>
    "tpu.trace_stop"() : () -> ()
    %67 = vector.extract_strided_slice %34 {offsets = [0, 0, 16], sizes = [2, 16, 8], strides = [1, 1, 1]} : vector<2x16x32xf32> to vector<2x16x8xf32>
    %68 = vector.extract_strided_slice %35 {offsets = [0, 0, 16], sizes = [2, 16, 8], strides = [1, 1, 1]} : vector<2x16x32xf32> to vector<2x16x8xf32>
    %69 = vector.extract_strided_slice %36 {offsets = [0, 0, 16], sizes = [2, 16, 8], strides = [1, 1, 1]} : vector<2x16x32xf32> to vector<2x16x8xf32>
    "tpu.trace_start"() <{level = 10 : i32, message = "bsd,btd->bst"}> : () -> ()
    %cst_36 = arith.constant dense<0.000000e+00> : vector<2x16x16xf32>
    %70 = tpu.matmul %67, %68, %cst_36 {dimension_numbers = #tpu.dot_dimension_numbers<[2], [2], [1], [1], [0, 0, 0, 1, 1, 1], [0], [0]>} : vector<2x16x8xf32>, vector<2x16x8xf32>, vector<2x16x16xf32> -> vector<2x16x16xf32>
    "tpu.trace_stop"() : () -> ()
    %cst_37 = arith.constant dense<0xFF800000> : vector<2x16xf32>
    %71 = vector.multi_reduction <maximumf>, %70, %cst_37 [2] : vector<2x16x16xf32> to vector<2x16xf32>
    %72 = vector.shape_cast %71 : vector<2x16xf32> to vector<2x16x1xf32>
    %73 = vector.broadcast %72 : vector<2x16x1xf32> to vector<2x16x16xf32>
    %74 = arith.subf %70, %73 : vector<2x16x16xf32>
    %75 = math.exp %74 : vector<2x16x16xf32>
    %cst_38 = arith.constant dense<0.000000e+00> : vector<2x16xf32>
    %76 = vector.multi_reduction <add>, %75, %cst_38 [2] : vector<2x16x16xf32> to vector<2x16xf32>
    %77 = vector.shape_cast %76 : vector<2x16xf32> to vector<2x16x1xf32>
    %78 = tpu.reciprocal %77 {approx = true} : vector<2x16x1xf32> -> vector<2x16x1xf32>
    %79 = vector.broadcast %78 : vector<2x16x1xf32> to vector<2x16x16xf32>
    %80 = arith.mulf %75, %79 : vector<2x16x16xf32>
    "tpu.trace_start"() <{level = 10 : i32, message = "bst,btd->bsd"}> : () -> ()
    %cst_39 = arith.constant dense<0.000000e+00> : vector<2x16x8xf32>
    %81 = tpu.matmul %80, %69, %cst_39 {dimension_numbers = #tpu.dot_dimension_numbers<[2], [1], [1], [2], [0, 0, 0, 1, 1, 2], [0], [0]>} : vector<2x16x16xf32>, vector<2x16x8xf32>, vector<2x16x8xf32> -> vector<2x16x8xf32>
    "tpu.trace_stop"() : () -> ()
    %82 = vector.extract_strided_slice %34 {offsets = [0, 0, 24], sizes = [2, 16, 8], strides = [1, 1, 1]} : vector<2x16x32xf32> to vector<2x16x8xf32>
    %83 = vector.extract_strided_slice %35 {offsets = [0, 0, 24], sizes = [2, 16, 8], strides = [1, 1, 1]} : vector<2x16x32xf32> to vector<2x16x8xf32>
    %84 = vector.extract_strided_slice %36 {offsets = [0, 0, 24], sizes = [2, 16, 8], strides = [1, 1, 1]} : vector<2x16x32xf32> to vector<2x16x8xf32>
    "tpu.trace_start"() <{level = 10 : i32, message = "bsd,btd->bst"}> : () -> ()
    %cst_40 = arith.constant dense<0.000000e+00> : vector<2x16x16xf32>
    %85 = tpu.matmul %82, %83, %cst_40 {dimension_numbers = #tpu.dot_dimension_numbers<[2], [2], [1], [1], [0, 0, 0, 1, 1, 1], [0], [0]>} : vector<2x16x8xf32>, vector<2x16x8xf32>, vector<2x16x16xf32> -> vector<2x16x16xf32>
    "tpu.trace_stop"() : () -> ()
    %cst_41 = arith.constant dense<0xFF800000> : vector<2x16xf32>
    %86 = vector.multi_reduction <maximumf>, %85, %cst_41 [2] : vector<2x16x16xf32> to vector<2x16xf32>
    %87 = vector.shape_cast %86 : vector<2x16xf32> to vector<2x16x1xf32>
    %88 = vector.broadcast %87 : vector<2x16x1xf32> to vector<2x16x16xf32>
    %89 = arith.subf %85, %88 : vector<2x16x16xf32>
    %90 = math.exp %89 : vector<2x16x16xf32>
    %cst_42 = arith.constant dense<0.000000e+00> : vector<2x16xf32>
    %91 = vector.multi_reduction <add>, %90, %cst_42 [2] : vector<2x16x16xf32> to vector<2x16xf32>
    %92 = vector.shape_cast %91 : vector<2x16xf32> to vector<2x16x1xf32>
    %93 = tpu.reciprocal %92 {approx = true} : vector<2x16x1xf32> -> vector<2x16x1xf32>
    %94 = vector.broadcast %93 : vector<2x16x1xf32> to vector<2x16x16xf32>
    %95 = arith.mulf %90, %94 : vector<2x16x16xf32>
    "tpu.trace_start"() <{level = 10 : i32, message = "bst,btd->bsd"}> : () -> ()
    %cst_43 = arith.constant dense<0.000000e+00> : vector<2x16x8xf32>
    %96 = tpu.matmul %95, %84, %cst_43 {dimension_numbers = #tpu.dot_dimension_numbers<[2], [1], [1], [2], [0, 0, 0, 1, 1, 2], [0], [0]>} : vector<2x16x16xf32>, vector<2x16x8xf32>, vector<2x16x8xf32> -> vector<2x16x8xf32>
    "tpu.trace_stop"() : () -> ()
    %97 = tpu.concatenate %51, %66, %81, %96 in 2 : vector<2x16x8xf32>, vector<2x16x8xf32>, vector<2x16x8xf32>, vector<2x16x8xf32> -> vector<2x16x32xf32>
    %98 = vector.shape_cast %97 : vector<2x16x32xf32> to vector<32x32xf32>
    %c0_44 = arith.constant 0 : index
    %c0_45 = arith.constant 0 : index
    %c0_46 = arith.constant 0 : index
    %99 = vector.load %arg10[%c0_44, %c0_45, %c0_46] : memref<2x32x32xf32, #tpu.memory_space<vmem>>, vector<1x32x32xf32>
    %100 = vector.shape_cast %99 : vector<1x32x32xf32> to vector<32x32xf32>
    %cst_47 = arith.constant dense<0.000000e+00> : vector<32x32xf32>
    %101 = tpu.matmul %98, %100, %cst_47 {dimension_numbers = #tpu.dot_dimension_numbers<[1], [0], [0], [1], [0, 0, 1, 1], [], []>} : vector<32x32xf32>, vector<32x32xf32>, vector<32x32xf32> -> vector<32x32xf32>
    %c0_48 = arith.constant 0 : index
    %c0_49 = arith.constant 0 : index
    %c0_50 = arith.constant 0 : index
    %102 = vector.load %arg11[%c0_48, %c0_49, %c0_50] : memref<2x1x32xf32, #tpu.memory_space<vmem>>, vector<1x1x32xf32>
    %103 = vector.shape_cast %102 : vector<1x1x32xf32> to vector<1x32xf32>
    %104 = vector.broadcast %103 : vector<1x32xf32> to vector<32x32xf32>
    %105 = arith.addf %101, %104 : vector<32x32xf32>
    %106 = arith.addf %23, %105 : vector<32x32xf32>
    %cst_51 = arith.constant dense<0.000000e+00> : vector<32xf32>
    %107 = vector.multi_reduction <add>, %106, %cst_51 [1] : vector<32x32xf32> to vector<32xf32>
    %108 = vector.shape_cast %107 : vector<32xf32> to vector<32x1xf32>
    %cst_52 = arith.constant 3.200000e+01 : f32
    %109 = vector.broadcast %cst_52 : f32 to vector<32x1xf32>
    %110 = arith.divf %108, %109 : vector<32x1xf32>
    %111 = vector.broadcast %110 : vector<32x1xf32> to vector<32x32xf32>
    %112 = arith.subf %106, %111 : vector<32x32xf32>
    %113 = arith.mulf %112, %112 : vector<32x32xf32>
    %cst_53 = arith.constant dense<0.000000e+00> : vector<32xf32>
    %114 = vector.multi_reduction <add>, %113, %cst_53 [1] : vector<32x32xf32> to vector<32xf32>
    %115 = vector.shape_cast %114 : vector<32xf32> to vector<32x1xf32>
    %cst_54 = arith.constant 3.200000e+01 : f32
    %116 = vector.broadcast %cst_54 : f32 to vector<32x1xf32>
    %117 = arith.divf %115, %116 : vector<32x1xf32>
    %118 = vector.broadcast %110 : vector<32x1xf32> to vector<32x32xf32>
    %119 = arith.subf %106, %118 : vector<32x32xf32>
    %cst_55 = arith.constant 9.99999974E-6 : f32
    %120 = vector.broadcast %cst_55 : f32 to vector<32x1xf32>
    %121 = arith.addf %117, %120 : vector<32x1xf32>
    %122 = math.rsqrt %121 : vector<32x1xf32>
    %123 = vector.broadcast %122 : vector<32x1xf32> to vector<32x32xf32>
    %124 = arith.mulf %119, %123 : vector<32x32xf32>
    %c0_56 = arith.constant 0 : index
    %c0_57 = arith.constant 0 : index
    %c0_58 = arith.constant 0 : index
    %125 = vector.load %arg12[%c0_56, %c0_57, %c0_58] : memref<2x1x32xf32, #tpu.memory_space<vmem>>, vector<1x1x32xf32>
    %126 = vector.shape_cast %125 : vector<1x1x32xf32> to vector<1x32xf32>
    %127 = vector.broadcast %126 : vector<1x32xf32> to vector<32x32xf32>
    %128 = arith.mulf %124, %127 : vector<32x32xf32>
    %c0_59 = arith.constant 0 : index
    %c0_60 = arith.constant 0 : index
    %c0_61 = arith.constant 0 : index
    %129 = vector.load %arg13[%c0_59, %c0_60, %c0_61] : memref<2x1x32xf32, #tpu.memory_space<vmem>>, vector<1x1x32xf32>
    %130 = vector.shape_cast %129 : vector<1x1x32xf32> to vector<1x32xf32>
    %131 = vector.broadcast %130 : vector<1x32xf32> to vector<32x32xf32>
    %132 = arith.addf %128, %131 : vector<32x32xf32>
    %133 = vector.shape_cast %132 : vector<32x32xf32> to vector<2x16x32xf32>
    %134 = vector.shape_cast %133 : vector<2x16x32xf32> to vector<32x32xf32>
    %c1 = arith.constant 1 : index
    %c0_62 = arith.constant 0 : index
    %c0_63 = arith.constant 0 : index
    %135 = vector.load %arg8[%c1, %c0_62, %c0_63] : memref<2x32x96xf32, #tpu.memory_space<vmem>>, vector<1x32x96xf32>
    %136 = vector.shape_cast %135 : vector<1x32x96xf32> to vector<32x96xf32>
    %cst_64 = arith.constant dense<0.000000e+00> : vector<32x96xf32>
    %137 = tpu.matmul %134, %136, %cst_64 {dimension_numbers = #tpu.dot_dimension_numbers<[1], [0], [0], [1], [0, 0, 1, 1], [], []>} : vector<32x32xf32>, vector<32x96xf32>, vector<32x96xf32> -> vector<32x96xf32>
    %c1_65 = arith.constant 1 : index
    %c0_66 = arith.constant 0 : index
    %c0_67 = arith.constant 0 : index
    %138 = vector.load %arg9[%c1_65, %c0_66, %c0_67] : memref<2x1x96xf32, #tpu.memory_space<vmem>>, vector<1x1x96xf32>
    %139 = vector.shape_cast %138 : vector<1x1x96xf32> to vector<1x96xf32>
    %140 = vector.broadcast %139 : vector<1x96xf32> to vector<32x96xf32>
    %141 = arith.addf %137, %140 : vector<32x96xf32>
    %142 = vector.shape_cast %141 : vector<32x96xf32> to vector<2x16x96xf32>
    %143 = vector.extract_strided_slice %142 {offsets = [0, 0, 0], sizes = [2, 16, 32], strides = [1, 1, 1]} : vector<2x16x96xf32> to vector<2x16x32xf32>
    %cst_68 = arith.constant 0.353553385 : f32
    %144 = vector.broadcast %cst_68 : f32 to vector<2x16x32xf32>
    %145 = arith.mulf %143, %144 : vector<2x16x32xf32>
    %146 = vector.extract_strided_slice %142 {offsets = [0, 0, 32], sizes = [2, 16, 32], strides = [1, 1, 1]} : vector<2x16x96xf32> to vector<2x16x32xf32>
    %147 = vector.extract_strided_slice %142 {offsets = [0, 0, 64], sizes = [2, 16, 32], strides = [1, 1, 1]} : vector<2x16x96xf32> to vector<2x16x32xf32>
    %148 = vector.extract_strided_slice %145 {offsets = [0, 0, 0], sizes = [2, 16, 8], strides = [1, 1, 1]} : vector<2x16x32xf32> to vector<2x16x8xf32>
    %149 = vector.extract_strided_slice %146 {offsets = [0, 0, 0], sizes = [2, 16, 8], strides = [1, 1, 1]} : vector<2x16x32xf32> to vector<2x16x8xf32>
    %150 = vector.extract_strided_slice %147 {offsets = [0, 0, 0], sizes = [2, 16, 8], strides = [1, 1, 1]} : vector<2x16x32xf32> to vector<2x16x8xf32>
    "tpu.trace_start"() <{level = 10 : i32, message = "bsd,btd->bst"}> : () -> ()
    %cst_69 = arith.constant dense<0.000000e+00> : vector<2x16x16xf32>
    %151 = tpu.matmul %148, %149, %cst_69 {dimension_numbers = #tpu.dot_dimension_numbers<[2], [2], [1], [1], [0, 0, 0, 1, 1, 1], [0], [0]>} : vector<2x16x8xf32>, vector<2x16x8xf32>, vector<2x16x16xf32> -> vector<2x16x16xf32>
    "tpu.trace_stop"() : () -> ()
    %cst_70 = arith.constant dense<0xFF800000> : vector<2x16xf32>
    %152 = vector.multi_reduction <maximumf>, %151, %cst_70 [2] : vector<2x16x16xf32> to vector<2x16xf32>
    %153 = vector.shape_cast %152 : vector<2x16xf32> to vector<2x16x1xf32>
    %154 = vector.broadcast %153 : vector<2x16x1xf32> to vector<2x16x16xf32>
    %155 = arith.subf %151, %154 : vector<2x16x16xf32>
    %156 = math.exp %155 : vector<2x16x16xf32>
    %cst_71 = arith.constant dense<0.000000e+00> : vector<2x16xf32>
    %157 = vector.multi_reduction <add>, %156, %cst_71 [2] : vector<2x16x16xf32> to vector<2x16xf32>
    %158 = vector.shape_cast %157 : vector<2x16xf32> to vector<2x16x1xf32>
    %159 = tpu.reciprocal %158 {approx = true} : vector<2x16x1xf32> -> vector<2x16x1xf32>
    %160 = vector.broadcast %159 : vector<2x16x1xf32> to vector<2x16x16xf32>
    %161 = arith.mulf %156, %160 : vector<2x16x16xf32>
    "tpu.trace_start"() <{level = 10 : i32, message = "bst,btd->bsd"}> : () -> ()
    %cst_72 = arith.constant dense<0.000000e+00> : vector<2x16x8xf32>
    %162 = tpu.matmul %161, %150, %cst_72 {dimension_numbers = #tpu.dot_dimension_numbers<[2], [1], [1], [2], [0, 0, 0, 1, 1, 2], [0], [0]>} : vector<2x16x16xf32>, vector<2x16x8xf32>, vector<2x16x8xf32> -> vector<2x16x8xf32>
    "tpu.trace_stop"() : () -> ()
    %163 = vector.extract_strided_slice %145 {offsets = [0, 0, 8], sizes = [2, 16, 8], strides = [1, 1, 1]} : vector<2x16x32xf32> to vector<2x16x8xf32>
    %164 = vector.extract_strided_slice %146 {offsets = [0, 0, 8], sizes = [2, 16, 8], strides = [1, 1, 1]} : vector<2x16x32xf32> to vector<2x16x8xf32>
    %165 = vector.extract_strided_slice %147 {offsets = [0, 0, 8], sizes = [2, 16, 8], strides = [1, 1, 1]} : vector<2x16x32xf32> to vector<2x16x8xf32>
    "tpu.trace_start"() <{level = 10 : i32, message = "bsd,btd->bst"}> : () -> ()
    %cst_73 = arith.constant dense<0.000000e+00> : vector<2x16x16xf32>
    %166 = tpu.matmul %163, %164, %cst_73 {dimension_numbers = #tpu.dot_dimension_numbers<[2], [2], [1], [1], [0, 0, 0, 1, 1, 1], [0], [0]>} : vector<2x16x8xf32>, vector<2x16x8xf32>, vector<2x16x16xf32> -> vector<2x16x16xf32>
    "tpu.trace_stop"() : () -> ()
    %cst_74 = arith.constant dense<0xFF800000> : vector<2x16xf32>
    %167 = vector.multi_reduction <maximumf>, %166, %cst_74 [2] : vector<2x16x16xf32> to vector<2x16xf32>
    %168 = vector.shape_cast %167 : vector<2x16xf32> to vector<2x16x1xf32>
    %169 = vector.broadcast %168 : vector<2x16x1xf32> to vector<2x16x16xf32>
    %170 = arith.subf %166, %169 : vector<2x16x16xf32>
    %171 = math.exp %170 : vector<2x16x16xf32>
    %cst_75 = arith.constant dense<0.000000e+00> : vector<2x16xf32>
    %172 = vector.multi_reduction <add>, %171, %cst_75 [2] : vector<2x16x16xf32> to vector<2x16xf32>
    %173 = vector.shape_cast %172 : vector<2x16xf32> to vector<2x16x1xf32>
    %174 = tpu.reciprocal %173 {approx = true} : vector<2x16x1xf32> -> vector<2x16x1xf32>
    %175 = vector.broadcast %174 : vector<2x16x1xf32> to vector<2x16x16xf32>
    %176 = arith.mulf %171, %175 : vector<2x16x16xf32>
    "tpu.trace_start"() <{level = 10 : i32, message = "bst,btd->bsd"}> : () -> ()
    %cst_76 = arith.constant dense<0.000000e+00> : vector<2x16x8xf32>
    %177 = tpu.matmul %176, %165, %cst_76 {dimension_numbers = #tpu.dot_dimension_numbers<[2], [1], [1], [2], [0, 0, 0, 1, 1, 2], [0], [0]>} : vector<2x16x16xf32>, vector<2x16x8xf32>, vector<2x16x8xf32> -> vector<2x16x8xf32>
    "tpu.trace_stop"() : () -> ()
    %178 = vector.extract_strided_slice %145 {offsets = [0, 0, 16], sizes = [2, 16, 8], strides = [1, 1, 1]} : vector<2x16x32xf32> to vector<2x16x8xf32>
    %179 = vector.extract_strided_slice %146 {offsets = [0, 0, 16], sizes = [2, 16, 8], strides = [1, 1, 1]} : vector<2x16x32xf32> to vector<2x16x8xf32>
    %180 = vector.extract_strided_slice %147 {offsets = [0, 0, 16], sizes = [2, 16, 8], strides = [1, 1, 1]} : vector<2x16x32xf32> to vector<2x16x8xf32>
    "tpu.trace_start"() <{level = 10 : i32, message = "bsd,btd->bst"}> : () -> ()
    %cst_77 = arith.constant dense<0.000000e+00> : vector<2x16x16xf32>
    %181 = tpu.matmul %178, %179, %cst_77 {dimension_numbers = #tpu.dot_dimension_numbers<[2], [2], [1], [1], [0, 0, 0, 1, 1, 1], [0], [0]>} : vector<2x16x8xf32>, vector<2x16x8xf32>, vector<2x16x16xf32> -> vector<2x16x16xf32>
    "tpu.trace_stop"() : () -> ()
    %cst_78 = arith.constant dense<0xFF800000> : vector<2x16xf32>
    %182 = vector.multi_reduction <maximumf>, %181, %cst_78 [2] : vector<2x16x16xf32> to vector<2x16xf32>
    %183 = vector.shape_cast %182 : vector<2x16xf32> to vector<2x16x1xf32>
    %184 = vector.broadcast %183 : vector<2x16x1xf32> to vector<2x16x16xf32>
    %185 = arith.subf %181, %184 : vector<2x16x16xf32>
    %186 = math.exp %185 : vector<2x16x16xf32>
    %cst_79 = arith.constant dense<0.000000e+00> : vector<2x16xf32>
    %187 = vector.multi_reduction <add>, %186, %cst_79 [2] : vector<2x16x16xf32> to vector<2x16xf32>
    %188 = vector.shape_cast %187 : vector<2x16xf32> to vector<2x16x1xf32>
    %189 = tpu.reciprocal %188 {approx = true} : vector<2x16x1xf32> -> vector<2x16x1xf32>
    %190 = vector.broadcast %189 : vector<2x16x1xf32> to vector<2x16x16xf32>
    %191 = arith.mulf %186, %190 : vector<2x16x16xf32>
    "tpu.trace_start"() <{level = 10 : i32, message = "bst,btd->bsd"}> : () -> ()
    %cst_80 = arith.constant dense<0.000000e+00> : vector<2x16x8xf32>
    %192 = tpu.matmul %191, %180, %cst_80 {dimension_numbers = #tpu.dot_dimension_numbers<[2], [1], [1], [2], [0, 0, 0, 1, 1, 2], [0], [0]>} : vector<2x16x16xf32>, vector<2x16x8xf32>, vector<2x16x8xf32> -> vector<2x16x8xf32>
    "tpu.trace_stop"() : () -> ()
    %193 = vector.extract_strided_slice %145 {offsets = [0, 0, 24], sizes = [2, 16, 8], strides = [1, 1, 1]} : vector<2x16x32xf32> to vector<2x16x8xf32>
    %194 = vector.extract_strided_slice %146 {offsets = [0, 0, 24], sizes = [2, 16, 8], strides = [1, 1, 1]} : vector<2x16x32xf32> to vector<2x16x8xf32>
    %195 = vector.extract_strided_slice %147 {offsets = [0, 0, 24], sizes = [2, 16, 8], strides = [1, 1, 1]} : vector<2x16x32xf32> to vector<2x16x8xf32>
    "tpu.trace_start"() <{level = 10 : i32, message = "bsd,btd->bst"}> : () -> ()
    %cst_81 = arith.constant dense<0.000000e+00> : vector<2x16x16xf32>
    %196 = tpu.matmul %193, %194, %cst_81 {dimension_numbers = #tpu.dot_dimension_numbers<[2], [2], [1], [1], [0, 0, 0, 1, 1, 1], [0], [0]>} : vector<2x16x8xf32>, vector<2x16x8xf32>, vector<2x16x16xf32> -> vector<2x16x16xf32>
    "tpu.trace_stop"() : () -> ()
    %cst_82 = arith.constant dense<0xFF800000> : vector<2x16xf32>
    %197 = vector.multi_reduction <maximumf>, %196, %cst_82 [2] : vector<2x16x16xf32> to vector<2x16xf32>
    %198 = vector.shape_cast %197 : vector<2x16xf32> to vector<2x16x1xf32>
    %199 = vector.broadcast %198 : vector<2x16x1xf32> to vector<2x16x16xf32>
    %200 = arith.subf %196, %199 : vector<2x16x16xf32>
    %201 = math.exp %200 : vector<2x16x16xf32>
    %cst_83 = arith.constant dense<0.000000e+00> : vector<2x16xf32>
    %202 = vector.multi_reduction <add>, %201, %cst_83 [2] : vector<2x16x16xf32> to vector<2x16xf32>
    %203 = vector.shape_cast %202 : vector<2x16xf32> to vector<2x16x1xf32>
    %204 = tpu.reciprocal %203 {approx = true} : vector<2x16x1xf32> -> vector<2x16x1xf32>
    %205 = vector.broadcast %204 : vector<2x16x1xf32> to vector<2x16x16xf32>
    %206 = arith.mulf %201, %205 : vector<2x16x16xf32>
    "tpu.trace_start"() <{level = 10 : i32, message = "bst,btd->bsd"}> : () -> ()
    %cst_84 = arith.constant dense<0.000000e+00> : vector<2x16x8xf32>
    %207 = tpu.matmul %206, %195, %cst_84 {dimension_numbers = #tpu.dot_dimension_numbers<[2], [1], [1], [2], [0, 0, 0, 1, 1, 2], [0], [0]>} : vector<2x16x16xf32>, vector<2x16x8xf32>, vector<2x16x8xf32> -> vector<2x16x8xf32>
    "tpu.trace_stop"() : () -> ()
    %208 = tpu.concatenate %162, %177, %192, %207 in 2 : vector<2x16x8xf32>, vector<2x16x8xf32>, vector<2x16x8xf32>, vector<2x16x8xf32> -> vector<2x16x32xf32>
    %209 = vector.shape_cast %208 : vector<2x16x32xf32> to vector<32x32xf32>
    %c1_85 = arith.constant 1 : index
    %c0_86 = arith.constant 0 : index
    %c0_87 = arith.constant 0 : index
    %210 = vector.load %arg10[%c1_85, %c0_86, %c0_87] : memref<2x32x32xf32, #tpu.memory_space<vmem>>, vector<1x32x32xf32>
    %211 = vector.shape_cast %210 : vector<1x32x32xf32> to vector<32x32xf32>
    %cst_88 = arith.constant dense<0.000000e+00> : vector<32x32xf32>
    %212 = tpu.matmul %209, %211, %cst_88 {dimension_numbers = #tpu.dot_dimension_numbers<[1], [0], [0], [1], [0, 0, 1, 1], [], []>} : vector<32x32xf32>, vector<32x32xf32>, vector<32x32xf32> -> vector<32x32xf32>
    %c1_89 = arith.constant 1 : index
    %c0_90 = arith.constant 0 : index
    %c0_91 = arith.constant 0 : index
    %213 = vector.load %arg11[%c1_89, %c0_90, %c0_91] : memref<2x1x32xf32, #tpu.memory_space<vmem>>, vector<1x1x32xf32>
    %214 = vector.shape_cast %213 : vector<1x1x32xf32> to vector<1x32xf32>
    %215 = vector.broadcast %214 : vector<1x32xf32> to vector<32x32xf32>
    %216 = arith.addf %212, %215 : vector<32x32xf32>
    %217 = arith.addf %134, %216 : vector<32x32xf32>
    %cst_92 = arith.constant dense<0.000000e+00> : vector<32xf32>
    %218 = vector.multi_reduction <add>, %217, %cst_92 [1] : vector<32x32xf32> to vector<32xf32>
    %219 = vector.shape_cast %218 : vector<32xf32> to vector<32x1xf32>
    %cst_93 = arith.constant 3.200000e+01 : f32
    %220 = vector.broadcast %cst_93 : f32 to vector<32x1xf32>
    %221 = arith.divf %219, %220 : vector<32x1xf32>
    %222 = vector.broadcast %221 : vector<32x1xf32> to vector<32x32xf32>
    %223 = arith.subf %217, %222 : vector<32x32xf32>
    %224 = arith.mulf %223, %223 : vector<32x32xf32>
    %cst_94 = arith.constant dense<0.000000e+00> : vector<32xf32>
    %225 = vector.multi_reduction <add>, %224, %cst_94 [1] : vector<32x32xf32> to vector<32xf32>
    %226 = vector.shape_cast %225 : vector<32xf32> to vector<32x1xf32>
    %cst_95 = arith.constant 3.200000e+01 : f32
    %227 = vector.broadcast %cst_95 : f32 to vector<32x1xf32>
    %228 = arith.divf %226, %227 : vector<32x1xf32>
    %229 = vector.broadcast %221 : vector<32x1xf32> to vector<32x32xf32>
    %230 = arith.subf %217, %229 : vector<32x32xf32>
    %cst_96 = arith.constant 9.99999974E-6 : f32
    %231 = vector.broadcast %cst_96 : f32 to vector<32x1xf32>
    %232 = arith.addf %228, %231 : vector<32x1xf32>
    %233 = math.rsqrt %232 : vector<32x1xf32>
    %234 = vector.broadcast %233 : vector<32x1xf32> to vector<32x32xf32>
    %235 = arith.mulf %230, %234 : vector<32x32xf32>
    %c1_97 = arith.constant 1 : index
    %c0_98 = arith.constant 0 : index
    %c0_99 = arith.constant 0 : index
    %236 = vector.load %arg12[%c1_97, %c0_98, %c0_99] : memref<2x1x32xf32, #tpu.memory_space<vmem>>, vector<1x1x32xf32>
    %237 = vector.shape_cast %236 : vector<1x1x32xf32> to vector<1x32xf32>
    %238 = vector.broadcast %237 : vector<1x32xf32> to vector<32x32xf32>
    %239 = arith.mulf %235, %238 : vector<32x32xf32>
    %c1_100 = arith.constant 1 : index
    %c0_101 = arith.constant 0 : index
    %c0_102 = arith.constant 0 : index
    %240 = vector.load %arg13[%c1_100, %c0_101, %c0_102] : memref<2x1x32xf32, #tpu.memory_space<vmem>>, vector<1x1x32xf32>
    %241 = vector.shape_cast %240 : vector<1x1x32xf32> to vector<1x32xf32>
    %242 = vector.broadcast %241 : vector<1x32xf32> to vector<32x32xf32>
    %243 = arith.addf %239, %242 : vector<32x32xf32>
    %244 = vector.shape_cast %243 : vector<32x32xf32> to vector<2x16x32xf32>
    %cst_103 = arith.constant dense<0.000000e+00> : vector<2x32xf32>
    %245 = vector.multi_reduction <add>, %244, %cst_103 [1] : vector<2x16x32xf32> to vector<2x32xf32>
    %cst_104 = arith.constant 6.250000e-02 : f32
    %246 = vector.broadcast %cst_104 : f32 to vector<2x32xf32>
    %247 = arith.mulf %245, %246 : vector<2x32xf32>
    %c0_105 = arith.constant 0 : index
    %c0_106 = arith.constant 0 : index
    %248 = vector.load %arg14[%c0_105, %c0_106] : memref<32x1xf32, #tpu.memory_space<vmem>>, vector<32x1xf32>
    %cst_107 = arith.constant dense<0.000000e+00> : vector<2x1xf32>
    %249 = tpu.matmul %247, %248, %cst_107 {dimension_numbers = #tpu.dot_dimension_numbers<[1], [0], [0], [1], [0, 0, 1, 1], [], []>} : vector<2x32xf32>, vector<32x1xf32>, vector<2x1xf32> -> vector<2x1xf32>
    %c0_108 = arith.constant 0 : index
    %c0_109 = arith.constant 0 : index
    %250 = vector.load %arg15[%c0_108, %c0_109] : memref<1x1xf32, #tpu.memory_space<vmem>>, vector<1x1xf32>
    %251 = vector.broadcast %250 : vector<1x1xf32> to vector<2x1xf32>
    %252 = arith.addf %249, %251 : vector<2x1xf32>
    %c0_110 = arith.constant 0 : index
    %c0_111 = arith.constant 0 : index
    %253 = vector.load %arg16[%c0_110, %c0_111] : memref<2x1xf32, #tpu.memory_space<vmem>>, vector<2x1xf32>
    tpu.vector_store %arg16[%c0_110, %c0_111], %252 {strides = array<i32>} : memref<2x1xf32, #tpu.memory_space<vmem>>, vector<2x1xf32>,
    return
  }
}

</mosaic_0001>

<llo_original>
// kernel: tcr_epitope_transformer.1
$region0: #{tcr_epitope_transformer.1}
  #allocation0 [shape = 'u32[]', space=smem, size = 0x4, offset = 0x4, fixed_abs, tag = 'smem constant byte address 0x4 - core index']
  #allocation1 [shape = 'u32[144,128]{1,0:T(1,128)}', space=vmem, size = 0x12000, scoped, tag = 'internal scratch']
  #allocation2 [shape = 'f32[1,1]{1,0:T(1,128)S(1)}', space=vmem, size = 0x200, scoped, tag = 'scoped memory for tcr_epitope_transformer.1']
  %s0 = inlined_call_operand.vmem [shape: f32[2,8,512], index: 0, kind: input, shape index: {}]
  %s1 = inlined_call_operand.vmem [shape: f32[2,8,512], index: 1, kind: input, shape index: {}]
  %s2 = inlined_call_operand.vmem [shape: f32[512,32], index: 2, kind: input, shape index: {}]
  %s3 = inlined_call_operand.vmem [shape: f32[1,32], index: 3, kind: input, shape index: {}]
  %s4 = inlined_call_operand.vmem [shape: f32[1,8,32], index: 4, kind: input, shape index: {}]
  %s5 = inlined_call_operand.vmem [shape: f32[512,32], index: 5, kind: input, shape index: {}]
  %s6 = inlined_call_operand.vmem [shape: f32[1,32], index: 6, kind: input, shape index: {}]
  %s7 = inlined_call_operand.vmem [shape: f32[1,8,32], index: 7, kind: input, shape index: {}]
  %s8 = inlined_call_operand.vmem [shape: f32[2,32,96], index: 8, kind: input, shape index: {}]
  %s9 = inlined_call_operand.vmem [shape: f32[2,1,96], index: 9, kind: input, shape index: {}]
  %s10 = inlined_call_operand.vmem [shape: f32[2,32,32], index: 10, kind: input, shape index: {}]
  %s11 = inlined_call_operand.vmem [shape: f32[2,1,32], index: 11, kind: input, shape index: {}]
  %s12 = inlined_call_operand.vmem [shape: f32[2,1,32], index: 12, kind: input, shape index: {}]
  %s13 = inlined_call_operand.vmem [shape: f32[2,1,32], index: 13, kind: input, shape index: {}]
  %s14 = inlined_call_operand.vmem [shape: f32[32,1], index: 14, kind: input, shape index: {}]
  %s15 = inlined_call_operand.<no memory space> [shape: f32[1,1], index: 15, kind: input, shape index: {}]
  %s16 = inlined_call_operand.vmem [shape: f32[2,1], index: 16, kind: output, shape index: {}]
  %s17 = sld [smem:[#allocation0]]
  $region74: #{tcr_epitope_transformer.1} parent=0
    _
  %s19 = ssub.s32 1, %s17
  %s20 = scalar_select 0, %s19, %s17
  %v21 = vstv %s15
  %22 = vst [vmem:[#allocation2] sm:$0x1] %v21
  // Predicated region
  $region2: #{tcr_epitope_transformer.1} parent=0 // pred_check
    _
  $region3: #{tcr_epitope_transformer.1} parent=0 // pred_check_branch
    %24 = sbr.rel (0) target = $region5
  $region4: #{tcr_epitope_transformer.1} parent=0 // pred_region
    _
  $region5: #{tcr_epitope_transformer.1} parent=0 // pred_fallthru
    _
  // Predicated region
  $region6: #{tcr_epitope_transformer.1} parent=0 // pred_check
    _
  $region7: #{tcr_epitope_transformer.1} parent=0 // pred_check_branch
    %26 = sbr.rel (0) target = $region9
  $region8: #{tcr_epitope_transformer.1} parent=0 // pred_region
    _
  $region9: #{tcr_epitope_transformer.1} parent=0 // pred_fallthru
    _
  // Predicated region
  $region10: #{tcr_epitope_transformer.1} parent=0 // pred_check
    _
  $region11: #{tcr_epitope_transformer.1} parent=0 // pred_check_branch
    %28 = sbr.rel (0) target = $region13
  $region12: #{tcr_epitope_transformer.1} parent=0 // pred_region
    _
  $region13: #{tcr_epitope_transformer.1} parent=0 // pred_fallthru
    _
  // Predicated region
  $region14: #{tcr_epitope_transformer.1} parent=0 // pred_check
    _
  $region15: #{tcr_epitope_transformer.1} parent=0 // pred_check_branch
    %30 = sbr.rel (0) target = $region17
  $region16: #{tcr_epitope_transformer.1} parent=0 // pred_region
    _
  $region17: #{tcr_epitope_transformer.1} parent=0 // pred_fallthru
    _
  // Predicated region
  $region18: #{tcr_epitope_transformer.1} parent=0 // pred_check
    _
  $region19: #{tcr_epitope_transformer.1} parent=0 // pred_check_branch
    %32 = sbr.rel (0) target = $region21
  $region20: #{tcr_epitope_transformer.1} parent=0 // pred_region
    _
  $region21: #{tcr_epitope_transformer.1} parent=0 // pred_fallthru
    _
  // Predicated region
  $region22: #{tcr_epitope_transformer.1} parent=0 // pred_check
    _
  $region23: #{tcr_epitope_transformer.1} parent=0 // pred_check_branch
    %34 = sbr.rel (0) target = $region25
  $region24: #{tcr_epitope_transformer.1} parent=0 // pred_region
    _
  $region25: #{tcr_epitope_transformer.1} parent=0 // pred_fallthru
    _
  // Predicated region
  $region26: #{tcr_epitope_transformer.1} parent=0 // pred_check
    _
  $region27: #{tcr_epitope_transformer.1} parent=0 // pred_check_branch
    %36 = sbr.rel (0) target = $region29
  $region28: #{tcr_epitope_transformer.1} parent=0 // pred_region
    _
  $region29: #{tcr_epitope_transformer.1} parent=0 // pred_fallthru
    _
  // Predicated region
  $region30: #{tcr_epitope_transformer.1} parent=0 // pred_check
    _
  $region31: #{tcr_epitope_transformer.1} parent=0 // pred_check_branch
    %38 = sbr.rel (0) target = $region33
  $region32: #{tcr_epitope_transformer.1} parent=0 // pred_region
    _
  $region33: #{tcr_epitope_transformer.1} parent=0 // pred_fallthru
    _
  // Predicated region
  $region34: #{tcr_epitope_transformer.1} parent=0 // pred_check
    _
  $region35: #{tcr_epitope_transformer.1} parent=0 // pred_check_branch
    %40 = sbr.rel (0) target = $region37
  $region36: #{tcr_epitope_transformer.1} parent=0 // pred_region
    _
  $region37: #{tcr_epitope_transformer.1} parent=0 // pred_fallthru
    _
  // Predicated region
  $region38: #{tcr_epitope_transformer.1} parent=0 // pred_check
    _
  $region39: #{tcr_epitope_transformer.1} parent=0 // pred_check_branch
    %42 = sbr.rel (0) target = $region41
  $region40: #{tcr_epitope_transformer.1} parent=0 // pred_region
    _
  $region41: #{tcr_epitope_transformer.1} parent=0 // pred_fallthru
    _
  // Predicated region
  $region42: #{tcr_epitope_transformer.1} parent=0 // pred_check
    _
  $region43: #{tcr_epitope_transformer.1} parent=0 // pred_check_branch
    %44 = sbr.rel (0) target = $region45
  $region44: #{tcr_epitope_transformer.1} parent=0 // pred_region
    _
  $region45: #{tcr_epitope_transformer.1} parent=0 // pred_fallthru
    _
  // Predicated region
  $region46: #{tcr_epitope_transformer.1} parent=0 // pred_check
    _
  $region47: #{tcr_epitope_transformer.1} parent=0 // pred_check_branch
    %46 = sbr.rel (0) target = $region49
  $region48: #{tcr_epitope_transformer.1} parent=0 // pred_region
    _
  $region49: #{tcr_epitope_transformer.1} parent=0 // pred_fallthru
    _
  // Predicated region
  $region50: #{tcr_epitope_transformer.1} parent=0 // pred_check
    _
  $region51: #{tcr_epitope_transformer.1} parent=0 // pred_check_branch
    %48 = sbr.rel (0) target = $region53
  $region52: #{tcr_epitope_transformer.1} parent=0 // pred_region
    _
  $region53: #{tcr_epitope_transformer.1} parent=0 // pred_fallthru
    _
  // Predicated region
  $region54: #{tcr_epitope_transformer.1} parent=0 // pred_check
    _
  $region55: #{tcr_epitope_transformer.1} parent=0 // pred_check_branch
    %50 = sbr.rel (0) target = $region57
  $region56: #{tcr_epitope_transformer.1} parent=0 // pred_region
    _
  $region57: #{tcr_epitope_transformer.1} parent=0 // pred_fallthru
    _
  // Predicated region
  $region58: #{tcr_epitope_transformer.1} parent=0 // pred_check
    _
  $region59: #{tcr_epitope_transformer.1} parent=0 // pred_check_branch
    %52 = sbr.rel (0) target = $region61
  $region60: #{tcr_epitope_transformer.1} parent=0 // pred_region
    _
  $region61: #{tcr_epitope_transformer.1} parent=0 // pred_fallthru
    _
  // Predicated region
  $region62: #{tcr_epitope_transformer.1} parent=0 // pred_check
    _
  $region63: #{tcr_epitope_transformer.1} parent=0 // pred_check_branch
    %54 = sbr.rel (0) target = $region65
  $region64: #{tcr_epitope_transformer.1} parent=0 // pred_region
    _
  $region65: #{tcr_epitope_transformer.1} parent=0 // pred_fallthru
    _
  %v55 = vld [vmem:[%s0] sm:$0xff]
  %v56 = vld [vmem:[%s0 + $0x8] sm:$0xff]
  %v57 = vld [vmem:[%s0 + $0x10] sm:$0xff]
  %v58 = vld [vmem:[%s0 + $0x18] sm:$0xff]
  %v59 = vld [vmem:[%s0 + $0x20] sm:$0xff]
  %v60 = vld [vmem:[%s0 + $0x28] sm:$0xff]
  %v61 = vld [vmem:[%s0 + $0x30] sm:$0xff]
  %v62 = vld [vmem:[%s0 + $0x38] sm:$0xff]
  %v63 = vld [vmem:[%s2] sm:$0xff]
  %v64 = vld [vmem:[%s2 + $0x8] sm:$0xff]
  %v65 = vld [vmem:[%s2 + $0x10] sm:$0xff]
  %v66 = vld [vmem:[%s2 + $0x18] sm:$0xff]
  %v67 = vld [vmem:[%s2 + $0x20] sm:$0xff]
  %v68 = vld [vmem:[%s2 + $0x28] sm:$0xff]
  %v69 = vld [vmem:[%s2 + $0x30] sm:$0xff]
  %v70 = vld [vmem:[%s2 + $0x38] sm:$0xff]
  %v71 = vld [vmem:[%s2 + $0x40] sm:$0xff]
  %v72 = vld [vmem:[%s2 + $0x48] sm:$0xff]
  %v73 = vld [vmem:[%s2 + $0x50] sm:$0xff]
  %v74 = vld [vmem:[%s2 + $0x58] sm:$0xff]
  %v75 = vld [vmem:[%s2 + $0x60] sm:$0xff]
  %v76 = vld [vmem:[%s2 + $0x68] sm:$0xff]
  %v77 = vld [vmem:[%s2 + $0x70] sm:$0xff]
  %v78 = vld [vmem:[%s2 + $0x78] sm:$0xff]
  %v79 = vld [vmem:[%s2 + $0x80] sm:$0xff]
  %v80 = vld [vmem:[%s2 + $0x88] sm:$0xff]
  %v81 = vld [vmem:[%s2 + $0x90] sm:$0xff]
  %v82 = vld [vmem:[%s2 + $0x98] sm:$0xff]
  %v83 = vld [vmem:[%s2 + $0xa0] sm:$0xff]
  %v84 = vld [vmem:[%s2 + $0xa8] sm:$0xff]
  %v85 = vld [vmem:[%s2 + $0xb0] sm:$0xff]
  %v86 = vld [vmem:[%s2 + $0xb8] sm:$0xff]
  %v87 = vld [vmem:[%s2 + $0xc0] sm:$0xff]
  %v88 = vld [vmem:[%s2 + $0xc8] sm:$0xff]
  %v89 = vld [vmem:[%s2 + $0xd0] sm:$0xff]
  %v90 = vld [vmem:[%s2 + $0xd8] sm:$0xff]
  %v91 = vld [vmem:[%s2 + $0xe0] sm:$0xff]
  %v92 = vld [vmem:[%s2 + $0xe8] sm:$0xff]
  %v93 = vld [vmem:[%s2 + $0xf0] sm:$0xff]
  %v94 = vld [vmem:[%s2 + $0xf8] sm:$0xff]
  %v95 = vld [vmem:[%s2 + $0x100] sm:$0xff]
  %v96 = vld [vmem:[%s2 + $0x108] sm:$0xff]
  %v97 = vld [vmem:[%s2 + $0x110] sm:$0xff]
  %v98 = vld [vmem:[%s2 + $0x118] sm:$0xff]
  %v99 = vld [vmem:[%s2 + $0x120] sm:$0xff]
  %v100 = vld [vmem:[%s2 + $0x128] sm:$0xff]
  %v101 = vld [vmem:[%s2 + $0x130] sm:$0xff]
  %v102 = vld [vmem:[%s2 + $0x138] sm:$0xff]
  %v103 = vld [vmem:[%s2 + $0x140] sm:$0xff]
  %v104 = vld [vmem:[%s2 + $0x148] sm:$0xff]
  %v105 = vld [vmem:[%s2 + $0x150] sm:$0xff]
  %v106 = vld [vmem:[%s2 + $0x158] sm:$0xff]
  %v107 = vld [vmem:[%s2 + $0x160] sm:$0xff]
  %v108 = vld [vmem:[%s2 + $0x168] sm:$0xff]
  %v109 = vld [vmem:[%s2 + $0x170] sm:$0xff]
  %v110 = vld [vmem:[%s2 + $0x178] sm:$0xff]
  %v111 = vld [vmem:[%s2 + $0x180] sm:$0xff]
  %v112 = vld [vmem:[%s2 + $0x188] sm:$0xff]
  %v113 = vld [vmem:[%s2 + $0x190] sm:$0xff]
  %v114 = vld [vmem:[%s2 + $0x198] sm:$0xff]
  %v115 = vld [vmem:[%s2 + $0x1a0] sm:$0xff]
  %v116 = vld [vmem:[%s2 + $0x1a8] sm:$0xff]
  %v117 = vld [vmem:[%s2 + $0x1b0] sm:$0xff]
  %v118 = vld [vmem:[%s2 + $0x1b8] sm:$0xff]
  %v119 = vld [vmem:[%s2 + $0x1c0] sm:$0xff]
  %v120 = vld [vmem:[%s2 + $0x1c8] sm:$0xff]
  %v121 = vld [vmem:[%s2 + $0x1d0] sm:$0xff]
  %v122 = vld [vmem:[%s2 + $0x1d8] sm:$0xff]
  %v123 = vld [vmem:[%s2 + $0x1e0] sm:$0xff]
  %v124 = vld [vmem:[%s2 + $0x1e8] sm:$0xff]
  %v125 = vld [vmem:[%s2 + $0x1f0] sm:$0xff]
  %v126 = vld [vmem:[%s2 + $0x1f8] sm:$0xff]
  %v127 = vld [vmem:[%s3] sm:$0x1]
  %v129 = vlaneseq
  %v130 = vshrl.u32 %v129, 7
  %v131 = vsub.s32 0, %v130
  %v132 = vrot.slane %v127, %v131
  %134 = vmatprep.subr.mxu0 0.0
  %135 = vmatpush1.msra.mxu0 %v78
  %136 = vmatprep.subr.mxu0 0.0
  %137 = vmatpush1.msra.mxu0 %v77
  %138 = vmatprep.subr.mxu0 0.0
  %139 = vmatpush1.msra.mxu0 %v76
  %140 = vmatprep.subr.mxu0 0.0
  %141 = vmatpush1.msra.mxu0 %v75
  %142 = vmatprep.subr.mxu0 0.0
  %143 = vmatpush1.msra.mxu0 %v74
  %144 = vmatprep.subr.mxu0 0.0
  %145 = vmatpush1.msra.mxu0 %v73
  %146 = vmatprep.subr.mxu0 0.0
  %147 = vmatpush1.msra.mxu0 %v72
  %148 = vmatprep.subr.mxu0 0.0
  %149 = vmatpush1.msra.mxu0 %v71
  %150 = vmatprep.subr.mxu0 0.0
  %151 = vmatpush1.msra.mxu0 %v70
  %152 = vmatprep.subr.mxu0 0.0
  %153 = vmatpush1.msra.mxu0 %v69
  %154 = vmatprep.subr.mxu0 0.0
  %155 = vmatpush1.msra.mxu0 %v68
  %156 = vmatprep.subr.mxu0 0.0
  %157 = vmatpush1.msra.mxu0 %v67
  %158 = vmatprep.subr.mxu0 0.0
  %159 = vmatpush1.msra.mxu0 %v66
  %160 = vmatprep.subr.mxu0 0.0
  %161 = vmatpush1.msra.mxu0 %v65
  %162 = vmatprep.subr.mxu0 0.0
  %163 = vmatpush1.msra.mxu0 %v64
  %164 = vmatprep.subr.mxu0 0.0
  %165 = vmatpush1.msra.mxu0 %v63
  %166 = vmatprep.subr.mxu0 0.0
  %167 = vmatpush2.msra.mxu0 %v94
  %168 = vmatprep.subr.mxu0 0.0
  %169 = vmatpush2.msra.mxu0 %v93
  %170 = vmatprep.subr.mxu0 0.0
  %171 = vmatpush2.msra.mxu0 %v92
  %172 = vmatprep.subr.mxu0 0.0
  %173 = vmatpush2.msra.mxu0 %v91
  %174 = vmatprep.subr.mxu0 0.0
  %175 = vmatpush2.msra.mxu0 %v90
  %176 = vmatprep.subr.mxu0 0.0
  %177 = vmatpush2.msra.mxu0 %v89
  %178 = vmatprep.subr.mxu0 0.0
  %179 = vmatpush2.msra.mxu0 %v88
  %180 = vmatprep.subr.mxu0 0.0
  %181 = vmatpush2.msra.mxu0 %v87
  %182 = vmatprep.subr.mxu0 0.0
  %183 = vmatpush2.msra.mxu0 %v86
  %184 = vmatprep.subr.mxu0 0.0
  %185 = vmatpush2.msra.mxu0 %v85
  %186 = vmatprep.subr.mxu0 0.0
  %187 = vmatpush2.msra.mxu0 %v84
  %188 = vmatprep.subr.mxu0 0.0
  %189 = vmatpush2.msra.mxu0 %v83
  %190 = vmatprep.subr.mxu0 0.0
  %191 = vmatpush2.msra.mxu0 %v82
  %192 = vmatprep.subr.mxu0 0.0
  %193 = vmatpush2.msra.mxu0 %v81
  %194 = vmatprep.subr.mxu0 0.0
  %195 = vmatpush2.msra.mxu0 %v80
  %196 = vmatprep.subr.mxu0 0.0
  %197 = vmatpush2.msra.mxu0 %v79
  %198 = vmatprep.mubr.f32.mxu0 %v56
  %199 = vmatmul.mubr.f32.gmra.mxu0 %v55
  %v200 = vpop.f32.mrf.mxu0
  %v201 = vadd.f32 %v132, %v200
  %v202 = vpop.f32.mrf.mxu0
  %203 = vmatprep.mubr.f32.mxu0 %v60
  %204 = vmatmul.mubr.f32.gmra.mxu0 %v59
  %v205 = vpop.f32.mrf.mxu0
  %v206 = vadd.f32 %v132, %v205
  %v207 = vpop.f32.mrf.mxu0
  %208 = vdwg.mxu0
  %209 = vmatprep.subr.mxu0 0.0
  %210 = vmatpush1.msra.mxu0 %v110
  %211 = vmatprep.subr.mxu0 0.0
  %212 = vmatpush1.msra.mxu0 %v109
  %213 = vmatprep.subr.mxu0 0.0
  %214 = vmatpush1.msra.mxu0 %v108
  %215 = vmatprep.subr.mxu0 0.0
  %216 = vmatpush1.msra.mxu0 %v107
  %217 = vmatprep.subr.mxu0 0.0
  %218 = vmatpush1.msra.mxu0 %v106
  %219 = vmatprep.subr.mxu0 0.0
  %220 = vmatpush1.msra.mxu0 %v105
  %221 = vmatprep.subr.mxu0 0.0
  %222 = vmatpush1.msra.mxu0 %v104
  %223 = vmatprep.subr.mxu0 0.0
  %224 = vmatpush1.msra.mxu0 %v103
  %225 = vmatprep.subr.mxu0 0.0
  %226 = vmatpush1.msra.mxu0 %v102
  %227 = vmatprep.subr.mxu0 0.0
  %228 = vmatpush1.msra.mxu0 %v101
  %229 = vmatprep.subr.mxu0 0.0
  %230 = vmatpush1.msra.mxu0 %v100
  %231 = vmatprep.subr.mxu0 0.0
  %232 = vmatpush1.msra.mxu0 %v99
  %233 = vmatprep.subr.mxu0 0.0
  %234 = vmatpush1.msra.mxu0 %v98
  %235 = vmatprep.subr.mxu0 0.0
  %236 = vmatpush1.msra.mxu0 %v97
  %237 = vmatprep.subr.mxu0 0.0
  %238 = vmatpush1.msra.mxu0 %v96
  %239 = vmatprep.subr.mxu0 0.0
  %240 = vmatpush1.msra.mxu0 %v95
  %241 = vmatprep.subr.mxu0 0.0
  %242 = vmatpush2.msra.mxu0 %v126
  %243 = vmatprep.subr.mxu0 0.0
  %244 = vmatpush2.msra.mxu0 %v125
  %245 = vmatprep.subr.mxu0 0.0
  %246 = vmatpush2.msra.mxu0 %v124
  %247 = vmatprep.subr.mxu0 0.0
  %248 = vmatpush2.msra.mxu0 %v123
  %249 = vmatprep.subr.mxu0 0.0
  %250 = vmatpush2.msra.mxu0 %v122
  %251 = vmatprep.subr.mxu0 0.0
  %252 = vmatpush2.msra.mxu0 %v121
  %253 = vmatprep.subr.mxu0 0.0
  %254 = vmatpush2.msra.mxu0 %v120
  %255 = vmatprep.subr.mxu0 0.0
  %256 = vmatpush2.msra.mxu0 %v119
  %257 = vmatprep.subr.mxu0 0.0
  %258 = vmatpush2.msra.mxu0 %v118
  %259 = vmatprep.subr.mxu0 0.0
  %260 = vmatpush2.msra.mxu0 %v117
  %261 = vmatprep.subr.mxu0 0.0
  %262 = vmatpush2.msra.mxu0 %v116
  %263 = vmatprep.subr.mxu0 0.0
  %264 = vmatpush2.msra.mxu0 %v115
  %265 = vmatprep.subr.mxu0 0.0
  %266 = vmatpush2.msra.mxu0 %v114
  %267 = vmatprep.subr.mxu0 0.0
  %268 = vmatpush2.msra.mxu0 %v113
  %269 = vmatprep.subr.mxu0 0.0
  %270 = vmatpush2.msra.mxu0 %v112
  %271 = vmatprep.subr.mxu0 0.0
  %272 = vmatpush2.msra.mxu0 %v111
  %273 = vmatprep.mubr.f32.mxu0 %v58
  %274 = vmatmul.mubr.f32.gmra.mxu0 %v57
  %v275 = vpop.f32.mrf.mxu0
  %v276 = vadd.f32 %v201, %v275
  %v277 = vpop.f32.mrf.mxu0
  %278 = vmatprep.mubr.f32.mxu0 %v62
  %279 = vmatmul.mubr.f32.gmra.mxu0 %v61
  %v280 = vpop.f32.mrf.mxu0
  %v281 = vadd.f32 %v206, %v280
  %v282 = vpop.f32.mrf.mxu0
  %283 = vdwg.mxu0
  %v284 = vld [vmem:[%s4] sm:$0xff]
  %v285 = vadd.f32 %v276, %v284
  %v286 = vadd.f32 %v281, %v284
  %v287 = vld [vmem:[%s1] sm:$0xff]
  %v288 = vld [vmem:[%s1 + $0x8] sm:$0xff]
  %v289 = vld [vmem:[%s1 + $0x10] sm:$0xff]
  %v290 = vld [vmem:[%s1 + $0x18] sm:$0xff]
  %v291 = vld [vmem:[%s1 + $0x20] sm:$0xff]
  %v292 = vld [vmem:[%s1 + $0x28] sm:$0xff]
  %v293 = vld [vmem:[%s1 + $0x30] sm:$0xff]
  %v294 = vld [vmem:[%s1 + $0x38] sm:$0xff]
  %v295 = vld [vmem:[%s5] sm:$0xff]
  %v296 = vld [vmem:[%s5 + $0x8] sm:$0xff]
  %v297 = vld [vmem:[%s5 + $0x10] sm:$0xff]
  %v298 = vld [vmem:[%s5 + $0x18] sm:$0xff]
  %v299 = vld [vmem:[%s5 + $0x20] sm:$0xff]
  %v300 = vld [vmem:[%s5 + $0x28] sm:$0xff]
  %v301 = vld [vmem:[%s5 + $0x30] sm:$0xff]
  %v302 = vld [vmem:[%s5 + $0x38] sm:$0xff]
  %v303 = vld [vmem:[%s5 + $0x40] sm:$0xff]
  %v304 = vld [vmem:[%s5 + $0x48] sm:$0xff]
  %v305 = vld [vmem:[%s5 + $0x50] sm:$0xff]
  %v306 = vld [vmem:[%s5 + $0x58] sm:$0xff]
  %v307 = vld [vmem:[%s5 + $0x60] sm:$0xff]
  %v308 = vld [vmem:[%s5 + $0x68] sm:$0xff]
  %v309 = vld [vmem:[%s5 + $0x70] sm:$0xff]
  %v310 = vld [vmem:[%s5 + $0x78] sm:$0xff]
  %v311 = vld [vmem:[%s5 + $0x80] sm:$0xff]
  %v312 = vld [vmem:[%s5 + $0x88] sm:$0xff]
  %v313 = vld [vmem:[%s5 + $0x90] sm:$0xff]
  %v314 = vld [vmem:[%s5 + $0x98] sm:$0xff]
  %v315 = vld [vmem:[%s5 + $0xa0] sm:$0xff]
  %v316 = vld [vmem:[%s5 + $0xa8] sm:$0xff]
  %v317 = vld [vmem:[%s5 + $0xb0] sm:$0xff]
  %v318 = vld [vmem:[%s5 + $0xb8] sm:$0xff]
  %v319 = vld [vmem:[%s5 + $0xc0] sm:$0xff]
  %v320 = vld [vmem:[%s5 + $0xc8] sm:$0xff]
  %v321 = vld [vmem:[%s5 + $0xd0] sm:$0xff]
  %v322 = vld [vmem:[%s5 + $0xd8] sm:$0xff]
  %v323 = vld [vmem:[%s5 + $0xe0] sm:$0xff]
  %v324 = vld [vmem:[%s5 + $0xe8] sm:$0xff]
  %v325 = vld [vmem:[%s5 + $0xf0] sm:$0xff]
  %v326 = vld [vmem:[%s5 + $0xf8] sm:$0xff]
  %v327 = vld [vmem:[%s5 + $0x100] sm:$0xff]
  %v328 = vld [vmem:[%s5 + $0x108] sm:$0xff]
  %v329 = vld [vmem:[%s5 + $0x110] sm:$0xff]
  %v330 = vld [vmem:[%s5 + $0x118] sm:$0xff]
  %v331 = vld [vmem:[%s5 + $0x120] sm:$0xff]
  %v332 = vld [vmem:[%s5 + $0x128] sm:$0xff]
  %v333 = vld [vmem:[%s5 + $0x130] sm:$0xff]
  %v334 = vld [vmem:[%s5 + $0x138] sm:$0xff]
  %v335 = vld [vmem:[%s5 + $0x140] sm:$0xff]
  %v336 = vld [vmem:[%s5 + $0x148] sm:$0xff]
  %v337 = vld [vmem:[%s5 + $0x150] sm:$0xff]
  %v338 = vld [vmem:[%s5 + $0x158] sm:$0xff]
  %v339 = vld [vmem:[%s5 + $0x160] sm:$0xff]
  %v340 = vld [vmem:[%s5 + $0x168] sm:$0xff]
  %v341 = vld [vmem:[%s5 + $0x170] sm:$0xff]
  %v342 = vld [vmem:[%s5 + $0x178] sm:$0xff]
  %v343 = vld [vmem:[%s5 + $0x180] sm:$0xff]
  %v344 = vld [vmem:[%s5 + $0x188] sm:$0xff]
  %v345 = vld [vmem:[%s5 + $0x190] sm:$0xff]
  %v346 = vld [vmem:[%s5 + $0x198] sm:$0xff]
  %v347 = vld [vmem:[%s5 + $0x1a0] sm:$0xff]
  %v348 = vld [vmem:[%s5 + $0x1a8] sm:$0xff]
  %v349 = vld [vmem:[%s5 + $0x1b0] sm:$0xff]
  %v350 = vld [vmem:[%s5 + $0x1b8] sm:$0xff]
  %v351 = vld [vmem:[%s5 + $0x1c0] sm:$0xff]
  %v352 = vld [vmem:[%s5 + $0x1c8] sm:$0xff]
  %v353 = vld [vmem:[%s5 + $0x1d0] sm:$0xff]
  %v354 = vld [vmem:[%s5 + $0x1d8] sm:$0xff]
  %v355 = vld [vmem:[%s5 + $0x1e0] sm:$0xff]
  %v356 = vld [vmem:[%s5 + $0x1e8] sm:$0xff]
  %v357 = vld [vmem:[%s5 + $0x1f0] sm:$0xff]
  %v358 = vld [vmem:[%s5 + $0x1f8] sm:$0xff]
  %v359 = vld [vmem:[%s6] sm:$0x1]
  %v361 = vlaneseq
  %v362 = vshrl.u32 %v361, 7
  %v363 = vsub.s32 0, %v362
  %v364 = vrot.slane %v359, %v363
  %366 = vmatprep.subr.mxu0 0.0
  %367 = vmatpush1.msra.mxu0 %v310
  %368 = vmatprep.subr.mxu0 0.0
  %369 = vmatpush1.msra.mxu0 %v309
  %370 = vmatprep.subr.mxu0 0.0
  %371 = vmatpush1.msra.mxu0 %v308
  %372 = vmatprep.subr.mxu0 0.0
  %373 = vmatpush1.msra.mxu0 %v307
  %374 = vmatprep.subr.mxu0 0.0
  %375 = vmatpush1.msra.mxu0 %v306
  %376 = vmatprep.subr.mxu0 0.0
  %377 = vmatpush1.msra.mxu0 %v305
  %378 = vmatprep.subr.mxu0 0.0
  %379 = vmatpush1.msra.mxu0 %v304
  %380 = vmatprep.subr.mxu0 0.0
  %381 = vmatpush1.msra.mxu0 %v303
  %382 = vmatprep.subr.mxu0 0.0
  %383 = vmatpush1.msra.mxu0 %v302
  %384 = vmatprep.subr.mxu0 0.0
  %385 = vmatpush1.msra.mxu0 %v301
  %386 = vmatprep.subr.mxu0 0.0
  %387 = vmatpush1.msra.mxu0 %v300
  %388 = vmatprep.subr.mxu0 0.0
  %389 = vmatpush1.msra.mxu0 %v299
  %390 = vmatprep.subr.mxu0 0.0
  %391 = vmatpush1.msra.mxu0 %v298
  %392 = vmatprep.subr.mxu0 0.0
  %393 = vmatpush1.msra.mxu0 %v297
  %394 = vmatprep.subr.mxu0 0.0
  %395 = vmatpush1.msra.mxu0 %v296
  %396 = vmatprep.subr.mxu0 0.0
  %397 = vmatpush1.msra.mxu0 %v295
  %398 = vmatprep.subr.mxu0 0.0
  %399 = vmatpush2.msra.mxu0 %v326
  %400 = vmatprep.subr.mxu0 0.0
  %401 = vmatpush2.msra.mxu0 %v325
  %402 = vmatprep.subr.mxu0 0.0
  %403 = vmatpush2.msra.mxu0 %v324
  %404 = vmatprep.subr.mxu0 0.0
  %405 = vmatpush2.msra.mxu0 %v323
  %406 = vmatprep.subr.mxu0 0.0
  %407 = vmatpush2.msra.mxu0 %v322
  %408 = vmatprep.subr.mxu0 0.0
  %409 = vmatpush2.msra.mxu0 %v321
  %410 = vmatprep.subr.mxu0 0.0
  %411 = vmatpush2.msra.mxu0 %v320
  %412 = vmatprep.subr.mxu0 0.0
  %413 = vmatpush2.msra.mxu0 %v319
  %414 = vmatprep.subr.mxu0 0.0
  %415 = vmatpush2.msra.mxu0 %v318
  %416 = vmatprep.subr.mxu0 0.0
  %417 = vmatpush2.msra.mxu0 %v317
  %418 = vmatprep.subr.mxu0 0.0
  %419 = vmatpush2.msra.mxu0 %v316
  %420 = vmatprep.subr.mxu0 0.0
  %421 = vmatpush2.msra.mxu0 %v315
  %422 = vmatprep.subr.mxu0 0.0
  %423 = vmatpush2.msra.mxu0 %v314
  %424 = vmatprep.subr.mxu0 0.0
  %425 = vmatpush2.msra.mxu0 %v313
  %426 = vmatprep.subr.mxu0 0.0
  %427 = vmatpush2.msra.mxu0 %v312
  %428 = vmatprep.subr.mxu0 0.0
  %429 = vmatpush2.msra.mxu0 %v311
  %430 = vmatprep.mubr.f32.mxu0 %v288
  %431 = vmatmul.mubr.f32.gmra.mxu0 %v287
  %v432 = vpop.f32.mrf.mxu0
  %v433 = vadd.f32 %v364, %v432
  %v434 = vpop.f32.mrf.mxu0
  %435 = vmatprep.mubr.f32.mxu0 %v292
  %436 = vmatmul.mubr.f32.gmra.mxu0 %v291
  %v437 = vpop.f32.mrf.mxu0
  %v438 = vadd.f32 %v364, %v437
  %v439 = vpop.f32.mrf.mxu0
  %440 = vdwg.mxu0
  %441 = vmatprep.subr.mxu0 0.0
  %442 = vmatpush1.msra.mxu0 %v342
  %443 = vmatprep.subr.mxu0 0.0
  %444 = vmatpush1.msra.mxu0 %v341
  %445 = vmatprep.subr.mxu0 0.0
  %446 = vmatpush1.msra.mxu0 %v340
  %447 = vmatprep.subr.mxu0 0.0
  %448 = vmatpush1.msra.mxu0 %v339
  %449 = vmatprep.subr.mxu0 0.0
  %450 = vmatpush1.msra.mxu0 %v338
  %451 = vmatprep.subr.mxu0 0.0
  %452 = vmatpush1.msra.mxu0 %v337
  %453 = vmatprep.subr.mxu0 0.0
  %454 = vmatpush1.msra.mxu0 %v336
  %455 = vmatprep.subr.mxu0 0.0
  %456 = vmatpush1.msra.mxu0 %v335
  %457 = vmatprep.subr.mxu0 0.0
  %458 = vmatpush1.msra.mxu0 %v334
  %459 = vmatprep.subr.mxu0 0.0
  %460 = vmatpush1.msra.mxu0 %v333
  %461 = vmatprep.subr.mxu0 0.0
  %462 = vmatpush1.msra.mxu0 %v332
  %463 = vmatprep.subr.mxu0 0.0
  %464 = vmatpush1.msra.mxu0 %v331
  %465 = vmatprep.subr.mxu0 0.0
  %466 = vmatpush1.msra.mxu0 %v330
  %467 = vmatprep.subr.mxu0 0.0
  %468 = vmatpush1.msra.mxu0 %v329
  %469 = vmatprep.subr.mxu0 0.0
  %470 = vmatpush1.msra.mxu0 %v328
  %471 = vmatprep.subr.mxu0 0.0
  %472 = vmatpush1.msra.mxu0 %v327
  %473 = vmatprep.subr.mxu0 0.0
  %474 = vmatpush2.msra.mxu0 %v358
  %475 = vmatprep.subr.mxu0 0.0
  %476 = vmatpush2.msra.mxu0 %v357
  %477 = vmatprep.subr.mxu0 0.0
  %478 = vmatpush2.msra.mxu0 %v356
  %479 = vmatprep.subr.mxu0 0.0
  %480 = vmatpush2.msra.mxu0 %v355
  %481 = vmatprep.subr.mxu0 0.0
  %482 = vmatpush2.msra.mxu0 %v354
  %483 = vmatprep.subr.mxu0 0.0
  %484 = vmatpush2.msra.mxu0 %v353
  %485 = vmatprep.subr.mxu0 0.0
  %486 = vmatpush2.msra.mxu0 %v352
  %487 = vmatprep.subr.mxu0 0.0
  %488 = vmatpush2.msra.mxu0 %v351
  %489 = vmatprep.subr.mxu0 0.0
  %490 = vmatpush2.msra.mxu0 %v350
  %491 = vmatprep.subr.mxu0 0.0
  %492 = vmatpush2.msra.mxu0 %v349
  %493 = vmatprep.subr.mxu0 0.0
  %494 = vmatpush2.msra.mxu0 %v348
  %495 = vmatprep.subr.mxu0 0.0
  %496 = vmatpush2.msra.mxu0 %v347
  %497 = vmatprep.subr.mxu0 0.0
  %498 = vmatpush2.msra.mxu0 %v346
  %499 = vmatprep.subr.mxu0 0.0
  %500 = vmatpush2.msra.mxu0 %v345
  %501 = vmatprep.subr.mxu0 0.0
  %502 = vmatpush2.msra.mxu0 %v344
  %503 = vmatprep.subr.mxu0 0.0
  %504 = vmatpush2.msra.mxu0 %v343
  %505 = vmatprep.mubr.f32.mxu0 %v290
  %506 = vmatmul.mubr.f32.gmra.mxu0 %v289
  %v507 = vpop.f32.mrf.mxu0
  %v508 = vadd.f32 %v433, %v507
  %v509 = vpop.f32.mrf.mxu0
  %510 = vmatprep.mubr.f32.mxu0 %v294
  %511 = vmatmul.mubr.f32.gmra.mxu0 %v293
  %v512 = vpop.f32.mrf.mxu0
  %v513 = vadd.f32 %v438, %v512
  %v514 = vpop.f32.mrf.mxu0
  %515 = vdwg.mxu0
  %v516 = vld [vmem:[%s7] sm:$0xff]
  %v517 = vadd.f32 %v508, %v516
  %v518 = vadd.f32 %v513, %v516
  %v519 = vld [vmem:[%s8] sm:$0xff]
  %v520 = vld [vmem:[%s8 + $0x8] sm:$0xff]
  %v521 = vld [vmem:[%s8 + $0x10] sm:$0xff]
  %v522 = vld [vmem:[%s8 + $0x18] sm:$0xff]
  %v523 = vld [vmem:[%s9] sm:$0x1]
  %v525 = vlaneseq
  %v526 = vshrl.u32 %v525, 7
  %v527 = vsub.s32 0, %v526
  %v528 = vrot.slane %v523, %v527
  %vm530 = vcmask 261120
  %v532 = vsel %vm530, %v285, 0
  %v535 = vsel %vm530, %v517, 0
  %v538 = vsel %vm530, %v286, 0
  %v541 = vsel %vm530, %v518, 0
  %543 = vmatprep.subr.mxu0 0.0
  %544 = vmatpush1.msra.mxu0 0.0
  %545 = vmatprep.subr.mxu0 0.0
  %546 = vmatpush1.msra.mxu0 0.0
  %547 = vmatprep.subr.mxu0 0.0
  %548 = vmatpush1.msra.mxu0 0.0
  %549 = vmatprep.subr.mxu0 0.0
  %550 = vmatpush1.msra.mxu0 0.0
  %551 = vmatprep.subr.mxu0 0.0
  %552 = vmatpush1.msra.mxu0 0.0
  %553 = vmatprep.subr.mxu0 0.0
  %554 = vmatpush1.msra.mxu0 0.0
  %555 = vmatprep.subr.mxu0 0.0
  %556 = vmatpush1.msra.mxu0 0.0
  %557 = vmatprep.subr.mxu0 0.0
  %558 = vmatpush1.msra.mxu0 0.0
  %559 = vmatprep.subr.mxu0 0.0
  %560 = vmatpush1.msra.mxu0 0.0
  %561 = vmatprep.subr.mxu0 0.0
  %562 = vmatpush1.msra.mxu0 0.0
  %563 = vmatprep.subr.mxu0 0.0
  %564 = vmatpush1.msra.mxu0 0.0
  %565 = vmatprep.subr.mxu0 0.0
  %566 = vmatpush1.msra.mxu0 0.0
  %567 = vmatprep.subr.mxu0 0.0
  %568 = vmatpush1.msra.mxu0 %v522
  %569 = vmatprep.subr.mxu0 0.0
  %570 = vmatpush1.msra.mxu0 %v521
  %571 = vmatprep.subr.mxu0 0.0
  %572 = vmatpush1.msra.mxu0 %v520
  %573 = vmatprep.subr.mxu0 0.0
  %574 = vmatpush1.msra.mxu0 %v519
  %575 = vmatprep.subr.mxu0 0.0
  %576 = vmatpush2.msra.mxu0 0.0
  %577 = vmatprep.subr.mxu0 0.0
  %578 = vmatpush2.msra.mxu0 0.0
  %579 = vmatprep.subr.mxu0 0.0
  %580 = vmatpush2.msra.mxu0 0.0
  %581 = vmatprep.subr.mxu0 0.0
  %582 = vmatpush2.msra.mxu0 0.0
  %583 = vmatprep.subr.mxu0 0.0
  %584 = vmatpush2.msra.mxu0 0.0
  %585 = vmatprep.subr.mxu0 0.0
  %586 = vmatpush2.msra.mxu0 0.0
  %587 = vmatprep.subr.mxu0 0.0
  %588 = vmatpush2.msra.mxu0 0.0
  %589 = vmatprep.subr.mxu0 0.0
  %590 = vmatpush2.msra.mxu0 0.0
  %591 = vmatprep.subr.mxu0 0.0
  %592 = vmatpush2.msra.mxu0 0.0
  %593 = vmatprep.subr.mxu0 0.0
  %594 = vmatpush2.msra.mxu0 0.0
  %595 = vmatprep.subr.mxu0 0.0
  %596 = vmatpush2.msra.mxu0 0.0
  %597 = vmatprep.subr.mxu0 0.0
  %598 = vmatpush2.msra.mxu0 0.0
  %599 = vmatprep.subr.mxu0 0.0
  %600 = vmatpush2.msra.mxu0 0.0
  %601 = vmatprep.subr.mxu0 0.0
  %602 = vmatpush2.msra.mxu0 0.0
  %603 = vmatprep.subr.mxu0 0.0
  %604 = vmatpush2.msra.mxu0 0.0
  %605 = vmatprep.subr.mxu0 0.0
  %606 = vmatpush2.msra.mxu0 0.0
  %607 = vmatprep.mubr.f32.mxu0 0.0
  %608 = vmatmul.mubr.f32.gmra.mxu0 %v532
  %v609 = vpop.f32.mrf.mxu0
  %v610 = vadd.f32 %v528, %v609
  %v611 = vpop.f32.mrf.mxu0
  %612 = vmatprep.mubr.f32.mxu0 0.0
  %613 = vmatmul.mubr.f32.gmra.mxu0 %v535
  %v614 = vpop.f32.mrf.mxu0
  %v615 = vadd.f32 %v528, %v614
  %v616 = vpop.f32.mrf.mxu0
  %617 = vmatprep.mubr.f32.mxu0 0.0
  %618 = vmatmul.mubr.f32.gmra.mxu0 %v538
  %v619 = vpop.f32.mrf.mxu0
  %v620 = vadd.f32 %v528, %v619
  %v621 = vpop.f32.mrf.mxu0
  %622 = vmatprep.mubr.f32.mxu0 0.0
  %623 = vmatmul.mubr.f32.gmra.mxu0 %v541
  %v624 = vpop.f32.mrf.mxu0
  %v625 = vadd.f32 %v528, %v624
  %v626 = vpop.f32.mrf.mxu0
  %627 = vdwg.mxu0
  %v628 = vmul.f32 %v610, 0.35355338
  %v629 = vmul.f32 %v615, 0.35355338
  %v630 = vmul.f32 %v620, 0.35355338
  %v631 = vmul.f32 %v625, 0.35355338
  %634 = vrot.lane.b32.xlu0 %v610, 96
  %v635 = vpop.permute.xlu0 %634
  %636 = vrot.lane.b32.xlu0 %v615, 96
  %v637 = vpop.permute.xlu0 %636
  %vm638 = vcmask 64512
  %v640 = vsel %vm638, %v628, 0
  %v643 = vsel %vm638, %v629, 0
  %v645 = vsel %vm638, %v635, 0
  %v647 = vsel %vm638, %v637, 0
  %649 = vmatprep.subr.mxu0 0.0
  %650 = vmatpush1.xpose.msra.mxu0 0.0
  %651 = vmatprep.subr.mxu0 0.0
  %652 = vmatpush1.xpose.msra.mxu0 0.0
  %653 = vmatprep.subr.mxu0 0.0
  %654 = vmatpush1.xpose.msra.mxu0 0.0
  %655 = vmatprep.subr.mxu0 0.0
  %656 = vmatpush1.xpose.msra.mxu0 0.0
  %657 = vmatprep.subr.mxu0 0.0
  %658 = vmatpush1.xpose.msra.mxu0 0.0
  %659 = vmatprep.subr.mxu0 0.0
  %660 = vmatpush1.xpose.msra.mxu0 0.0
  %661 = vmatprep.subr.mxu0 0.0
  %662 = vmatpush1.xpose.msra.mxu0 0.0
  %663 = vmatprep.subr.mxu0 0.0
  %664 = vmatpush1.xpose.msra.mxu0 0.0
  %665 = vmatprep.subr.mxu0 0.0
  %666 = vmatpush1.xpose.msra.mxu0 0.0
  %667 = vmatprep.subr.mxu0 0.0
  %668 = vmatpush1.xpose.msra.mxu0 0.0
  %669 = vmatprep.subr.mxu0 0.0
  %670 = vmatpush1.xpose.msra.mxu0 0.0
  %671 = vmatprep.subr.mxu0 0.0
  %672 = vmatpush1.xpose.msra.mxu0 0.0
  %673 = vmatprep.subr.mxu0 0.0
  %674 = vmatpush1.xpose.msra.mxu0 0.0
  %675 = vmatprep.subr.mxu0 0.0
  %676 = vmatpush1.xpose.msra.mxu0 0.0
  %677 = vmatprep.subr.mxu0 0.0
  %678 = vmatpush1.xpose.msra.mxu0 %v647
  %679 = vmatprep.subr.mxu0 0.0
  %680 = vmatpush1.xpose.msra.mxu0 %v645
  %681 = vmatprep.subr.mxu0 0.0
  %682 = vmatpush2.xpose.msra.mxu0 0.0
  %683 = vmatprep.subr.mxu0 0.0
  %684 = vmatpush2.xpose.msra.mxu0 0.0
  %685 = vmatprep.subr.mxu0 0.0
  %686 = vmatpush2.xpose.msra.mxu0 0.0
  %687 = vmatprep.subr.mxu0 0.0
  %688 = vmatpush2.xpose.msra.mxu0 0.0
  %689 = vmatprep.subr.mxu0 0.0
  %690 = vmatpush2.xpose.msra.mxu0 0.0
  %691 = vmatprep.subr.mxu0 0.0
  %692 = vmatpush2.xpose.msra.mxu0 0.0
  %693 = vmatprep.subr.mxu0 0.0
  %694 = vmatpush2.xpose.msra.mxu0 0.0
  %695 = vmatprep.subr.mxu0 0.0
  %696 = vmatpush2.xpose.msra.mxu0 0.0
  %697 = vmatprep.subr.mxu0 0.0
  %698 = vmatpush2.xpose.msra.mxu0 0.0
  %699 = vmatprep.subr.mxu0 0.0
  %700 = vmatpush2.xpose.msra.mxu0 0.0
  %701 = vmatprep.subr.mxu0 0.0
  %702 = vmatpush2.xpose.msra.mxu0 0.0
  %703 = vmatprep.subr.mxu0 0.0
  %704 = vmatpush2.xpose.msra.mxu0 0.0
  %705 = vmatprep.subr.mxu0 0.0
  %706 = vmatpush2.xpose.msra.mxu0 0.0
  %707 = vmatprep.subr.mxu0 0.0
  %708 = vmatpush2.xpose.msra.mxu0 0.0
  %709 = vmatprep.subr.mxu0 0.0
  %710 = vmatpush2.xpose.msra.mxu0 0.0
  %711 = vmatprep.subr.mxu0 0.0
  %712 = vmatpush2.xpose.msra.mxu0 0.0
  %713 = vmatprep.mubr.f32.mxu0 0.0
  %714 = vmatmul.mubr.f32.gmra.mxu0 %v640
  %v715 = vpop.f32.mrf.mxu0
  %v716 = vadd.f32 0.0, %v715
  %v717 = vpop.f32.mrf.mxu0
  %718 = vmatprep.mubr.f32.mxu0 0.0
  %719 = vmatmul.mubr.f32.gmra.mxu0 %v643
  %v720 = vpop.f32.mrf.mxu0
  %v721 = vadd.f32 0.0, %v720
  %v722 = vpop.f32.mrf.mxu0
  %723 = vdwg.mxu0
  %726 = vrot.lane.b32.xlu0 %v620, 96
  %v727 = vpop.permute.xlu0 %726
  %728 = vrot.lane.b32.xlu0 %v625, 96
  %v729 = vpop.permute.xlu0 %728
  %v731 = vsel %vm638, %v630, 0
  %v734 = vsel %vm638, %v631, 0
  %v736 = vsel %vm638, %v727, 0
  %v738 = vsel %vm638, %v729, 0
  %740 = vmatprep.subr.mxu0 0.0
  %741 = vmatpush1.xpose.msra.mxu0 0.0
  %742 = vmatprep.subr.mxu0 0.0
  %743 = vmatpush1.xpose.msra.mxu0 0.0
  %744 = vmatprep.subr.mxu0 0.0
  %745 = vmatpush1.xpose.msra.mxu0 0.0
  %746 = vmatprep.subr.mxu0 0.0
  %747 = vmatpush1.xpose.msra.mxu0 0.0
  %748 = vmatprep.subr.mxu0 0.0
  %749 = vmatpush1.xpose.msra.mxu0 0.0
  %750 = vmatprep.subr.mxu0 0.0
  %751 = vmatpush1.xpose.msra.mxu0 0.0
  %752 = vmatprep.subr.mxu0 0.0
  %753 = vmatpush1.xpose.msra.mxu0 0.0
  %754 = vmatprep.subr.mxu0 0.0
  %755 = vmatpush1.xpose.msra.mxu0 0.0
  %756 = vmatprep.subr.mxu0 0.0
  %757 = vmatpush1.xpose.msra.mxu0 0.0
  %758 = vmatprep.subr.mxu0 0.0
  %759 = vmatpush1.xpose.msra.mxu0 0.0
  %760 = vmatprep.subr.mxu0 0.0
  %761 = vmatpush1.xpose.msra.mxu0 0.0
  %762 = vmatprep.subr.mxu0 0.0
  %763 = vmatpush1.xpose.msra.mxu0 0.0
  %764 = vmatprep.subr.mxu0 0.0
  %765 = vmatpush1.xpose.msra.mxu0 0.0
  %766 = vmatprep.subr.mxu0 0.0
  %767 = vmatpush1.xpose.msra.mxu0 0.0
  %768 = vmatprep.subr.mxu0 0.0
  %769 = vmatpush1.xpose.msra.mxu0 %v738
  %770 = vmatprep.subr.mxu0 0.0
  %771 = vmatpush1.xpose.msra.mxu0 %v736
  %772 = vmatprep.subr.mxu0 0.0
  %773 = vmatpush2.xpose.msra.mxu0 0.0
  %774 = vmatprep.subr.mxu0 0.0
  %775 = vmatpush2.xpose.msra.mxu0 0.0
  %776 = vmatprep.subr.mxu0 0.0
  %777 = vmatpush2.xpose.msra.mxu0 0.0
  %778 = vmatprep.subr.mxu0 0.0
  %779 = vmatpush2.xpose.msra.mxu0 0.0
  %780 = vmatprep.subr.mxu0 0.0
  %781 = vmatpush2.xpose.msra.mxu0 0.0
  %782 = vmatprep.subr.mxu0 0.0
  %783 = vmatpush2.xpose.msra.mxu0 0.0
  %784 = vmatprep.subr.mxu0 0.0
  %785 = vmatpush2.xpose.msra.mxu0 0.0
  %786 = vmatprep.subr.mxu0 0.0
  %787 = vmatpush2.xpose.msra.mxu0 0.0
  %788 = vmatprep.subr.mxu0 0.0
  %789 = vmatpush2.xpose.msra.mxu0 0.0
  %790 = vmatprep.subr.mxu0 0.0
  %791 = vmatpush2.xpose.msra.mxu0 0.0
  %792 = vmatprep.subr.mxu0 0.0
  %793 = vmatpush2.xpose.msra.mxu0 0.0
  %794 = vmatprep.subr.mxu0 0.0
  %795 = vmatpush2.xpose.msra.mxu0 0.0
  %796 = vmatprep.subr.mxu0 0.0
  %797 = vmatpush2.xpose.msra.mxu0 0.0
  %798 = vmatprep.subr.mxu0 0.0
  %799 = vmatpush2.xpose.msra.mxu0 0.0
  %800 = vmatprep.subr.mxu0 0.0
  %801 = vmatpush2.xpose.msra.mxu0 0.0
  %802 = vmatprep.subr.mxu0 0.0
  %803 = vmatpush2.xpose.msra.mxu0 0.0
  %804 = vmatprep.mubr.f32.mxu0 0.0
  %805 = vmatmul.mubr.f32.gmra.mxu0 %v731
  %v806 = vpop.f32.mrf.mxu0
  %v807 = vadd.f32 0.0, %v806
  %v808 = vpop.f32.mrf.mxu0
  %809 = vmatprep.mubr.f32.mxu0 0.0
  %810 = vmatmul.mubr.f32.gmra.mxu0 %v734
  %v811 = vpop.f32.mrf.mxu0
  %v812 = vadd.f32 0.0, %v811
  %v813 = vpop.f32.mrf.mxu0
  %814 = vdwg.mxu0
  %vm815 = vcmask 130048
  %v816 = vsel %vm815, %v716, -inf
  %817 = vmax.xlane.f32.xlu0 %v816
  %v818 = vpop.xlane.xlu0 %817
  %v819 = vsel %vm815, %v721, -inf
  %820 = vmax.xlane.f32.xlu0 %v819
  %v821 = vpop.xlane.xlu0 %820
  %v822 = vsel %vm815, %v807, -inf
  %823 = vmax.xlane.f32.xlu0 %v822
  %v824 = vpop.xlane.xlu0 %823
  %v825 = vsel %vm815, %v812, -inf
  %826 = vmax.xlane.f32.xlu0 %v825
  %v827 = vpop.xlane.xlu0 %826
  %v828 = vsub.f32 %v716, %v818
  %v829 = vsub.f32 %v721, %v821
  %v830 = vsub.f32 %v807, %v824
  %v831 = vsub.f32 %v812, %v827
  %v832 = vmul.f32 %v828, 1.442695
  %v833 = vpow.pop %v832
  %v834 = vmul.f32 %v829, 1.442695
  %v835 = vpow.pop %v834
  %v836 = vmul.f32 %v830, 1.442695
  %v837 = vpow.pop %v836
  %v838 = vmul.f32 %v831, 1.442695
  %v839 = vpow.pop %v838
  %v840 = vsel %vm815, %v833, 0.0
  %841 = vadd.xlane.f32.xlu0 %v840
  %v842 = vpop.xlane.xlu0 %841
  %v843 = vsel %vm815, %v835, 0.0
  %844 = vadd.xlane.f32.xlu0 %v843
  %v845 = vpop.xlane.xlu0 %844
  %v846 = vsel %vm815, %v837, 0.0
  %847 = vadd.xlane.f32.xlu0 %v846
  %v848 = vpop.xlane.xlu0 %847
  %v849 = vsel %vm815, %v839, 0.0
  %850 = vadd.xlane.f32.xlu0 %v849
  %v851 = vpop.xlane.xlu0 %850
  %v852 = vrcp.pop %v842
  %v853 = vrcp.pop %v845
  %v854 = vrcp.pop %v848
  %v855 = vrcp.pop %v851
  %v856 = vmul.f32 %v833, %v852
  %v857 = vmul.f32 %v835, %v853
  %v858 = vmul.f32 %v837, %v854
  %v859 = vmul.f32 %v839, %v855
  %860 = vrot.lane.b32.xlu0 %v610, 64
  %v861 = vpop.permute.xlu0 %860
  %862 = vrot.lane.b32.xlu0 %v615, 64
  %v863 = vpop.permute.xlu0 %862
  %v867 = vsel %vm815, %v856, 0
  %v870 = vsel %vm815, %v857, 0
  %872 = vmatprep.subr.mxu0 0.0
  %873 = vmatpush1.msra.mxu0 0.0
  %874 = vmatprep.subr.mxu0 0.0
  %875 = vmatpush1.msra.mxu0 0.0
  %876 = vmatprep.subr.mxu0 0.0
  %877 = vmatpush1.msra.mxu0 0.0
  %878 = vmatprep.subr.mxu0 0.0
  %879 = vmatpush1.msra.mxu0 0.0
  %880 = vmatprep.subr.mxu0 0.0
  %881 = vmatpush1.msra.mxu0 0.0
  %882 = vmatprep.subr.mxu0 0.0
  %883 = vmatpush1.msra.mxu0 0.0
  %884 = vmatprep.subr.mxu0 0.0
  %885 = vmatpush1.msra.mxu0 0.0
  %886 = vmatprep.subr.mxu0 0.0
  %887 = vmatpush1.msra.mxu0 0.0
  %888 = vmatprep.subr.mxu0 0.0
  %889 = vmatpush1.msra.mxu0 0.0
  %890 = vmatprep.subr.mxu0 0.0
  %891 = vmatpush1.msra.mxu0 0.0
  %892 = vmatprep.subr.mxu0 0.0
  %893 = vmatpush1.msra.mxu0 0.0
  %894 = vmatprep.subr.mxu0 0.0
  %895 = vmatpush1.msra.mxu0 0.0
  %896 = vmatprep.subr.mxu0 0.0
  %897 = vmatpush1.msra.mxu0 0.0
  %898 = vmatprep.subr.mxu0 0.0
  %899 = vmatpush1.msra.mxu0 0.0
  %900 = vmatprep.subr.mxu0 0.0
  %901 = vmatpush1.msra.mxu0 %v863
  %902 = vmatprep.subr.mxu0 0.0
  %903 = vmatpush1.msra.mxu0 %v861
  %904 = vmatprep.subr.mxu0 0.0
  %905 = vmatpush2.msra.mxu0 0.0
  %906 = vmatprep.subr.mxu0 0.0
  %907 = vmatpush2.msra.mxu0 0.0
  %908 = vmatprep.subr.mxu0 0.0
  %909 = vmatpush2.msra.mxu0 0.0
  %910 = vmatprep.subr.mxu0 0.0
  %911 = vmatpush2.msra.mxu0 0.0
  %912 = vmatprep.subr.mxu0 0.0
  %913 = vmatpush2.msra.mxu0 0.0
  %914 = vmatprep.subr.mxu0 0.0
  %915 = vmatpush2.msra.mxu0 0.0
  %916 = vmatprep.subr.mxu0 0.0
  %917 = vmatpush2.msra.mxu0 0.0
  %918 = vmatprep.subr.mxu0 0.0
  %919 = vmatpush2.msra.mxu0 0.0
  %920 = vmatprep.subr.mxu0 0.0
  %921 = vmatpush2.msra.mxu0 0.0
  %922 = vmatprep.subr.mxu0 0.0
  %923 = vmatpush2.msra.mxu0 0.0
  %924 = vmatprep.subr.mxu0 0.0
  %925 = vmatpush2.msra.mxu0 0.0
  %926 = vmatprep.subr.mxu0 0.0
  %927 = vmatpush2.msra.mxu0 0.0
  %928 = vmatprep.subr.mxu0 0.0
  %929 = vmatpush2.msra.mxu0 0.0
  %930 = vmatprep.subr.mxu0 0.0
  %931 = vmatpush2.msra.mxu0 0.0
  %932 = vmatprep.subr.mxu0 0.0
  %933 = vmatpush2.msra.mxu0 0.0
  %934 = vmatprep.subr.mxu0 0.0
  %935 = vmatpush2.msra.mxu0 0.0
  %936 = vmatprep.mubr.f32.mxu0 0.0
  %937 = vmatmul.mubr.f32.gmra.mxu0 %v867
  %v938 = vpop.f32.mrf.mxu0
  %v939 = vadd.f32 0.0, %v938
  %v940 = vpop.f32.mrf.mxu0
  %941 = vmatprep.mubr.f32.mxu0 0.0
  %942 = vmatmul.mubr.f32.gmra.mxu0 %v870
  %v943 = vpop.f32.mrf.mxu0
  %v944 = vadd.f32 0.0, %v943
  %v945 = vpop.f32.mrf.mxu0
  %946 = vdwg.mxu0
  %947 = vrot.lane.b32.xlu0 %v620, 64
  %v948 = vpop.permute.xlu0 %947
  %949 = vrot.lane.b32.xlu0 %v625, 64
  %v950 = vpop.permute.xlu0 %949
  %v954 = vsel %vm815, %v858, 0
  %v957 = vsel %vm815, %v859, 0
  %959 = vmatprep.subr.mxu0 0.0
  %960 = vmatpush1.msra.mxu0 0.0
  %961 = vmatprep.subr.mxu0 0.0
  %962 = vmatpush1.msra.mxu0 0.0
  %963 = vmatprep.subr.mxu0 0.0
  %964 = vmatpush1.msra.mxu0 0.0
  %965 = vmatprep.subr.mxu0 0.0
  %966 = vmatpush1.msra.mxu0 0.0
  %967 = vmatprep.subr.mxu0 0.0
  %968 = vmatpush1.msra.mxu0 0.0
  %969 = vmatprep.subr.mxu0 0.0
  %970 = vmatpush1.msra.mxu0 0.0
  %971 = vmatprep.subr.mxu0 0.0
  %972 = vmatpush1.msra.mxu0 0.0
  %973 = vmatprep.subr.mxu0 0.0
  %974 = vmatpush1.msra.mxu0 0.0
  %975 = vmatprep.subr.mxu0 0.0
  %976 = vmatpush1.msra.mxu0 0.0
  %977 = vmatprep.subr.mxu0 0.0
  %978 = vmatpush1.msra.mxu0 0.0
  %979 = vmatprep.subr.mxu0 0.0
  %980 = vmatpush1.msra.mxu0 0.0
  %981 = vmatprep.subr.mxu0 0.0
  %982 = vmatpush1.msra.mxu0 0.0
  %983 = vmatprep.subr.mxu0 0.0
  %984 = vmatpush1.msra.mxu0 0.0
  %985 = vmatprep.subr.mxu0 0.0
  %986 = vmatpush1.msra.mxu0 0.0
  %987 = vmatprep.subr.mxu0 0.0
  %988 = vmatpush1.msra.mxu0 %v950
  %989 = vmatprep.subr.mxu0 0.0
  %990 = vmatpush1.msra.mxu0 %v948
  %991 = vmatprep.subr.mxu0 0.0
  %992 = vmatpush2.msra.mxu0 0.0
  %993 = vmatprep.subr.mxu0 0.0
  %994 = vmatpush2.msra.mxu0 0.0
  %995 = vmatprep.subr.mxu0 0.0
  %996 = vmatpush2.msra.mxu0 0.0
  %997 = vmatprep.subr.mxu0 0.0
  %998 = vmatpush2.msra.mxu0 0.0
  %999 = vmatprep.subr.mxu0 0.0
  %1000 = vmatpush2.msra.mxu0 0.0
  %1001 = vmatprep.subr.mxu0 0.0
  %1002 = vmatpush2.msra.mxu0 0.0
  %1003 = vmatprep.subr.mxu0 0.0
  %1004 = vmatpush2.msra.mxu0 0.0
  %1005 = vmatprep.subr.mxu0 0.0
  %1006 = vmatpush2.msra.mxu0 0.0
  %1007 = vmatprep.subr.mxu0 0.0
  %1008 = vmatpush2.msra.mxu0 0.0
  %1009 = vmatprep.subr.mxu0 0.0
  %1010 = vmatpush2.msra.mxu0 0.0
  %1011 = vmatprep.subr.mxu0 0.0
  %1012 = vmatpush2.msra.mxu0 0.0
  %1013 = vmatprep.subr.mxu0 0.0
  %1014 = vmatpush2.msra.mxu0 0.0
  %1015 = vmatprep.subr.mxu0 0.0
  %1016 = vmatpush2.msra.mxu0 0.0
  %1017 = vmatprep.subr.mxu0 0.0
  %1018 = vmatpush2.msra.mxu0 0.0
  %1019 = vmatprep.subr.mxu0 0.0
  %1020 = vmatpush2.msra.mxu0 0.0
  %1021 = vmatprep.subr.mxu0 0.0
  %1022 = vmatpush2.msra.mxu0 0.0
  %1023 = vmatprep.mubr.f32.mxu0 0.0
  %1024 = vmatmul.mubr.f32.gmra.mxu0 %v954
  %v1025 = vpop.f32.mrf.mxu0
  %v1026 = vadd.f32 0.0, %v1025
  %v1027 = vpop.f32.mrf.mxu0
  %1028 = vmatprep.mubr.f32.mxu0 0.0
  %1029 = vmatmul.mubr.f32.gmra.mxu0 %v957
  %v1030 = vpop.f32.mrf.mxu0
  %v1031 = vadd.f32 0.0, %v1030
  %v1032 = vpop.f32.mrf.mxu0
  %1033 = vdwg.mxu0
  %1034 = vrot.lane.b32.xlu0 %v628, 120
  %v1035 = vpop.permute.xlu0 %1034
  %1036 = vrot.lane.b32.xlu0 %v629, 120
  %v1037 = vpop.permute.xlu0 %1036
  %1038 = vrot.lane.b32.xlu0 %v610, 88
  %v1039 = vpop.permute.xlu0 %1038
  %1040 = vrot.lane.b32.xlu0 %v615, 88
  %v1041 = vpop.permute.xlu0 %1040
  %v1042 = vsel %vm638, %v1035, 0
  %v1044 = vsel %vm638, %v1037, 0
  %v1046 = vsel %vm638, %v1039, 0
  %v1048 = vsel %vm638, %v1041, 0
  %1050 = vmatprep.subr.mxu0 0.0
  %1051 = vmatpush1.xpose.msra.mxu0 0.0
  %1052 = vmatprep.subr.mxu0 0.0
  %1053 = vmatpush1.xpose.msra.mxu0 0.0
  %1054 = vmatprep.subr.mxu0 0.0
  %1055 = vmatpush1.xpose.msra.mxu0 0.0
  %1056 = vmatprep.subr.mxu0 0.0
  %1057 = vmatpush1.xpose.msra.mxu0 0.0
  %1058 = vmatprep.subr.mxu0 0.0
  %1059 = vmatpush1.xpose.msra.mxu0 0.0
  %1060 = vmatprep.subr.mxu0 0.0
  %1061 = vmatpush1.xpose.msra.mxu0 0.0
  %1062 = vmatprep.subr.mxu0 0.0
  %1063 = vmatpush1.xpose.msra.mxu0 0.0
  %1064 = vmatprep.subr.mxu0 0.0
  %1065 = vmatpush1.xpose.msra.mxu0 0.0
  %1066 = vmatprep.subr.mxu0 0.0
  %1067 = vmatpush1.xpose.msra.mxu0 0.0
  %1068 = vmatprep.subr.mxu0 0.0
  %1069 = vmatpush1.xpose.msra.mxu0 0.0
  %1070 = vmatprep.subr.mxu0 0.0
  %1071 = vmatpush1.xpose.msra.mxu0 0.0
  %1072 = vmatprep.subr.mxu0 0.0
  %1073 = vmatpush1.xpose.msra.mxu0 0.0
  %1074 = vmatprep.subr.mxu0 0.0
  %1075 = vmatpush1.xpose.msra.mxu0 0.0
  %1076 = vmatprep.subr.mxu0 0.0
  %1077 = vmatpush1.xpose.msra.mxu0 0.0
  %1078 = vmatprep.subr.mxu0 0.0
  %1079 = vmatpush1.xpose.msra.mxu0 %v1048
  %1080 = vmatprep.subr.mxu0 0.0
  %1081 = vmatpush1.xpose.msra.mxu0 %v1046
  %1082 = vmatprep.subr.mxu0 0.0
  %1083 = vmatpush2.xpose.msra.mxu0 0.0
  %1084 = vmatprep.subr.mxu0 0.0
  %1085 = vmatpush2.xpose.msra.mxu0 0.0
  %1086 = vmatprep.subr.mxu0 0.0
  %1087 = vmatpush2.xpose.msra.mxu0 0.0
  %1088 = vmatprep.subr.mxu0 0.0
  %1089 = vmatpush2.xpose.msra.mxu0 0.0
  %1090 = vmatprep.subr.mxu0 0.0
  %1091 = vmatpush2.xpose.msra.mxu0 0.0
  %1092 = vmatprep.subr.mxu0 0.0
  %1093 = vmatpush2.xpose.msra.mxu0 0.0
  %1094 = vmatprep.subr.mxu0 0.0
  %1095 = vmatpush2.xpose.msra.mxu0 0.0
  %1096 = vmatprep.subr.mxu0 0.0
  %1097 = vmatpush2.xpose.msra.mxu0 0.0
  %1098 = vmatprep.subr.mxu0 0.0
  %1099 = vmatpush2.xpose.msra.mxu0 0.0
  %1100 = vmatprep.subr.mxu0 0.0
  %1101 = vmatpush2.xpose.msra.mxu0 0.0
  %1102 = vmatprep.subr.mxu0 0.0
  %1103 = vmatpush2.xpose.msra.mxu0 0.0
  %1104 = vmatprep.subr.mxu0 0.0
  %1105 = vmatpush2.xpose.msra.mxu0 0.0
  %1106 = vmatprep.subr.mxu0 0.0
  %1107 = vmatpush2.xpose.msra.mxu0 0.0
  %1108 = vmatprep.subr.mxu0 0.0
  %1109 = vmatpush2.xpose.msra.mxu0 0.0
  %1110 = vmatprep.subr.mxu0 0.0
  %1111 = vmatpush2.xpose.msra.mxu0 0.0
  %1112 = vmatprep.subr.mxu0 0.0
  %1113 = vmatpush2.xpose.msra.mxu0 0.0
  %1114 = vmatprep.mubr.f32.mxu0 0.0
  %1115 = vmatmul.mubr.f32.gmra.mxu0 %v1042
  %v1116 = vpop.f32.mrf.mxu0
  %v1117 = vadd.f32 0.0, %v1116
  %v1118 = vpop.f32.mrf.mxu0
  %1119 = vmatprep.mubr.f32.mxu0 0.0
  %1120 = vmatmul.mubr.f32.gmra.mxu0 %v1044
  %v1121 = vpop.f32.mrf.mxu0
  %v1122 = vadd.f32 0.0, %v1121
  %v1123 = vpop.f32.mrf.mxu0
  %1124 = vdwg.mxu0
  %1125 = vrot.lane.b32.xlu0 %v630, 120
  %v1126 = vpop.permute.xlu0 %1125
  %1127 = vrot.lane.b32.xlu0 %v631, 120
  %v1128 = vpop.permute.xlu0 %1127
  %1129 = vrot.lane.b32.xlu0 %v620, 88
  %v1130 = vpop.permute.xlu0 %1129
  %1131 = vrot.lane.b32.xlu0 %v625, 88
  %v1132 = vpop.permute.xlu0 %1131
  %v1133 = vsel %vm638, %v1126, 0
  %v1135 = vsel %vm638, %v1128, 0
  %v1137 = vsel %vm638, %v1130, 0
  %v1139 = vsel %vm638, %v1132, 0
  %1141 = vmatprep.subr.mxu0 0.0
  %1142 = vmatpush1.xpose.msra.mxu0 0.0
  %1143 = vmatprep.subr.mxu0 0.0
  %1144 = vmatpush1.xpose.msra.mxu0 0.0
  %1145 = vmatprep.subr.mxu0 0.0
  %1146 = vmatpush1.xpose.msra.mxu0 0.0
  %1147 = vmatprep.subr.mxu0 0.0
  %1148 = vmatpush1.xpose.msra.mxu0 0.0
  %1149 = vmatprep.subr.mxu0 0.0
  %1150 = vmatpush1.xpose.msra.mxu0 0.0
  %1151 = vmatprep.subr.mxu0 0.0
  %1152 = vmatpush1.xpose.msra.mxu0 0.0
  %1153 = vmatprep.subr.mxu0 0.0
  %1154 = vmatpush1.xpose.msra.mxu0 0.0
  %1155 = vmatprep.subr.mxu0 0.0
  %1156 = vmatpush1.xpose.msra.mxu0 0.0
  %1157 = vmatprep.subr.mxu0 0.0
  %1158 = vmatpush1.xpose.msra.mxu0 0.0
  %1159 = vmatprep.subr.mxu0 0.0
  %1160 = vmatpush1.xpose.msra.mxu0 0.0
  %1161 = vmatprep.subr.mxu0 0.0
  %1162 = vmatpush1.xpose.msra.mxu0 0.0
  %1163 = vmatprep.subr.mxu0 0.0
  %1164 = vmatpush1.xpose.msra.mxu0 0.0
  %1165 = vmatprep.subr.mxu0 0.0
  %1166 = vmatpush1.xpose.msra.mxu0 0.0
  %1167 = vmatprep.subr.mxu0 0.0
  %1168 = vmatpush1.xpose.msra.mxu0 0.0
  %1169 = vmatprep.subr.mxu0 0.0
  %1170 = vmatpush1.xpose.msra.mxu0 %v1139
  %1171 = vmatprep.subr.mxu0 0.0
  %1172 = vmatpush1.xpose.msra.mxu0 %v1137
  %1173 = vmatprep.subr.mxu0 0.0
  %1174 = vmatpush2.xpose.msra.mxu0 0.0
  %1175 = vmatprep.subr.mxu0 0.0
  %1176 = vmatpush2.xpose.msra.mxu0 0.0
  %1177 = vmatprep.subr.mxu0 0.0
  %1178 = vmatpush2.xpose.msra.mxu0 0.0
  %1179 = vmatprep.subr.mxu0 0.0
  %1180 = vmatpush2.xpose.msra.mxu0 0.0
  %1181 = vmatprep.subr.mxu0 0.0
  %1182 = vmatpush2.xpose.msra.mxu0 0.0
  %1183 = vmatprep.subr.mxu0 0.0
  %1184 = vmatpush2.xpose.msra.mxu0 0.0
  %1185 = vmatprep.subr.mxu0 0.0
  %1186 = vmatpush2.xpose.msra.mxu0 0.0
  %1187 = vmatprep.subr.mxu0 0.0
  %1188 = vmatpush2.xpose.msra.mxu0 0.0
  %1189 = vmatprep.subr.mxu0 0.0
  %1190 = vmatpush2.xpose.msra.mxu0 0.0
  %1191 = vmatprep.subr.mxu0 0.0
  %1192 = vmatpush2.xpose.msra.mxu0 0.0
  %1193 = vmatprep.subr.mxu0 0.0
  %1194 = vmatpush2.xpose.msra.mxu0 0.0
  %1195 = vmatprep.subr.mxu0 0.0
  %1196 = vmatpush2.xpose.msra.mxu0 0.0
  %1197 = vmatprep.subr.mxu0 0.0
  %1198 = vmatpush2.xpose.msra.mxu0 0.0
  %1199 = vmatprep.subr.mxu0 0.0
  %1200 = vmatpush2.xpose.msra.mxu0 0.0
  %1201 = vmatprep.subr.mxu0 0.0
  %1202 = vmatpush2.xpose.msra.mxu0 0.0
  %1203 = vmatprep.subr.mxu0 0.0
  %1204 = vmatpush2.xpose.msra.mxu0 0.0
  %1205 = vmatprep.mubr.f32.mxu0 0.0
  %1206 = vmatmul.mubr.f32.gmra.mxu0 %v1133
  %v1207 = vpop.f32.mrf.mxu0
  %v1208 = vadd.f32 0.0, %v1207
  %v1209 = vpop.f32.mrf.mxu0
  %1210 = vmatprep.mubr.f32.mxu0 0.0
  %1211 = vmatmul.mubr.f32.gmra.mxu0 %v1135
  %v1212 = vpop.f32.mrf.mxu0
  %v1213 = vadd.f32 0.0, %v1212
  %v1214 = vpop.f32.mrf.mxu0
  %1215 = vdwg.mxu0
  %v1216 = vsel %vm815, %v1117, -inf
  %1217 = vmax.xlane.f32.xlu0 %v1216
  %v1218 = vpop.xlane.xlu0 %1217
  %v1219 = vsel %vm815, %v1122, -inf
  %1220 = vmax.xlane.f32.xlu0 %v1219
  %v1221 = vpop.xlane.xlu0 %1220
  %v1222 = vsel %vm815, %v1208, -inf
  %1223 = vmax.xlane.f32.xlu0 %v1222
  %v1224 = vpop.xlane.xlu0 %1223
  %v1225 = vsel %vm815, %v1213, -inf
  %1226 = vmax.xlane.f32.xlu0 %v1225
  %v1227 = vpop.xlane.xlu0 %1226
  %v1228 = vsub.f32 %v1117, %v1218
  %v1229 = vsub.f32 %v1122, %v1221
  %v1230 = vsub.f32 %v1208, %v1224
  %v1231 = vsub.f32 %v1213, %v1227
  %v1232 = vmul.f32 %v1228, 1.442695
  %v1233 = vpow.pop %v1232
  %v1234 = vmul.f32 %v1229, 1.442695
  %v1235 = vpow.pop %v1234
  %v1236 = vmul.f32 %v1230, 1.442695
  %v1237 = vpow.pop %v1236
  %v1238 = vmul.f32 %v1231, 1.442695
  %v1239 = vpow.pop %v1238
  %v1240 = vsel %vm815, %v1233, 0.0
  %1241 = vadd.xlane.f32.xlu0 %v1240
  %v1242 = vpop.xlane.xlu0 %1241
  %v1243 = vsel %vm815, %v1235, 0.0
  %1244 = vadd.xlane.f32.xlu0 %v1243
  %v1245 = vpop.xlane.xlu0 %1244
  %v1246 = vsel %vm815, %v1237, 0.0
  %1247 = vadd.xlane.f32.xlu0 %v1246
  %v1248 = vpop.xlane.xlu0 %1247
  %v1249 = vsel %vm815, %v1239, 0.0
  %1250 = vadd.xlane.f32.xlu0 %v1249
  %v1251 = vpop.xlane.xlu0 %1250
  %v1252 = vrcp.pop %v1242
  %v1253 = vrcp.pop %v1245
  %v1254 = vrcp.pop %v1248
  %v1255 = vrcp.pop %v1251
  %v1256 = vmul.f32 %v1233, %v1252
  %v1257 = vmul.f32 %v1235, %v1253
  %v1258 = vmul.f32 %v1237, %v1254
  %v1259 = vmul.f32 %v1239, %v1255
  %1260 = vrot.lane.b32.xlu0 %v610, 56
  %v1261 = vpop.permute.xlu0 %1260
  %1262 = vrot.lane.b32.xlu0 %v615, 56
  %v1263 = vpop.permute.xlu0 %1262
  %v1267 = vsel %vm815, %v1256, 0
  %v1270 = vsel %vm815, %v1257, 0
  %1272 = vmatprep.subr.mxu0 0.0
  %1273 = vmatpush1.msra.mxu0 0.0
  %1274 = vmatprep.subr.mxu0 0.0
  %1275 = vmatpush1.msra.mxu0 0.0
  %1276 = vmatprep.subr.mxu0 0.0
  %1277 = vmatpush1.msra.mxu0 0.0
  %1278 = vmatprep.subr.mxu0 0.0
  %1279 = vmatpush1.msra.mxu0 0.0
  %1280 = vmatprep.subr.mxu0 0.0
  %1281 = vmatpush1.msra.mxu0 0.0
  %1282 = vmatprep.subr.mxu0 0.0
  %1283 = vmatpush1.msra.mxu0 0.0
  %1284 = vmatprep.subr.mxu0 0.0
  %1285 = vmatpush1.msra.mxu0 0.0
  %1286 = vmatprep.subr.mxu0 0.0
  %1287 = vmatpush1.msra.mxu0 0.0
  %1288 = vmatprep.subr.mxu0 0.0
  %1289 = vmatpush1.msra.mxu0 0.0
  %1290 = vmatprep.subr.mxu0 0.0
  %1291 = vmatpush1.msra.mxu0 0.0
  %1292 = vmatprep.subr.mxu0 0.0
  %1293 = vmatpush1.msra.mxu0 0.0
  %1294 = vmatprep.subr.mxu0 0.0
  %1295 = vmatpush1.msra.mxu0 0.0
  %1296 = vmatprep.subr.mxu0 0.0
  %1297 = vmatpush1.msra.mxu0 0.0
  %1298 = vmatprep.subr.mxu0 0.0
  %1299 = vmatpush1.msra.mxu0 0.0
  %1300 = vmatprep.subr.mxu0 0.0
  %1301 = vmatpush1.msra.mxu0 %v1263
  %1302 = vmatprep.subr.mxu0 0.0
  %1303 = vmatpush1.msra.mxu0 %v1261
  %1304 = vmatprep.subr.mxu0 0.0
  %1305 = vmatpush2.msra.mxu0 0.0
  %1306 = vmatprep.subr.mxu0 0.0
  %1307 = vmatpush2.msra.mxu0 0.0
  %1308 = vmatprep.subr.mxu0 0.0
  %1309 = vmatpush2.msra.mxu0 0.0
  %1310 = vmatprep.subr.mxu0 0.0
  %1311 = vmatpush2.msra.mxu0 0.0
  %1312 = vmatprep.subr.mxu0 0.0
  %1313 = vmatpush2.msra.mxu0 0.0
  %1314 = vmatprep.subr.mxu0 0.0
  %1315 = vmatpush2.msra.mxu0 0.0
  %1316 = vmatprep.subr.mxu0 0.0
  %1317 = vmatpush2.msra.mxu0 0.0
  %1318 = vmatprep.subr.mxu0 0.0
  %1319 = vmatpush2.msra.mxu0 0.0
  %1320 = vmatprep.subr.mxu0 0.0
  %1321 = vmatpush2.msra.mxu0 0.0
  %1322 = vmatprep.subr.mxu0 0.0
  %1323 = vmatpush2.msra.mxu0 0.0
  %1324 = vmatprep.subr.mxu0 0.0
  %1325 = vmatpush2.msra.mxu0 0.0
  %1326 = vmatprep.subr.mxu0 0.0
  %1327 = vmatpush2.msra.mxu0 0.0
  %1328 = vmatprep.subr.mxu0 0.0
  %1329 = vmatpush2.msra.mxu0 0.0
  %1330 = vmatprep.subr.mxu0 0.0
  %1331 = vmatpush2.msra.mxu0 0.0
  %1332 = vmatprep.subr.mxu0 0.0
  %1333 = vmatpush2.msra.mxu0 0.0
  %1334 = vmatprep.subr.mxu0 0.0
  %1335 = vmatpush2.msra.mxu0 0.0
  %1336 = vmatprep.mubr.f32.mxu0 0.0
  %1337 = vmatmul.mubr.f32.gmra.mxu0 %v1267
  %v1338 = vpop.f32.mrf.mxu0
  %v1339 = vadd.f32 0.0, %v1338
  %v1340 = vpop.f32.mrf.mxu0
  %1341 = vmatprep.mubr.f32.mxu0 0.0
  %1342 = vmatmul.mubr.f32.gmra.mxu0 %v1270
  %v1343 = vpop.f32.mrf.mxu0
  %v1344 = vadd.f32 0.0, %v1343
  %v1345 = vpop.f32.mrf.mxu0
  %1346 = vdwg.mxu0
  %1347 = vrot.lane.b32.xlu0 %v620, 56
  %v1348 = vpop.permute.xlu0 %1347
  %1349 = vrot.lane.b32.xlu0 %v625, 56
  %v1350 = vpop.permute.xlu0 %1349
  %v1354 = vsel %vm815, %v1258, 0
  %v1357 = vsel %vm815, %v1259, 0
  %1359 = vmatprep.subr.mxu0 0.0
  %1360 = vmatpush1.msra.mxu0 0.0
  %1361 = vmatprep.subr.mxu0 0.0
  %1362 = vmatpush1.msra.mxu0 0.0
  %1363 = vmatprep.subr.mxu0 0.0
  %1364 = vmatpush1.msra.mxu0 0.0
  %1365 = vmatprep.subr.mxu0 0.0
  %1366 = vmatpush1.msra.mxu0 0.0
  %1367 = vmatprep.subr.mxu0 0.0
  %1368 = vmatpush1.msra.mxu0 0.0
  %1369 = vmatprep.subr.mxu0 0.0
  %1370 = vmatpush1.msra.mxu0 0.0
  %1371 = vmatprep.subr.mxu0 0.0
  %1372 = vmatpush1.msra.mxu0 0.0
  %1373 = vmatprep.subr.mxu0 0.0
  %1374 = vmatpush1.msra.mxu0 0.0
  %1375 = vmatprep.subr.mxu0 0.0
  %1376 = vmatpush1.msra.mxu0 0.0
  %1377 = vmatprep.subr.mxu0 0.0
  %1378 = vmatpush1.msra.mxu0 0.0
  %1379 = vmatprep.subr.mxu0 0.0
  %1380 = vmatpush1.msra.mxu0 0.0
  %1381 = vmatprep.subr.mxu0 0.0
  %1382 = vmatpush1.msra.mxu0 0.0
  %1383 = vmatprep.subr.mxu0 0.0
  %1384 = vmatpush1.msra.mxu0 0.0
  %1385 = vmatprep.subr.mxu0 0.0
  %1386 = vmatpush1.msra.mxu0 0.0
  %1387 = vmatprep.subr.mxu0 0.0
  %1388 = vmatpush1.msra.mxu0 %v1350
  %1389 = vmatprep.subr.mxu0 0.0
  %1390 = vmatpush1.msra.mxu0 %v1348
  %1391 = vmatprep.subr.mxu0 0.0
  %1392 = vmatpush2.msra.mxu0 0.0
  %1393 = vmatprep.subr.mxu0 0.0
  %1394 = vmatpush2.msra.mxu0 0.0
  %1395 = vmatprep.subr.mxu0 0.0
  %1396 = vmatpush2.msra.mxu0 0.0
  %1397 = vmatprep.subr.mxu0 0.0
  %1398 = vmatpush2.msra.mxu0 0.0
  %1399 = vmatprep.subr.mxu0 0.0
  %1400 = vmatpush2.msra.mxu0 0.0
  %1401 = vmatprep.subr.mxu0 0.0
  %1402 = vmatpush2.msra.mxu0 0.0
  %1403 = vmatprep.subr.mxu0 0.0
  %1404 = vmatpush2.msra.mxu0 0.0
  %1405 = vmatprep.subr.mxu0 0.0
  %1406 = vmatpush2.msra.mxu0 0.0
  %1407 = vmatprep.subr.mxu0 0.0
  %1408 = vmatpush2.msra.mxu0 0.0
  %1409 = vmatprep.subr.mxu0 0.0
  %1410 = vmatpush2.msra.mxu0 0.0
  %1411 = vmatprep.subr.mxu0 0.0
  %1412 = vmatpush2.msra.mxu0 0.0
  %1413 = vmatprep.subr.mxu0 0.0
  %1414 = vmatpush2.msra.mxu0 0.0
  %1415 = vmatprep.subr.mxu0 0.0
  %1416 = vmatpush2.msra.mxu0 0.0
  %1417 = vmatprep.subr.mxu0 0.0
  %1418 = vmatpush2.msra.mxu0 0.0
  %1419 = vmatprep.subr.mxu0 0.0
  %1420 = vmatpush2.msra.mxu0 0.0
  %1421 = vmatprep.subr.mxu0 0.0
  %1422 = vmatpush2.msra.mxu0 0.0
  %1423 = vmatprep.mubr.f32.mxu0 0.0
  %1424 = vmatmul.mubr.f32.gmra.mxu0 %v1354
  %v1425 = vpop.f32.mrf.mxu0
  %v1426 = vadd.f32 0.0, %v1425
  %v1427 = vpop.f32.mrf.mxu0
  %1428 = vmatprep.mubr.f32.mxu0 0.0
  %1429 = vmatmul.mubr.f32.gmra.mxu0 %v1357
  %v1430 = vpop.f32.mrf.mxu0
  %v1431 = vadd.f32 0.0, %v1430
  %v1432 = vpop.f32.mrf.mxu0
  %1433 = vdwg.mxu0
  %1434 = vrot.lane.b32.xlu0 %v628, 112
  %v1435 = vpop.permute.xlu0 %1434
  %1436 = vrot.lane.b32.xlu0 %v629, 112
  %v1437 = vpop.permute.xlu0 %1436
  %1438 = vrot.lane.b32.xlu0 %v610, 80
  %v1439 = vpop.permute.xlu0 %1438
  %1440 = vrot.lane.b32.xlu0 %v615, 80
  %v1441 = vpop.permute.xlu0 %1440
  %v1442 = vsel %vm638, %v1435, 0
  %v1444 = vsel %vm638, %v1437, 0
  %v1446 = vsel %vm638, %v1439, 0
  %v1448 = vsel %vm638, %v1441, 0
  %1450 = vmatprep.subr.mxu0 0.0
  %1451 = vmatpush1.xpose.msra.mxu0 0.0
  %1452 = vmatprep.subr.mxu0 0.0
  %1453 = vmatpush1.xpose.msra.mxu0 0.0
  %1454 = vmatprep.subr.mxu0 0.0
  %1455 = vmatpush1.xpose.msra.mxu0 0.0
  %1456 = vmatprep.subr.mxu0 0.0
  %1457 = vmatpush1.xpose.msra.mxu0 0.0
  %1458 = vmatprep.subr.mxu0 0.0
  %1459 = vmatpush1.xpose.msra.mxu0 0.0
  %1460 = vmatprep.subr.mxu0 0.0
  %1461 = vmatpush1.xpose.msra.mxu0 0.0
  %1462 = vmatprep.subr.mxu0 0.0
  %1463 = vmatpush1.xpose.msra.mxu0 0.0
  %1464 = vmatprep.subr.mxu0 0.0
  %1465 = vmatpush1.xpose.msra.mxu0 0.0
  %1466 = vmatprep.subr.mxu0 0.0
  %1467 = vmatpush1.xpose.msra.mxu0 0.0
  %1468 = vmatprep.subr.mxu0 0.0
  %1469 = vmatpush1.xpose.msra.mxu0 0.0
  %1470 = vmatprep.subr.mxu0 0.0
  %1471 = vmatpush1.xpose.msra.mxu0 0.0
  %1472 = vmatprep.subr.mxu0 0.0
  %1473 = vmatpush1.xpose.msra.mxu0 0.0
  %1474 = vmatprep.subr.mxu0 0.0
  %1475 = vmatpush1.xpose.msra.mxu0 0.0
  %1476 = vmatprep.subr.mxu0 0.0
  %1477 = vmatpush1.xpose.msra.mxu0 0.0
  %1478 = vmatprep.subr.mxu0 0.0
  %1479 = vmatpush1.xpose.msra.mxu0 %v1448
  %1480 = vmatprep.subr.mxu0 0.0
  %1481 = vmatpush1.xpose.msra.mxu0 %v1446
  %1482 = vmatprep.subr.mxu0 0.0
  %1483 = vmatpush2.xpose.msra.mxu0 0.0
  %1484 = vmatprep.subr.mxu0 0.0
  %1485 = vmatpush2.xpose.msra.mxu0 0.0
  %1486 = vmatprep.subr.mxu0 0.0
  %1487 = vmatpush2.xpose.msra.mxu0 0.0
  %1488 = vmatprep.subr.mxu0 0.0
  %1489 = vmatpush2.xpose.msra.mxu0 0.0
  %1490 = vmatprep.subr.mxu0 0.0
  %1491 = vmatpush2.xpose.msra.mxu0 0.0
  %1492 = vmatprep.subr.mxu0 0.0
  %1493 = vmatpush2.xpose.msra.mxu0 0.0
  %1494 = vmatprep.subr.mxu0 0.0
  %1495 = vmatpush2.xpose.msra.mxu0 0.0
  %1496 = vmatprep.subr.mxu0 0.0
  %1497 = vmatpush2.xpose.msra.mxu0 0.0
  %1498 = vmatprep.subr.mxu0 0.0
  %1499 = vmatpush2.xpose.msra.mxu0 0.0
  %1500 = vmatprep.subr.mxu0 0.0
  %1501 = vmatpush2.xpose.msra.mxu0 0.0
  %1502 = vmatprep.subr.mxu0 0.0
  %1503 = vmatpush2.xpose.msra.mxu0 0.0
  %1504 = vmatprep.subr.mxu0 0.0
  %1505 = vmatpush2.xpose.msra.mxu0 0.0
  %1506 = vmatprep.subr.mxu0 0.0
  %1507 = vmatpush2.xpose.msra.mxu0 0.0
  %1508 = vmatprep.subr.mxu0 0.0
  %1509 = vmatpush2.xpose.msra.mxu0 0.0
  %1510 = vmatprep.subr.mxu0 0.0
  %1511 = vmatpush2.xpose.msra.mxu0 0.0
  %1512 = vmatprep.subr.mxu0 0.0
  %1513 = vmatpush2.xpose.msra.mxu0 0.0
  %1514 = vmatprep.mubr.f32.mxu0 0.0
  %1515 = vmatmul.mubr.f32.gmra.mxu0 %v1442
  %v1516 = vpop.f32.mrf.mxu0
  %v1517 = vadd.f32 0.0, %v1516
  %v1518 = vpop.f32.mrf.mxu0
  %1519 = vmatprep.mubr.f32.mxu0 0.0
  %1520 = vmatmul.mubr.f32.gmra.mxu0 %v1444
  %v1521 = vpop.f32.mrf.mxu0
  %v1522 = vadd.f32 0.0, %v1521
  %v1523 = vpop.f32.mrf.mxu0
  %1524 = vdwg.mxu0
  %1525 = vrot.lane.b32.xlu0 %v630, 112
  %v1526 = vpop.permute.xlu0 %1525
  %1527 = vrot.lane.b32.xlu0 %v631, 112
  %v1528 = vpop.permute.xlu0 %1527
  %1529 = vrot.lane.b32.xlu0 %v620, 80
  %v1530 = vpop.permute.xlu0 %1529
  %1531 = vrot.lane.b32.xlu0 %v625, 80
  %v1532 = vpop.permute.xlu0 %1531
  %v1533 = vsel %vm638, %v1526, 0
  %v1535 = vsel %vm638, %v1528, 0
  %v1537 = vsel %vm638, %v1530, 0
  %v1539 = vsel %vm638, %v1532, 0
  %1541 = vmatprep.subr.mxu0 0.0
  %1542 = vmatpush1.xpose.msra.mxu0 0.0
  %1543 = vmatprep.subr.mxu0 0.0
  %1544 = vmatpush1.xpose.msra.mxu0 0.0
  %1545 = vmatprep.subr.mxu0 0.0
  %1546 = vmatpush1.xpose.msra.mxu0 0.0
  %1547 = vmatprep.subr.mxu0 0.0
  %1548 = vmatpush1.xpose.msra.mxu0 0.0
  %1549 = vmatprep.subr.mxu0 0.0
  %1550 = vmatpush1.xpose.msra.mxu0 0.0
  %1551 = vmatprep.subr.mxu0 0.0
  %1552 = vmatpush1.xpose.msra.mxu0 0.0
  %1553 = vmatprep.subr.mxu0 0.0
  %1554 = vmatpush1.xpose.msra.mxu0 0.0
  %1555 = vmatprep.subr.mxu0 0.0
  %1556 = vmatpush1.xpose.msra.mxu0 0.0
  %1557 = vmatprep.subr.mxu0 0.0
  %1558 = vmatpush1.xpose.msra.mxu0 0.0
  %1559 = vmatprep.subr.mxu0 0.0
  %1560 = vmatpush1.xpose.msra.mxu0 0.0
  %1561 = vmatprep.subr.mxu0 0.0
  %1562 = vmatpush1.xpose.msra.mxu0 0.0
  %1563 = vmatprep.subr.mxu0 0.0
  %1564 = vmatpush1.xpose.msra.mxu0 0.0
  %1565 = vmatprep.subr.mxu0 0.0
  %1566 = vmatpush1.xpose.msra.mxu0 0.0
  %1567 = vmatprep.subr.mxu0 0.0
  %1568 = vmatpush1.xpose.msra.mxu0 0.0
  %1569 = vmatprep.subr.mxu0 0.0
  %1570 = vmatpush1.xpose.msra.mxu0 %v1539
  %1571 = vmatprep.subr.mxu0 0.0
  %1572 = vmatpush1.xpose.msra.mxu0 %v1537
  %1573 = vmatprep.subr.mxu0 0.0
  %1574 = vmatpush2.xpose.msra.mxu0 0.0
  %1575 = vmatprep.subr.mxu0 0.0
  %1576 = vmatpush2.xpose.msra.mxu0 0.0
  %1577 = vmatprep.subr.mxu0 0.0
  %1578 = vmatpush2.xpose.msra.mxu0 0.0
  %1579 = vmatprep.subr.mxu0 0.0
  %1580 = vmatpush2.xpose.msra.mxu0 0.0
  %1581 = vmatprep.subr.mxu0 0.0
  %1582 = vmatpush2.xpose.msra.mxu0 0.0
  %1583 = vmatprep.subr.mxu0 0.0
  %1584 = vmatpush2.xpose.msra.mxu0 0.0
  %1585 = vmatprep.subr.mxu0 0.0
  %1586 = vmatpush2.xpose.msra.mxu0 0.0
  %1587 = vmatprep.subr.mxu0 0.0
  %1588 = vmatpush2.xpose.msra.mxu0 0.0
  %1589 = vmatprep.subr.mxu0 0.0
  %1590 = vmatpush2.xpose.msra.mxu0 0.0
  %1591 = vmatprep.subr.mxu0 0.0
  %1592 = vmatpush2.xpose.msra.mxu0 0.0
  %1593 = vmatprep.subr.mxu0 0.0
  %1594 = vmatpush2.xpose.msra.mxu0 0.0
  %1595 = vmatprep.subr.mxu0 0.0
  %1596 = vmatpush2.xpose.msra.mxu0 0.0
  %1597 = vmatprep.subr.mxu0 0.0
  %1598 = vmatpush2.xpose.msra.mxu0 0.0
  %1599 = vmatprep.subr.mxu0 0.0
  %1600 = vmatpush2.xpose.msra.mxu0 0.0
  %1601 = vmatprep.subr.mxu0 0.0
  %1602 = vmatpush2.xpose.msra.mxu0 0.0
  %1603 = vmatprep.subr.mxu0 0.0
  %1604 = vmatpush2.xpose.msra.mxu0 0.0
  %1605 = vmatprep.mubr.f32.mxu0 0.0
  %1606 = vmatmul.mubr.f32.gmra.mxu0 %v1533
  %v1607 = vpop.f32.mrf.mxu0
  %v1608 = vadd.f32 0.0, %v1607
  %v1609 = vpop.f32.mrf.mxu0
  %1610 = vmatprep.mubr.f32.mxu0 0.0
  %1611 = vmatmul.mubr.f32.gmra.mxu0 %v1535
  %v1612 = vpop.f32.mrf.mxu0
  %v1613 = vadd.f32 0.0, %v1612
  %v1614 = vpop.f32.mrf.mxu0
  %1615 = vdwg.mxu0
  %v1616 = vsel %vm815, %v1517, -inf
  %1617 = vmax.xlane.f32.xlu0 %v1616
  %v1618 = vpop.xlane.xlu0 %1617
  %v1619 = vsel %vm815, %v1522, -inf
  %1620 = vmax.xlane.f32.xlu0 %v1619
  %v1621 = vpop.xlane.xlu0 %1620
  %v1622 = vsel %vm815, %v1608, -inf
  %1623 = vmax.xlane.f32.xlu0 %v1622
  %v1624 = vpop.xlane.xlu0 %1623
  %v1625 = vsel %vm815, %v1613, -inf
  %1626 = vmax.xlane.f32.xlu0 %v1625
  %v1627 = vpop.xlane.xlu0 %1626
  %v1628 = vsub.f32 %v1517, %v1618
  %v1629 = vsub.f32 %v1522, %v1621
  %v1630 = vsub.f32 %v1608, %v1624
  %v1631 = vsub.f32 %v1613, %v1627
  %v1632 = vmul.f32 %v1628, 1.442695
  %v1633 = vpow.pop %v1632
  %v1634 = vmul.f32 %v1629, 1.442695
  %v1635 = vpow.pop %v1634
  %v1636 = vmul.f32 %v1630, 1.442695
  %v1637 = vpow.pop %v1636
  %v1638 = vmul.f32 %v1631, 1.442695
  %v1639 = vpow.pop %v1638
  %v1640 = vsel %vm815, %v1633, 0.0
  %1641 = vadd.xlane.f32.xlu0 %v1640
  %v1642 = vpop.xlane.xlu0 %1641
  %v1643 = vsel %vm815, %v1635, 0.0
  %1644 = vadd.xlane.f32.xlu0 %v1643
  %v1645 = vpop.xlane.xlu0 %1644
  %v1646 = vsel %vm815, %v1637, 0.0
  %1647 = vadd.xlane.f32.xlu0 %v1646
  %v1648 = vpop.xlane.xlu0 %1647
  %v1649 = vsel %vm815, %v1639, 0.0
  %1650 = vadd.xlane.f32.xlu0 %v1649
  %v1651 = vpop.xlane.xlu0 %1650
  %v1652 = vrcp.pop %v1642
  %v1653 = vrcp.pop %v1645
  %v1654 = vrcp.pop %v1648
  %v1655 = vrcp.pop %v1651
  %v1656 = vmul.f32 %v1633, %v1652
  %v1657 = vmul.f32 %v1635, %v1653
  %v1658 = vmul.f32 %v1637, %v1654
  %v1659 = vmul.f32 %v1639, %v1655
  %1660 = vrot.lane.b32.xlu0 %v610, 48
  %v1661 = vpop.permute.xlu0 %1660
  %1662 = vrot.lane.b32.xlu0 %v615, 48
  %v1663 = vpop.permute.xlu0 %1662
  %v1667 = vsel %vm815, %v1656, 0
  %v1670 = vsel %vm815, %v1657, 0
  %1672 = vmatprep.subr.mxu0 0.0
  %1673 = vmatpush1.msra.mxu0 0.0
  %1674 = vmatprep.subr.mxu0 0.0
  %1675 = vmatpush1.msra.mxu0 0.0
  %1676 = vmatprep.subr.mxu0 0.0
  %1677 = vmatpush1.msra.mxu0 0.0
  %1678 = vmatprep.subr.mxu0 0.0
  %1679 = vmatpush1.msra.mxu0 0.0
  %1680 = vmatprep.subr.mxu0 0.0
  %1681 = vmatpush1.msra.mxu0 0.0
  %1682 = vmatprep.subr.mxu0 0.0
  %1683 = vmatpush1.msra.mxu0 0.0
  %1684 = vmatprep.subr.mxu0 0.0
  %1685 = vmatpush1.msra.mxu0 0.0
  %1686 = vmatprep.subr.mxu0 0.0
  %1687 = vmatpush1.msra.mxu0 0.0
  %1688 = vmatprep.subr.mxu0 0.0
  %1689 = vmatpush1.msra.mxu0 0.0
  %1690 = vmatprep.subr.mxu0 0.0
  %1691 = vmatpush1.msra.mxu0 0.0
  %1692 = vmatprep.subr.mxu0 0.0
  %1693 = vmatpush1.msra.mxu0 0.0
  %1694 = vmatprep.subr.mxu0 0.0
  %1695 = vmatpush1.msra.mxu0 0.0
  %1696 = vmatprep.subr.mxu0 0.0
  %1697 = vmatpush1.msra.mxu0 0.0
  %1698 = vmatprep.subr.mxu0 0.0
  %1699 = vmatpush1.msra.mxu0 0.0
  %1700 = vmatprep.subr.mxu0 0.0
  %1701 = vmatpush1.msra.mxu0 %v1663
  %1702 = vmatprep.subr.mxu0 0.0
  %1703 = vmatpush1.msra.mxu0 %v1661
  %1704 = vmatprep.subr.mxu0 0.0
  %1705 = vmatpush2.msra.mxu0 0.0
  %1706 = vmatprep.subr.mxu0 0.0
  %1707 = vmatpush2.msra.mxu0 0.0
  %1708 = vmatprep.subr.mxu0 0.0
  %1709 = vmatpush2.msra.mxu0 0.0
  %1710 = vmatprep.subr.mxu0 0.0
  %1711 = vmatpush2.msra.mxu0 0.0
  %1712 = vmatprep.subr.mxu0 0.0
  %1713 = vmatpush2.msra.mxu0 0.0
  %1714 = vmatprep.subr.mxu0 0.0
  %1715 = vmatpush2.msra.mxu0 0.0
  %1716 = vmatprep.subr.mxu0 0.0
  %1717 = vmatpush2.msra.mxu0 0.0
  %1718 = vmatprep.subr.mxu0 0.0
  %1719 = vmatpush2.msra.mxu0 0.0
  %1720 = vmatprep.subr.mxu0 0.0
  %1721 = vmatpush2.msra.mxu0 0.0
  %1722 = vmatprep.subr.mxu0 0.0
  %1723 = vmatpush2.msra.mxu0 0.0
  %1724 = vmatprep.subr.mxu0 0.0
  %1725 = vmatpush2.msra.mxu0 0.0
  %1726 = vmatprep.subr.mxu0 0.0
  %1727 = vmatpush2.msra.mxu0 0.0
  %1728 = vmatprep.subr.mxu0 0.0
  %1729 = vmatpush2.msra.mxu0 0.0
  %1730 = vmatprep.subr.mxu0 0.0
  %1731 = vmatpush2.msra.mxu0 0.0
  %1732 = vmatprep.subr.mxu0 0.0
  %1733 = vmatpush2.msra.mxu0 0.0
  %1734 = vmatprep.subr.mxu0 0.0
  %1735 = vmatpush2.msra.mxu0 0.0
  %1736 = vmatprep.mubr.f32.mxu0 0.0
  %1737 = vmatmul.mubr.f32.gmra.mxu0 %v1667
  %v1738 = vpop.f32.mrf.mxu0
  %v1739 = vadd.f32 0.0, %v1738
  %v1740 = vpop.f32.mrf.mxu0
  %1741 = vmatprep.mubr.f32.mxu0 0.0
  %1742 = vmatmul.mubr.f32.gmra.mxu0 %v1670
  %v1743 = vpop.f32.mrf.mxu0
  %v1744 = vadd.f32 0.0, %v1743
  %v1745 = vpop.f32.mrf.mxu0
  %1746 = vdwg.mxu0
  %1747 = vrot.lane.b32.xlu0 %v620, 48
  %v1748 = vpop.permute.xlu0 %1747
  %1749 = vrot.lane.b32.xlu0 %v625, 48
  %v1750 = vpop.permute.xlu0 %1749
  %v1754 = vsel %vm815, %v1658, 0
  %v1757 = vsel %vm815, %v1659, 0
  %1759 = vmatprep.subr.mxu0 0.0
  %1760 = vmatpush1.msra.mxu0 0.0
  %1761 = vmatprep.subr.mxu0 0.0
  %1762 = vmatpush1.msra.mxu0 0.0
  %1763 = vmatprep.subr.mxu0 0.0
  %1764 = vmatpush1.msra.mxu0 0.0
  %1765 = vmatprep.subr.mxu0 0.0
  %1766 = vmatpush1.msra.mxu0 0.0
  %1767 = vmatprep.subr.mxu0 0.0
  %1768 = vmatpush1.msra.mxu0 0.0
  %1769 = vmatprep.subr.mxu0 0.0
  %1770 = vmatpush1.msra.mxu0 0.0
  %1771 = vmatprep.subr.mxu0 0.0
  %1772 = vmatpush1.msra.mxu0 0.0
  %1773 = vmatprep.subr.mxu0 0.0
  %1774 = vmatpush1.msra.mxu0 0.0
  %1775 = vmatprep.subr.mxu0 0.0
  %1776 = vmatpush1.msra.mxu0 0.0
  %1777 = vmatprep.subr.mxu0 0.0
  %1778 = vmatpush1.msra.mxu0 0.0
  %1779 = vmatprep.subr.mxu0 0.0
  %1780 = vmatpush1.msra.mxu0 0.0
  %1781 = vmatprep.subr.mxu0 0.0
  %1782 = vmatpush1.msra.mxu0 0.0
  %1783 = vmatprep.subr.mxu0 0.0
  %1784 = vmatpush1.msra.mxu0 0.0
  %1785 = vmatprep.subr.mxu0 0.0
  %1786 = vmatpush1.msra.mxu0 0.0
  %1787 = vmatprep.subr.mxu0 0.0
  %1788 = vmatpush1.msra.mxu0 %v1750
  %1789 = vmatprep.subr.mxu0 0.0
  %1790 = vmatpush1.msra.mxu0 %v1748
  %1791 = vmatprep.subr.mxu0 0.0
  %1792 = vmatpush2.msra.mxu0 0.0
  %1793 = vmatprep.subr.mxu0 0.0
  %1794 = vmatpush2.msra.mxu0 0.0
  %1795 = vmatprep.subr.mxu0 0.0
  %1796 = vmatpush2.msra.mxu0 0.0
  %1797 = vmatprep.subr.mxu0 0.0
  %1798 = vmatpush2.msra.mxu0 0.0
  %1799 = vmatprep.subr.mxu0 0.0
  %1800 = vmatpush2.msra.mxu0 0.0
  %1801 = vmatprep.subr.mxu0 0.0
  %1802 = vmatpush2.msra.mxu0 0.0
  %1803 = vmatprep.subr.mxu0 0.0
  %1804 = vmatpush2.msra.mxu0 0.0
  %1805 = vmatprep.subr.mxu0 0.0
  %1806 = vmatpush2.msra.mxu0 0.0
  %1807 = vmatprep.subr.mxu0 0.0
  %1808 = vmatpush2.msra.mxu0 0.0
  %1809 = vmatprep.subr.mxu0 0.0
  %1810 = vmatpush2.msra.mxu0 0.0
  %1811 = vmatprep.subr.mxu0 0.0
  %1812 = vmatpush2.msra.mxu0 0.0
  %1813 = vmatprep.subr.mxu0 0.0
  %1814 = vmatpush2.msra.mxu0 0.0
  %1815 = vmatprep.subr.mxu0 0.0
  %1816 = vmatpush2.msra.mxu0 0.0
  %1817 = vmatprep.subr.mxu0 0.0
  %1818 = vmatpush2.msra.mxu0 0.0
  %1819 = vmatprep.subr.mxu0 0.0
  %1820 = vmatpush2.msra.mxu0 0.0
  %1821 = vmatprep.subr.mxu0 0.0
  %1822 = vmatpush2.msra.mxu0 0.0
  %1823 = vmatprep.mubr.f32.mxu0 0.0
  %1824 = vmatmul.mubr.f32.gmra.mxu0 %v1754
  %v1825 = vpop.f32.mrf.mxu0
  %v1826 = vadd.f32 0.0, %v1825
  %v1827 = vpop.f32.mrf.mxu0
  %1828 = vmatprep.mubr.f32.mxu0 0.0
  %1829 = vmatmul.mubr.f32.gmra.mxu0 %v1757
  %v1830 = vpop.f32.mrf.mxu0
  %v1831 = vadd.f32 0.0, %v1830
  %v1832 = vpop.f32.mrf.mxu0
  %1833 = vdwg.mxu0
  %1834 = vrot.lane.b32.xlu0 %v628, 104
  %v1835 = vpop.permute.xlu0 %1834
  %1836 = vrot.lane.b32.xlu0 %v629, 104
  %v1837 = vpop.permute.xlu0 %1836
  %1838 = vrot.lane.b32.xlu0 %v610, 72
  %v1839 = vpop.permute.xlu0 %1838
  %1840 = vrot.lane.b32.xlu0 %v615, 72
  %v1841 = vpop.permute.xlu0 %1840
  %v1842 = vsel %vm638, %v1835, 0
  %v1844 = vsel %vm638, %v1837, 0
  %v1846 = vsel %vm638, %v1839, 0
  %v1848 = vsel %vm638, %v1841, 0
  %1850 = vmatprep.subr.mxu0 0.0
  %1851 = vmatpush1.xpose.msra.mxu0 0.0
  %1852 = vmatprep.subr.mxu0 0.0
  %1853 = vmatpush1.xpose.msra.mxu0 0.0
  %1854 = vmatprep.subr.mxu0 0.0
  %1855 = vmatpush1.xpose.msra.mxu0 0.0
  %1856 = vmatprep.subr.mxu0 0.0
  %1857 = vmatpush1.xpose.msra.mxu0 0.0
  %1858 = vmatprep.subr.mxu0 0.0
  %1859 = vmatpush1.xpose.msra.mxu0 0.0
  %1860 = vmatprep.subr.mxu0 0.0
  %1861 = vmatpush1.xpose.msra.mxu0 0.0
  %1862 = vmatprep.subr.mxu0 0.0
  %1863 = vmatpush1.xpose.msra.mxu0 0.0
  %1864 = vmatprep.subr.mxu0 0.0
  %1865 = vmatpush1.xpose.msra.mxu0 0.0
  %1866 = vmatprep.subr.mxu0 0.0
  %1867 = vmatpush1.xpose.msra.mxu0 0.0
  %1868 = vmatprep.subr.mxu0 0.0
  %1869 = vmatpush1.xpose.msra.mxu0 0.0
  %1870 = vmatprep.subr.mxu0 0.0
  %1871 = vmatpush1.xpose.msra.mxu0 0.0
  %1872 = vmatprep.subr.mxu0 0.0
  %1873 = vmatpush1.xpose.msra.mxu0 0.0
  %1874 = vmatprep.subr.mxu0 0.0
  %1875 = vmatpush1.xpose.msra.mxu0 0.0
  %1876 = vmatprep.subr.mxu0 0.0
  %1877 = vmatpush1.xpose.msra.mxu0 0.0
  %1878 = vmatprep.subr.mxu0 0.0
  %1879 = vmatpush1.xpose.msra.mxu0 %v1848
  %1880 = vmatprep.subr.mxu0 0.0
  %1881 = vmatpush1.xpose.msra.mxu0 %v1846
  %1882 = vmatprep.subr.mxu0 0.0
  %1883 = vmatpush2.xpose.msra.mxu0 0.0
  %1884 = vmatprep.subr.mxu0 0.0
  %1885 = vmatpush2.xpose.msra.mxu0 0.0
  %1886 = vmatprep.subr.mxu0 0.0
  %1887 = vmatpush2.xpose.msra.mxu0 0.0
  %1888 = vmatprep.subr.mxu0 0.0
  %1889 = vmatpush2.xpose.msra.mxu0 0.0
  %1890 = vmatprep.subr.mxu0 0.0
  %1891 = vmatpush2.xpose.msra.mxu0 0.0
  %1892 = vmatprep.subr.mxu0 0.0
  %1893 = vmatpush2.xpose.msra.mxu0 0.0
  %1894 = vmatprep.subr.mxu0 0.0
  %1895 = vmatpush2.xpose.msra.mxu0 0.0
  %1896 = vmatprep.subr.mxu0 0.0
  %1897 = vmatpush2.xpose.msra.mxu0 0.0
  %1898 = vmatprep.subr.mxu0 0.0
  %1899 = vmatpush2.xpose.msra.mxu0 0.0
  %1900 = vmatprep.subr.mxu0 0.0
  %1901 = vmatpush2.xpose.msra.mxu0 0.0
  %1902 = vmatprep.subr.mxu0 0.0
  %1903 = vmatpush2.xpose.msra.mxu0 0.0
  %1904 = vmatprep.subr.mxu0 0.0
  %1905 = vmatpush2.xpose.msra.mxu0 0.0
  %1906 = vmatprep.subr.mxu0 0.0
  %1907 = vmatpush2.xpose.msra.mxu0 0.0
  %1908 = vmatprep.subr.mxu0 0.0
  %1909 = vmatpush2.xpose.msra.mxu0 0.0
  %1910 = vmatprep.subr.mxu0 0.0
  %1911 = vmatpush2.xpose.msra.mxu0 0.0
  %1912 = vmatprep.subr.mxu0 0.0
  %1913 = vmatpush2.xpose.msra.mxu0 0.0
  %1914 = vmatprep.mubr.f32.mxu0 0.0
  %1915 = vmatmul.mubr.f32.gmra.mxu0 %v1842
  %v1916 = vpop.f32.mrf.mxu0
  %v1917 = vadd.f32 0.0, %v1916
  %v1918 = vpop.f32.mrf.mxu0
  %1919 = vmatprep.mubr.f32.mxu0 0.0
  %1920 = vmatmul.mubr.f32.gmra.mxu0 %v1844
  %v1921 = vpop.f32.mrf.mxu0
  %v1922 = vadd.f32 0.0, %v1921
  %v1923 = vpop.f32.mrf.mxu0
  %1924 = vdwg.mxu0
  %1925 = vrot.lane.b32.xlu0 %v630, 104
  %v1926 = vpop.permute.xlu0 %1925
  %1927 = vrot.lane.b32.xlu0 %v631, 104
  %v1928 = vpop.permute.xlu0 %1927
  %1929 = vrot.lane.b32.xlu0 %v620, 72
  %v1930 = vpop.permute.xlu0 %1929
  %1931 = vrot.lane.b32.xlu0 %v625, 72
  %v1932 = vpop.permute.xlu0 %1931
  %v1933 = vsel %vm638, %v1926, 0
  %v1935 = vsel %vm638, %v1928, 0
  %v1937 = vsel %vm638, %v1930, 0
  %v1939 = vsel %vm638, %v1932, 0
  %1941 = vmatprep.subr.mxu0 0.0
  %1942 = vmatpush1.xpose.msra.mxu0 0.0
  %1943 = vmatprep.subr.mxu0 0.0
  %1944 = vmatpush1.xpose.msra.mxu0 0.0
  %1945 = vmatprep.subr.mxu0 0.0
  %1946 = vmatpush1.xpose.msra.mxu0 0.0
  %1947 = vmatprep.subr.mxu0 0.0
  %1948 = vmatpush1.xpose.msra.mxu0 0.0
  %1949 = vmatprep.subr.mxu0 0.0
  %1950 = vmatpush1.xpose.msra.mxu0 0.0
  %1951 = vmatprep.subr.mxu0 0.0
  %1952 = vmatpush1.xpose.msra.mxu0 0.0
  %1953 = vmatprep.subr.mxu0 0.0
  %1954 = vmatpush1.xpose.msra.mxu0 0.0
  %1955 = vmatprep.subr.mxu0 0.0
  %1956 = vmatpush1.xpose.msra.mxu0 0.0
  %1957 = vmatprep.subr.mxu0 0.0
  %1958 = vmatpush1.xpose.msra.mxu0 0.0
  %1959 = vmatprep.subr.mxu0 0.0
  %1960 = vmatpush1.xpose.msra.mxu0 0.0
  %1961 = vmatprep.subr.mxu0 0.0
  %1962 = vmatpush1.xpose.msra.mxu0 0.0
  %1963 = vmatprep.subr.mxu0 0.0
  %1964 = vmatpush1.xpose.msra.mxu0 0.0
  %1965 = vmatprep.subr.mxu0 0.0
  %1966 = vmatpush1.xpose.msra.mxu0 0.0
  %1967 = vmatprep.subr.mxu0 0.0
  %1968 = vmatpush1.xpose.msra.mxu0 0.0
  %1969 = vmatprep.subr.mxu0 0.0
  %1970 = vmatpush1.xpose.msra.mxu0 %v1939
  %1971 = vmatprep.subr.mxu0 0.0
  %1972 = vmatpush1.xpose.msra.mxu0 %v1937
  %1973 = vmatprep.subr.mxu0 0.0
  %1974 = vmatpush2.xpose.msra.mxu0 0.0
  %1975 = vmatprep.subr.mxu0 0.0
  %1976 = vmatpush2.xpose.msra.mxu0 0.0
  %1977 = vmatprep.subr.mxu0 0.0
  %1978 = vmatpush2.xpose.msra.mxu0 0.0
  %1979 = vmatprep.subr.mxu0 0.0
  %1980 = vmatpush2.xpose.msra.mxu0 0.0
  %1981 = vmatprep.subr.mxu0 0.0
  %1982 = vmatpush2.xpose.msra.mxu0 0.0
  %1983 = vmatprep.subr.mxu0 0.0
  %1984 = vmatpush2.xpose.msra.mxu0 0.0
  %1985 = vmatprep.subr.mxu0 0.0
  %1986 = vmatpush2.xpose.msra.mxu0 0.0
  %1987 = vmatprep.subr.mxu0 0.0
  %1988 = vmatpush2.xpose.msra.mxu0 0.0
  %1989 = vmatprep.subr.mxu0 0.0
  %1990 = vmatpush2.xpose.msra.mxu0 0.0
  %1991 = vmatprep.subr.mxu0 0.0
  %1992 = vmatpush2.xpose.msra.mxu0 0.0
  %1993 = vmatprep.subr.mxu0 0.0
  %1994 = vmatpush2.xpose.msra.mxu0 0.0
  %1995 = vmatprep.subr.mxu0 0.0
  %1996 = vmatpush2.xpose.msra.mxu0 0.0
  %1997 = vmatprep.subr.mxu0 0.0
  %1998 = vmatpush2.xpose.msra.mxu0 0.0
  %1999 = vmatprep.subr.mxu0 0.0
  %2000 = vmatpush2.xpose.msra.mxu0 0.0
  %2001 = vmatprep.subr.mxu0 0.0
  %2002 = vmatpush2.xpose.msra.mxu0 0.0
  %2003 = vmatprep.subr.mxu0 0.0
  %2004 = vmatpush2.xpose.msra.mxu0 0.0
  %2005 = vmatprep.mubr.f32.mxu0 0.0
  %2006 = vmatmul.mubr.f32.gmra.mxu0 %v1933
  %v2007 = vpop.f32.mrf.mxu0
  %v2008 = vadd.f32 0.0, %v2007
  %v2009 = vpop.f32.mrf.mxu0
  %2010 = vmatprep.mubr.f32.mxu0 0.0
  %2011 = vmatmul.mubr.f32.gmra.mxu0 %v1935
  %v2012 = vpop.f32.mrf.mxu0
  %v2013 = vadd.f32 0.0, %v2012
  %v2014 = vpop.f32.mrf.mxu0
  %2015 = vdwg.mxu0
  %v2016 = vsel %vm815, %v1917, -inf
  %2017 = vmax.xlane.f32.xlu0 %v2016
  %v2018 = vpop.xlane.xlu0 %2017
  %v2019 = vsel %vm815, %v1922, -inf
  %2020 = vmax.xlane.f32.xlu0 %v2019
  %v2021 = vpop.xlane.xlu0 %2020
  %v2022 = vsel %vm815, %v2008, -inf
  %2023 = vmax.xlane.f32.xlu0 %v2022
  %v2024 = vpop.xlane.xlu0 %2023
  %v2025 = vsel %vm815, %v2013, -inf
  %2026 = vmax.xlane.f32.xlu0 %v2025
  %v2027 = vpop.xlane.xlu0 %2026
  %v2028 = vsub.f32 %v1917, %v2018
  %v2029 = vsub.f32 %v1922, %v2021
  %v2030 = vsub.f32 %v2008, %v2024
  %v2031 = vsub.f32 %v2013, %v2027
  %v2032 = vmul.f32 %v2028, 1.442695
  %v2033 = vpow.pop %v2032
  %v2034 = vmul.f32 %v2029, 1.442695
  %v2035 = vpow.pop %v2034
  %v2036 = vmul.f32 %v2030, 1.442695
  %v2037 = vpow.pop %v2036
  %v2038 = vmul.f32 %v2031, 1.442695
  %v2039 = vpow.pop %v2038
  %v2040 = vsel %vm815, %v2033, 0.0
  %2041 = vadd.xlane.f32.xlu0 %v2040
  %v2042 = vpop.xlane.xlu0 %2041
  %v2043 = vsel %vm815, %v2035, 0.0
  %2044 = vadd.xlane.f32.xlu0 %v2043
  %v2045 = vpop.xlane.xlu0 %2044
  %v2046 = vsel %vm815, %v2037, 0.0
  %2047 = vadd.xlane.f32.xlu0 %v2046
  %v2048 = vpop.xlane.xlu0 %2047
  %v2049 = vsel %vm815, %v2039, 0.0
  %2050 = vadd.xlane.f32.xlu0 %v2049
  %v2051 = vpop.xlane.xlu0 %2050
  %v2052 = vrcp.pop %v2042
  %v2053 = vrcp.pop %v2045
  %v2054 = vrcp.pop %v2048
  %v2055 = vrcp.pop %v2051
  %v2056 = vmul.f32 %v2033, %v2052
  %v2057 = vmul.f32 %v2035, %v2053
  %v2058 = vmul.f32 %v2037, %v2054
  %v2059 = vmul.f32 %v2039, %v2055
  %2060 = vrot.lane.b32.xlu0 %v610, 40
  %v2061 = vpop.permute.xlu0 %2060
  %2062 = vrot.lane.b32.xlu0 %v615, 40
  %v2063 = vpop.permute.xlu0 %2062
  %v2067 = vsel %vm815, %v2056, 0
  %v2070 = vsel %vm815, %v2057, 0
  %2072 = vmatprep.subr.mxu0 0.0
  %2073 = vmatpush1.msra.mxu0 0.0
  %2074 = vmatprep.subr.mxu0 0.0
  %2075 = vmatpush1.msra.mxu0 0.0
  %2076 = vmatprep.subr.mxu0 0.0
  %2077 = vmatpush1.msra.mxu0 0.0
  %2078 = vmatprep.subr.mxu0 0.0
  %2079 = vmatpush1.msra.mxu0 0.0
  %2080 = vmatprep.subr.mxu0 0.0
  %2081 = vmatpush1.msra.mxu0 0.0
  %2082 = vmatprep.subr.mxu0 0.0
  %2083 = vmatpush1.msra.mxu0 0.0
  %2084 = vmatprep.subr.mxu0 0.0
  %2085 = vmatpush1.msra.mxu0 0.0
  %2086 = vmatprep.subr.mxu0 0.0
  %2087 = vmatpush1.msra.mxu0 0.0
  %2088 = vmatprep.subr.mxu0 0.0
  %2089 = vmatpush1.msra.mxu0 0.0
  %2090 = vmatprep.subr.mxu0 0.0
  %2091 = vmatpush1.msra.mxu0 0.0
  %2092 = vmatprep.subr.mxu0 0.0
  %2093 = vmatpush1.msra.mxu0 0.0
  %2094 = vmatprep.subr.mxu0 0.0
  %2095 = vmatpush1.msra.mxu0 0.0
  %2096 = vmatprep.subr.mxu0 0.0
  %2097 = vmatpush1.msra.mxu0 0.0
  %2098 = vmatprep.subr.mxu0 0.0
  %2099 = vmatpush1.msra.mxu0 0.0
  %2100 = vmatprep.subr.mxu0 0.0
  %2101 = vmatpush1.msra.mxu0 %v2063
  %2102 = vmatprep.subr.mxu0 0.0
  %2103 = vmatpush1.msra.mxu0 %v2061
  %2104 = vmatprep.subr.mxu0 0.0
  %2105 = vmatpush2.msra.mxu0 0.0
  %2106 = vmatprep.subr.mxu0 0.0
  %2107 = vmatpush2.msra.mxu0 0.0
  %2108 = vmatprep.subr.mxu0 0.0
  %2109 = vmatpush2.msra.mxu0 0.0
  %2110 = vmatprep.subr.mxu0 0.0
  %2111 = vmatpush2.msra.mxu0 0.0
  %2112 = vmatprep.subr.mxu0 0.0
  %2113 = vmatpush2.msra.mxu0 0.0
  %2114 = vmatprep.subr.mxu0 0.0
  %2115 = vmatpush2.msra.mxu0 0.0
  %2116 = vmatprep.subr.mxu0 0.0
  %2117 = vmatpush2.msra.mxu0 0.0
  %2118 = vmatprep.subr.mxu0 0.0
  %2119 = vmatpush2.msra.mxu0 0.0
  %2120 = vmatprep.subr.mxu0 0.0
  %2121 = vmatpush2.msra.mxu0 0.0
  %2122 = vmatprep.subr.mxu0 0.0
  %2123 = vmatpush2.msra.mxu0 0.0
  %2124 = vmatprep.subr.mxu0 0.0
  %2125 = vmatpush2.msra.mxu0 0.0
  %2126 = vmatprep.subr.mxu0 0.0
  %2127 = vmatpush2.msra.mxu0 0.0
  %2128 = vmatprep.subr.mxu0 0.0
  %2129 = vmatpush2.msra.mxu0 0.0
  %2130 = vmatprep.subr.mxu0 0.0
  %2131 = vmatpush2.msra.mxu0 0.0
  %2132 = vmatprep.subr.mxu0 0.0
  %2133 = vmatpush2.msra.mxu0 0.0
  %2134 = vmatprep.subr.mxu0 0.0
  %2135 = vmatpush2.msra.mxu0 0.0
  %2136 = vmatprep.mubr.f32.mxu0 0.0
  %2137 = vmatmul.mubr.f32.gmra.mxu0 %v2067
  %v2138 = vpop.f32.mrf.mxu0
  %v2139 = vadd.f32 0.0, %v2138
  %v2140 = vpop.f32.mrf.mxu0
  %2141 = vmatprep.mubr.f32.mxu0 0.0
  %2142 = vmatmul.mubr.f32.gmra.mxu0 %v2070
  %v2143 = vpop.f32.mrf.mxu0
  %v2144 = vadd.f32 0.0, %v2143
  %v2145 = vpop.f32.mrf.mxu0
  %2146 = vdwg.mxu0
  %2147 = vrot.lane.b32.xlu0 %v620, 40
  %v2148 = vpop.permute.xlu0 %2147
  %2149 = vrot.lane.b32.xlu0 %v625, 40
  %v2150 = vpop.permute.xlu0 %2149
  %v2154 = vsel %vm815, %v2058, 0
  %v2157 = vsel %vm815, %v2059, 0
  %2159 = vmatprep.subr.mxu0 0.0
  %2160 = vmatpush1.msra.mxu0 0.0
  %2161 = vmatprep.subr.mxu0 0.0
  %2162 = vmatpush1.msra.mxu0 0.0
  %2163 = vmatprep.subr.mxu0 0.0
  %2164 = vmatpush1.msra.mxu0 0.0
  %2165 = vmatprep.subr.mxu0 0.0
  %2166 = vmatpush1.msra.mxu0 0.0
  %2167 = vmatprep.subr.mxu0 0.0
  %2168 = vmatpush1.msra.mxu0 0.0
  %2169 = vmatprep.subr.mxu0 0.0
  %2170 = vmatpush1.msra.mxu0 0.0
  %2171 = vmatprep.subr.mxu0 0.0
  %2172 = vmatpush1.msra.mxu0 0.0
  %2173 = vmatprep.subr.mxu0 0.0
  %2174 = vmatpush1.msra.mxu0 0.0
  %2175 = vmatprep.subr.mxu0 0.0
  %2176 = vmatpush1.msra.mxu0 0.0
  %2177 = vmatprep.subr.mxu0 0.0
  %2178 = vmatpush1.msra.mxu0 0.0
  %2179 = vmatprep.subr.mxu0 0.0
  %2180 = vmatpush1.msra.mxu0 0.0
  %2181 = vmatprep.subr.mxu0 0.0
  %2182 = vmatpush1.msra.mxu0 0.0
  %2183 = vmatprep.subr.mxu0 0.0
  %2184 = vmatpush1.msra.mxu0 0.0
  %2185 = vmatprep.subr.mxu0 0.0
  %2186 = vmatpush1.msra.mxu0 0.0
  %2187 = vmatprep.subr.mxu0 0.0
  %2188 = vmatpush1.msra.mxu0 %v2150
  %2189 = vmatprep.subr.mxu0 0.0
  %2190 = vmatpush1.msra.mxu0 %v2148
  %2191 = vmatprep.subr.mxu0 0.0
  %2192 = vmatpush2.msra.mxu0 0.0
  %2193 = vmatprep.subr.mxu0 0.0
  %2194 = vmatpush2.msra.mxu0 0.0
  %2195 = vmatprep.subr.mxu0 0.0
  %2196 = vmatpush2.msra.mxu0 0.0
  %2197 = vmatprep.subr.mxu0 0.0
  %2198 = vmatpush2.msra.mxu0 0.0
  %2199 = vmatprep.subr.mxu0 0.0
  %2200 = vmatpush2.msra.mxu0 0.0
  %2201 = vmatprep.subr.mxu0 0.0
  %2202 = vmatpush2.msra.mxu0 0.0
  %2203 = vmatprep.subr.mxu0 0.0
  %2204 = vmatpush2.msra.mxu0 0.0
  %2205 = vmatprep.subr.mxu0 0.0
  %2206 = vmatpush2.msra.mxu0 0.0
  %2207 = vmatprep.subr.mxu0 0.0
  %2208 = vmatpush2.msra.mxu0 0.0
  %2209 = vmatprep.subr.mxu0 0.0
  %2210 = vmatpush2.msra.mxu0 0.0
  %2211 = vmatprep.subr.mxu0 0.0
  %2212 = vmatpush2.msra.mxu0 0.0
  %2213 = vmatprep.subr.mxu0 0.0
  %2214 = vmatpush2.msra.mxu0 0.0
  %2215 = vmatprep.subr.mxu0 0.0
  %2216 = vmatpush2.msra.mxu0 0.0
  %2217 = vmatprep.subr.mxu0 0.0
  %2218 = vmatpush2.msra.mxu0 0.0
  %2219 = vmatprep.subr.mxu0 0.0
  %2220 = vmatpush2.msra.mxu0 0.0
  %2221 = vmatprep.subr.mxu0 0.0
  %2222 = vmatpush2.msra.mxu0 0.0
  %2223 = vmatprep.mubr.f32.mxu0 0.0
  %2224 = vmatmul.mubr.f32.gmra.mxu0 %v2154
  %v2225 = vpop.f32.mrf.mxu0
  %v2226 = vadd.f32 0.0, %v2225
  %v2227 = vpop.f32.mrf.mxu0
  %2228 = vmatprep.mubr.f32.mxu0 0.0
  %2229 = vmatmul.mubr.f32.gmra.mxu0 %v2157
  %v2230 = vpop.f32.mrf.mxu0
  %v2231 = vadd.f32 0.0, %v2230
  %v2232 = vpop.f32.mrf.mxu0
  %2233 = vdwg.mxu0
  %2238 = vrot.lane.b32.xlu0 %v1339, 8
  %v2239 = vpop.permute.xlu0 %2238
  %2240 = vrot.lane.b32.xlu0 %v1344, 8
  %v2241 = vpop.permute.xlu0 %2240
  %2242 = vrot.lane.b32.xlu0 %v1426, 8
  %v2243 = vpop.permute.xlu0 %2242
  %2244 = vrot.lane.b32.xlu0 %v1431, 8
  %v2245 = vpop.permute.xlu0 %2244
  %2254 = vrot.lane.b32.xlu0 %v1739, 16
  %v2255 = vpop.permute.xlu0 %2254
  %2256 = vrot.lane.b32.xlu0 %v1744, 16
  %v2257 = vpop.permute.xlu0 %2256
  %2258 = vrot.lane.b32.xlu0 %v1826, 16
  %v2259 = vpop.permute.xlu0 %2258
  %2260 = vrot.lane.b32.xlu0 %v1831, 16
  %v2261 = vpop.permute.xlu0 %2260
  %2270 = vrot.lane.b32.xlu0 %v2139, 24
  %v2271 = vpop.permute.xlu0 %2270
  %2272 = vrot.lane.b32.xlu0 %v2144, 24
  %v2273 = vpop.permute.xlu0 %2272
  %2274 = vrot.lane.b32.xlu0 %v2226, 24
  %v2275 = vpop.permute.xlu0 %2274
  %2276 = vrot.lane.b32.xlu0 %v2231, 24
  %v2277 = vpop.permute.xlu0 %2276
  %v2282 = vsel %vm638, %v939, %v2239
  %v2283 = vsel %vm638, %v944, %v2241
  %v2284 = vsel %vm638, %v1026, %v2243
  %v2285 = vsel %vm638, %v1031, %v2245
  %v2286 = vsel %vm815, %v2282, %v2255
  %v2287 = vsel %vm815, %v2283, %v2257
  %v2288 = vsel %vm815, %v2284, %v2259
  %v2289 = vsel %vm815, %v2285, %v2261
  %vm2290 = vcmask 195584
  %v2291 = vsel %vm2290, %v2286, %v2271
  %v2292 = vsel %vm2290, %v2287, %v2273
  %v2293 = vsel %vm2290, %v2288, %v2275
  %v2294 = vsel %vm2290, %v2289, %v2277
  %v2295 = vld [vmem:[%s10] sm:$0xff]
  %v2296 = vld [vmem:[%s10 + $0x8] sm:$0xff]
  %v2297 = vld [vmem:[%s10 + $0x10] sm:$0xff]
  %v2298 = vld [vmem:[%s10 + $0x18] sm:$0xff]
  %v2299 = vld [vmem:[%s11] sm:$0x1]
  %v2301 = vlaneseq
  %v2302 = vshrl.u32 %v2301, 7
  %v2303 = vsub.s32 0, %v2302
  %v2304 = vrot.slane %v2299, %v2303
  %v2307 = vsel %vm530, %v2291, 0
  %v2310 = vsel %vm530, %v2292, 0
  %v2313 = vsel %vm530, %v2293, 0
  %v2316 = vsel %vm530, %v2294, 0
  %2318 = vmatprep.subr.mxu0 0.0
  %2319 = vmatpush1.msra.mxu0 0.0
  %2320 = vmatprep.subr.mxu0 0.0
  %2321 = vmatpush1.msra.mxu0 0.0
  %2322 = vmatprep.subr.mxu0 0.0
  %2323 = vmatpush1.msra.mxu0 0.0
  %2324 = vmatprep.subr.mxu0 0.0
  %2325 = vmatpush1.msra.mxu0 0.0
  %2326 = vmatprep.subr.mxu0 0.0
  %2327 = vmatpush1.msra.mxu0 0.0
  %2328 = vmatprep.subr.mxu0 0.0
  %2329 = vmatpush1.msra.mxu0 0.0
  %2330 = vmatprep.subr.mxu0 0.0
  %2331 = vmatpush1.msra.mxu0 0.0
  %2332 = vmatprep.subr.mxu0 0.0
  %2333 = vmatpush1.msra.mxu0 0.0
  %2334 = vmatprep.subr.mxu0 0.0
  %2335 = vmatpush1.msra.mxu0 0.0
  %2336 = vmatprep.subr.mxu0 0.0
  %2337 = vmatpush1.msra.mxu0 0.0
  %2338 = vmatprep.subr.mxu0 0.0
  %2339 = vmatpush1.msra.mxu0 0.0
  %2340 = vmatprep.subr.mxu0 0.0
  %2341 = vmatpush1.msra.mxu0 0.0
  %2342 = vmatprep.subr.mxu0 0.0
  %2343 = vmatpush1.msra.mxu0 %v2298
  %2344 = vmatprep.subr.mxu0 0.0
  %2345 = vmatpush1.msra.mxu0 %v2297
  %2346 = vmatprep.subr.mxu0 0.0
  %2347 = vmatpush1.msra.mxu0 %v2296
  %2348 = vmatprep.subr.mxu0 0.0
  %2349 = vmatpush1.msra.mxu0 %v2295
  %2350 = vmatprep.subr.mxu0 0.0
  %2351 = vmatpush2.msra.mxu0 0.0
  %2352 = vmatprep.subr.mxu0 0.0
  %2353 = vmatpush2.msra.mxu0 0.0
  %2354 = vmatprep.subr.mxu0 0.0
  %2355 = vmatpush2.msra.mxu0 0.0
  %2356 = vmatprep.subr.mxu0 0.0
  %2357 = vmatpush2.msra.mxu0 0.0
  %2358 = vmatprep.subr.mxu0 0.0
  %2359 = vmatpush2.msra.mxu0 0.0
  %2360 = vmatprep.subr.mxu0 0.0
  %2361 = vmatpush2.msra.mxu0 0.0
  %2362 = vmatprep.subr.mxu0 0.0
  %2363 = vmatpush2.msra.mxu0 0.0
  %2364 = vmatprep.subr.mxu0 0.0
  %2365 = vmatpush2.msra.mxu0 0.0
  %2366 = vmatprep.subr.mxu0 0.0
  %2367 = vmatpush2.msra.mxu0 0.0
  %2368 = vmatprep.subr.mxu0 0.0
  %2369 = vmatpush2.msra.mxu0 0.0
  %2370 = vmatprep.subr.mxu0 0.0
  %2371 = vmatpush2.msra.mxu0 0.0
  %2372 = vmatprep.subr.mxu0 0.0
  %2373 = vmatpush2.msra.mxu0 0.0
  %2374 = vmatprep.subr.mxu0 0.0
  %2375 = vmatpush2.msra.mxu0 0.0
  %2376 = vmatprep.subr.mxu0 0.0
  %2377 = vmatpush2.msra.mxu0 0.0
  %2378 = vmatprep.subr.mxu0 0.0
  %2379 = vmatpush2.msra.mxu0 0.0
  %2380 = vmatprep.subr.mxu0 0.0
  %2381 = vmatpush2.msra.mxu0 0.0
  %2382 = vmatprep.mubr.f32.mxu0 0.0
  %2383 = vmatmul.mubr.f32.gmra.mxu0 %v2307
  %v2384 = vpop.f32.mrf.mxu0
  %v2385 = vadd.f32 %v2304, %v2384
  %v2386 = vpop.f32.mrf.mxu0
  %2387 = vmatprep.mubr.f32.mxu0 0.0
  %2388 = vmatmul.mubr.f32.gmra.mxu0 %v2310
  %v2389 = vpop.f32.mrf.mxu0
  %v2390 = vadd.f32 %v2304, %v2389
  %v2391 = vpop.f32.mrf.mxu0
  %2392 = vmatprep.mubr.f32.mxu0 0.0
  %2393 = vmatmul.mubr.f32.gmra.mxu0 %v2313
  %v2394 = vpop.f32.mrf.mxu0
  %v2395 = vadd.f32 %v2304, %v2394
  %v2396 = vpop.f32.mrf.mxu0
  %2397 = vmatprep.mubr.f32.mxu0 0.0
  %2398 = vmatmul.mubr.f32.gmra.mxu0 %v2316
  %v2399 = vpop.f32.mrf.mxu0
  %v2400 = vadd.f32 %v2304, %v2399
  %v2401 = vpop.f32.mrf.mxu0
  %2402 = vdwg.mxu0
  %v2403 = vadd.f32 %v285, %v2385
  %v2404 = vadd.f32 %v517, %v2390
  %v2405 = vadd.f32 %v286, %v2395
  %v2406 = vadd.f32 %v518, %v2400
  %v2407 = vsel %vm530, %v2403, 0.0
  %2408 = vadd.xlane.f32.xlu0 %v2407
  %v2409 = vpop.xlane.xlu0 %2408
  %v2410 = vsel %vm530, %v2404, 0.0
  %2411 = vadd.xlane.f32.xlu0 %v2410
  %v2412 = vpop.xlane.xlu0 %2411
  %v2413 = vsel %vm530, %v2405, 0.0
  %2414 = vadd.xlane.f32.xlu0 %v2413
  %v2415 = vpop.xlane.xlu0 %2414
  %v2416 = vsel %vm530, %v2406, 0.0
  %2417 = vadd.xlane.f32.xlu0 %v2416
  %v2418 = vpop.xlane.xlu0 %2417
  %v2419 = vrcp.pop 32.0
  %v2420 = vmul.f32 %v2409, %v2419
  %v2421 = vmul.f32 %v2412, %v2419
  %v2422 = vmul.f32 %v2415, %v2419
  %v2423 = vmul.f32 %v2418, %v2419
  %v2424 = vsub.f32 %v2403, %v2420
  %v2425 = vsub.f32 %v2404, %v2421
  %v2426 = vsub.f32 %v2405, %v2422
  %v2427 = vsub.f32 %v2406, %v2423
  %v2428 = vmul.f32 %v2424, %v2424
  %v2429 = vmul.f32 %v2425, %v2425
  %v2430 = vmul.f32 %v2426, %v2426
  %v2431 = vmul.f32 %v2427, %v2427
  %v2432 = vsel %vm530, %v2428, 0.0
  %2433 = vadd.xlane.f32.xlu0 %v2432
  %v2434 = vpop.xlane.xlu0 %2433
  %v2435 = vsel %vm530, %v2429, 0.0
  %2436 = vadd.xlane.f32.xlu0 %v2435
  %v2437 = vpop.xlane.xlu0 %2436
  %v2438 = vsel %vm530, %v2430, 0.0
  %2439 = vadd.xlane.f32.xlu0 %v2438
  %v2440 = vpop.xlane.xlu0 %2439
  %v2441 = vsel %vm530, %v2431, 0.0
  %2442 = vadd.xlane.f32.xlu0 %v2441
  %v2443 = vpop.xlane.xlu0 %2442
  %v2444 = vmul.f32 %v2434, %v2419
  %v2445 = vmul.f32 %v2437, %v2419
  %v2446 = vmul.f32 %v2440, %v2419
  %v2447 = vmul.f32 %v2443, %v2419
  %v2448 = vadd.f32 %v2444, 1e-05
  %v2449 = vadd.f32 %v2445, 1e-05
  %v2450 = vadd.f32 %v2446, 1e-05
  %v2451 = vadd.f32 %v2447, 1e-05
  %v2452 = vrsqrt.pop %v2448
  %v2453 = vrsqrt.pop %v2449
  %v2454 = vrsqrt.pop %v2450
  %v2455 = vrsqrt.pop %v2451
  %v2456 = vmul.f32 %v2424, %v2452
  %v2457 = vmul.f32 %v2425, %v2453
  %v2458 = vmul.f32 %v2426, %v2454
  %v2459 = vmul.f32 %v2427, %v2455
  %v2460 = vld [vmem:[%s12] sm:$0x1]
  %v2462 = vlaneseq
  %v2463 = vshrl.u32 %v2462, 7
  %v2464 = vsub.s32 0, %v2463
  %v2465 = vrot.slane %v2460, %v2464
  %v2467 = vmul.f32 %v2456, %v2465
  %v2468 = vmul.f32 %v2457, %v2465
  %v2469 = vmul.f32 %v2458, %v2465
  %v2470 = vmul.f32 %v2459, %v2465
  %v2471 = vld [vmem:[%s13] sm:$0x1]
  %v2473 = vlaneseq
  %v2474 = vshrl.u32 %v2473, 7
  %v2475 = vsub.s32 0, %v2474
  %v2476 = vrot.slane %v2471, %v2475
  %v2478 = vadd.f32 %v2467, %v2476
  %v2479 = vadd.f32 %v2468, %v2476
  %v2480 = vadd.f32 %v2469, %v2476
  %v2481 = vadd.f32 %v2470, %v2476
  %s2482 = scalar_lea.vmem %s8, 32
  %v2483 = vld [vmem:[%s2482] sm:$0xff]
  %v2484 = vld [vmem:[%s2482 + $0x8] sm:$0xff]
  %v2485 = vld [vmem:[%s2482 + $0x10] sm:$0xff]
  %v2486 = vld [vmem:[%s2482 + $0x18] sm:$0xff]
  %s2487 = scalar_lea.vmem %s9, 1
  %v2488 = vld [vmem:[%s2487] sm:$0x1]
  %v2490 = vlaneseq
  %v2491 = vshrl.u32 %v2490, 7
  %v2492 = vsub.s32 0, %v2491
  %v2493 = vrot.slane %v2488, %v2492
  %v2496 = vsel %vm530, %v2478, 0
  %v2499 = vsel %vm530, %v2479, 0
  %v2502 = vsel %vm530, %v2480, 0
  %v2505 = vsel %vm530, %v2481, 0
  %2507 = vmatprep.subr.mxu0 0.0
  %2508 = vmatpush1.msra.mxu0 0.0
  %2509 = vmatprep.subr.mxu0 0.0
  %2510 = vmatpush1.msra.mxu0 0.0
  %2511 = vmatprep.subr.mxu0 0.0
  %2512 = vmatpush1.msra.mxu0 0.0
  %2513 = vmatprep.subr.mxu0 0.0
  %2514 = vmatpush1.msra.mxu0 0.0
  %2515 = vmatprep.subr.mxu0 0.0
  %2516 = vmatpush1.msra.mxu0 0.0
  %2517 = vmatprep.subr.mxu0 0.0
  %2518 = vmatpush1.msra.mxu0 0.0
  %2519 = vmatprep.subr.mxu0 0.0
  %2520 = vmatpush1.msra.mxu0 0.0
  %2521 = vmatprep.subr.mxu0 0.0
  %2522 = vmatpush1.msra.mxu0 0.0
  %2523 = vmatprep.subr.mxu0 0.0
  %2524 = vmatpush1.msra.mxu0 0.0
  %2525 = vmatprep.subr.mxu0 0.0
  %2526 = vmatpush1.msra.mxu0 0.0
  %2527 = vmatprep.subr.mxu0 0.0
  %2528 = vmatpush1.msra.mxu0 0.0
  %2529 = vmatprep.subr.mxu0 0.0
  %2530 = vmatpush1.msra.mxu0 0.0
  %2531 = vmatprep.subr.mxu0 0.0
  %2532 = vmatpush1.msra.mxu0 %v2486
  %2533 = vmatprep.subr.mxu0 0.0
  %2534 = vmatpush1.msra.mxu0 %v2485
  %2535 = vmatprep.subr.mxu0 0.0
  %2536 = vmatpush1.msra.mxu0 %v2484
  %2537 = vmatprep.subr.mxu0 0.0
  %2538 = vmatpush1.msra.mxu0 %v2483
  %2539 = vmatprep.subr.mxu0 0.0
  %2540 = vmatpush2.msra.mxu0 0.0
  %2541 = vmatprep.subr.mxu0 0.0
  %2542 = vmatpush2.msra.mxu0 0.0
  %2543 = vmatprep.subr.mxu0 0.0
  %2544 = vmatpush2.msra.mxu0 0.0
  %2545 = vmatprep.subr.mxu0 0.0
  %2546 = vmatpush2.msra.mxu0 0.0
  %2547 = vmatprep.subr.mxu0 0.0
  %2548 = vmatpush2.msra.mxu0 0.0
  %2549 = vmatprep.subr.mxu0 0.0
  %2550 = vmatpush2.msra.mxu0 0.0
  %2551 = vmatprep.subr.mxu0 0.0
  %2552 = vmatpush2.msra.mxu0 0.0
  %2553 = vmatprep.subr.mxu0 0.0
  %2554 = vmatpush2.msra.mxu0 0.0
  %2555 = vmatprep.subr.mxu0 0.0
  %2556 = vmatpush2.msra.mxu0 0.0
  %2557 = vmatprep.subr.mxu0 0.0
  %2558 = vmatpush2.msra.mxu0 0.0
  %2559 = vmatprep.subr.mxu0 0.0
  %2560 = vmatpush2.msra.mxu0 0.0
  %2561 = vmatprep.subr.mxu0 0.0
  %2562 = vmatpush2.msra.mxu0 0.0
  %2563 = vmatprep.subr.mxu0 0.0
  %2564 = vmatpush2.msra.mxu0 0.0
  %2565 = vmatprep.subr.mxu0 0.0
  %2566 = vmatpush2.msra.mxu0 0.0
  %2567 = vmatprep.subr.mxu0 0.0
  %2568 = vmatpush2.msra.mxu0 0.0
  %2569 = vmatprep.subr.mxu0 0.0
  %2570 = vmatpush2.msra.mxu0 0.0
  %2571 = vmatprep.mubr.f32.mxu0 0.0
  %2572 = vmatmul.mubr.f32.gmra.mxu0 %v2496
  %v2573 = vpop.f32.mrf.mxu0
  %v2574 = vadd.f32 %v2493, %v2573
  %v2575 = vpop.f32.mrf.mxu0
  %2576 = vmatprep.mubr.f32.mxu0 0.0
  %2577 = vmatmul.mubr.f32.gmra.mxu0 %v2499
  %v2578 = vpop.f32.mrf.mxu0
  %v2579 = vadd.f32 %v2493, %v2578
  %v2580 = vpop.f32.mrf.mxu0
  %2581 = vmatprep.mubr.f32.mxu0 0.0
  %2582 = vmatmul.mubr.f32.gmra.mxu0 %v2502
  %v2583 = vpop.f32.mrf.mxu0
  %v2584 = vadd.f32 %v2493, %v2583
  %v2585 = vpop.f32.mrf.mxu0
  %2586 = vmatprep.mubr.f32.mxu0 0.0
  %2587 = vmatmul.mubr.f32.gmra.mxu0 %v2505
  %v2588 = vpop.f32.mrf.mxu0
  %v2589 = vadd.f32 %v2493, %v2588
  %v2590 = vpop.f32.mrf.mxu0
  %2591 = vdwg.mxu0
  %v2592 = vmul.f32 %v2574, 0.35355338
  %v2593 = vmul.f32 %v2579, 0.35355338
  %v2594 = vmul.f32 %v2584, 0.35355338
  %v2595 = vmul.f32 %v2589, 0.35355338
  %2598 = vrot.lane.b32.xlu0 %v2574, 96
  %v2599 = vpop.permute.xlu0 %2598
  %2600 = vrot.lane.b32.xlu0 %v2579, 96
  %v2601 = vpop.permute.xlu0 %2600
  %v2603 = vsel %vm638, %v2592, 0
  %v2606 = vsel %vm638, %v2593, 0
  %v2608 = vsel %vm638, %v2599, 0
  %v2610 = vsel %vm638, %v2601, 0
  %2612 = vmatprep.subr.mxu0 0.0
  %2613 = vmatpush1.xpose.msra.mxu0 0.0
  %2614 = vmatprep.subr.mxu0 0.0
  %2615 = vmatpush1.xpose.msra.mxu0 0.0
  %2616 = vmatprep.subr.mxu0 0.0
  %2617 = vmatpush1.xpose.msra.mxu0 0.0
  %2618 = vmatprep.subr.mxu0 0.0
  %2619 = vmatpush1.xpose.msra.mxu0 0.0
  %2620 = vmatprep.subr.mxu0 0.0
  %2621 = vmatpush1.xpose.msra.mxu0 0.0
  %2622 = vmatprep.subr.mxu0 0.0
  %2623 = vmatpush1.xpose.msra.mxu0 0.0
  %2624 = vmatprep.subr.mxu0 0.0
  %2625 = vmatpush1.xpose.msra.mxu0 0.0
  %2626 = vmatprep.subr.mxu0 0.0
  %2627 = vmatpush1.xpose.msra.mxu0 0.0
  %2628 = vmatprep.subr.mxu0 0.0
  %2629 = vmatpush1.xpose.msra.mxu0 0.0
  %2630 = vmatprep.subr.mxu0 0.0
  %2631 = vmatpush1.xpose.msra.mxu0 0.0
  %2632 = vmatprep.subr.mxu0 0.0
  %2633 = vmatpush1.xpose.msra.mxu0 0.0
  %2634 = vmatprep.subr.mxu0 0.0
  %2635 = vmatpush1.xpose.msra.mxu0 0.0
  %2636 = vmatprep.subr.mxu0 0.0
  %2637 = vmatpush1.xpose.msra.mxu0 0.0
  %2638 = vmatprep.subr.mxu0 0.0
  %2639 = vmatpush1.xpose.msra.mxu0 0.0
  %2640 = vmatprep.subr.mxu0 0.0
  %2641 = vmatpush1.xpose.msra.mxu0 %v2610
  %2642 = vmatprep.subr.mxu0 0.0
  %2643 = vmatpush1.xpose.msra.mxu0 %v2608
  %2644 = vmatprep.subr.mxu0 0.0
  %2645 = vmatpush2.xpose.msra.mxu0 0.0
  %2646 = vmatprep.subr.mxu0 0.0
  %2647 = vmatpush2.xpose.msra.mxu0 0.0
  %2648 = vmatprep.subr.mxu0 0.0
  %2649 = vmatpush2.xpose.msra.mxu0 0.0
  %2650 = vmatprep.subr.mxu0 0.0
  %2651 = vmatpush2.xpose.msra.mxu0 0.0
  %2652 = vmatprep.subr.mxu0 0.0
  %2653 = vmatpush2.xpose.msra.mxu0 0.0
  %2654 = vmatprep.subr.mxu0 0.0
  %2655 = vmatpush2.xpose.msra.mxu0 0.0
  %2656 = vmatprep.subr.mxu0 0.0
  %2657 = vmatpush2.xpose.msra.mxu0 0.0
  %2658 = vmatprep.subr.mxu0 0.0
  %2659 = vmatpush2.xpose.msra.mxu0 0.0
  %2660 = vmatprep.subr.mxu0 0.0
  %2661 = vmatpush2.xpose.msra.mxu0 0.0
  %2662 = vmatprep.subr.mxu0 0.0
  %2663 = vmatpush2.xpose.msra.mxu0 0.0
  %2664 = vmatprep.subr.mxu0 0.0
  %2665 = vmatpush2.xpose.msra.mxu0 0.0
  %2666 = vmatprep.subr.mxu0 0.0
  %2667 = vmatpush2.xpose.msra.mxu0 0.0
  %2668 = vmatprep.subr.mxu0 0.0
  %2669 = vmatpush2.xpose.msra.mxu0 0.0
  %2670 = vmatprep.subr.mxu0 0.0
  %2671 = vmatpush2.xpose.msra.mxu0 0.0
  %2672 = vmatprep.subr.mxu0 0.0
  %2673 = vmatpush2.xpose.msra.mxu0 0.0
  %2674 = vmatprep.subr.mxu0 0.0
  %2675 = vmatpush2.xpose.msra.mxu0 0.0
  %2676 = vmatprep.mubr.f32.mxu0 0.0
  %2677 = vmatmul.mubr.f32.gmra.mxu0 %v2603
  %v2678 = vpop.f32.mrf.mxu0
  %v2679 = vadd.f32 0.0, %v2678
  %v2680 = vpop.f32.mrf.mxu0
  %2681 = vmatprep.mubr.f32.mxu0 0.0
  %2682 = vmatmul.mubr.f32.gmra.mxu0 %v2606
  %v2683 = vpop.f32.mrf.mxu0
  %v2684 = vadd.f32 0.0, %v2683
  %v2685 = vpop.f32.mrf.mxu0
  %2686 = vdwg.mxu0
  %2689 = vrot.lane.b32.xlu0 %v2584, 96
  %v2690 = vpop.permute.xlu0 %2689
  %2691 = vrot.lane.b32.xlu0 %v2589, 96
  %v2692 = vpop.permute.xlu0 %2691
  %v2694 = vsel %vm638, %v2594, 0
  %v2697 = vsel %vm638, %v2595, 0
  %v2699 = vsel %vm638, %v2690, 0
  %v2701 = vsel %vm638, %v2692, 0
  %2703 = vmatprep.subr.mxu0 0.0
  %2704 = vmatpush1.xpose.msra.mxu0 0.0
  %2705 = vmatprep.subr.mxu0 0.0
  %2706 = vmatpush1.xpose.msra.mxu0 0.0
  %2707 = vmatprep.subr.mxu0 0.0
  %2708 = vmatpush1.xpose.msra.mxu0 0.0
  %2709 = vmatprep.subr.mxu0 0.0
  %2710 = vmatpush1.xpose.msra.mxu0 0.0
  %2711 = vmatprep.subr.mxu0 0.0
  %2712 = vmatpush1.xpose.msra.mxu0 0.0
  %2713 = vmatprep.subr.mxu0 0.0
  %2714 = vmatpush1.xpose.msra.mxu0 0.0
  %2715 = vmatprep.subr.mxu0 0.0
  %2716 = vmatpush1.xpose.msra.mxu0 0.0
  %2717 = vmatprep.subr.mxu0 0.0
  %2718 = vmatpush1.xpose.msra.mxu0 0.0
  %2719 = vmatprep.subr.mxu0 0.0
  %2720 = vmatpush1.xpose.msra.mxu0 0.0
  %2721 = vmatprep.subr.mxu0 0.0
  %2722 = vmatpush1.xpose.msra.mxu0 0.0
  %2723 = vmatprep.subr.mxu0 0.0
  %2724 = vmatpush1.xpose.msra.mxu0 0.0
  %2725 = vmatprep.subr.mxu0 0.0
  %2726 = vmatpush1.xpose.msra.mxu0 0.0
  %2727 = vmatprep.subr.mxu0 0.0
  %2728 = vmatpush1.xpose.msra.mxu0 0.0
  %2729 = vmatprep.subr.mxu0 0.0
  %2730 = vmatpush1.xpose.msra.mxu0 0.0
  %2731 = vmatprep.subr.mxu0 0.0
  %2732 = vmatpush1.xpose.msra.mxu0 %v2701
  %2733 = vmatprep.subr.mxu0 0.0
  %2734 = vmatpush1.xpose.msra.mxu0 %v2699
  %2735 = vmatprep.subr.mxu0 0.0
  %2736 = vmatpush2.xpose.msra.mxu0 0.0
  %2737 = vmatprep.subr.mxu0 0.0
  %2738 = vmatpush2.xpose.msra.mxu0 0.0
  %2739 = vmatprep.subr.mxu0 0.0
  %2740 = vmatpush2.xpose.msra.mxu0 0.0
  %2741 = vmatprep.subr.mxu0 0.0
  %2742 = vmatpush2.xpose.msra.mxu0 0.0
  %2743 = vmatprep.subr.mxu0 0.0
  %2744 = vmatpush2.xpose.msra.mxu0 0.0
  %2745 = vmatprep.subr.mxu0 0.0
  %2746 = vmatpush2.xpose.msra.mxu0 0.0
  %2747 = vmatprep.subr.mxu0 0.0
  %2748 = vmatpush2.xpose.msra.mxu0 0.0
  %2749 = vmatprep.subr.mxu0 0.0
  %2750 = vmatpush2.xpose.msra.mxu0 0.0
  %2751 = vmatprep.subr.mxu0 0.0
  %2752 = vmatpush2.xpose.msra.mxu0 0.0
  %2753 = vmatprep.subr.mxu0 0.0
  %2754 = vmatpush2.xpose.msra.mxu0 0.0
  %2755 = vmatprep.subr.mxu0 0.0
  %2756 = vmatpush2.xpose.msra.mxu0 0.0
  %2757 = vmatprep.subr.mxu0 0.0
  %2758 = vmatpush2.xpose.msra.mxu0 0.0
  %2759 = vmatprep.subr.mxu0 0.0
  %2760 = vmatpush2.xpose.msra.mxu0 0.0
  %2761 = vmatprep.subr.mxu0 0.0
  %2762 = vmatpush2.xpose.msra.mxu0 0.0
  %2763 = vmatprep.subr.mxu0 0.0
  %2764 = vmatpush2.xpose.msra.mxu0 0.0
  %2765 = vmatprep.subr.mxu0 0.0
  %2766 = vmatpush2.xpose.msra.mxu0 0.0
  %2767 = vmatprep.mubr.f32.mxu0 0.0
  %2768 = vmatmul.mubr.f32.gmra.mxu0 %v2694
  %v2769 = vpop.f32.mrf.mxu0
  %v2770 = vadd.f32 0.0, %v2769
  %v2771 = vpop.f32.mrf.mxu0
  %2772 = vmatprep.mubr.f32.mxu0 0.0
  %2773 = vmatmul.mubr.f32.gmra.mxu0 %v2697
  %v2774 = vpop.f32.mrf.mxu0
  %v2775 = vadd.f32 0.0, %v2774
  %v2776 = vpop.f32.mrf.mxu0
  %2777 = vdwg.mxu0
  %v2778 = vsel %vm815, %v2679, -inf
  %2779 = vmax.xlane.f32.xlu0 %v2778
  %v2780 = vpop.xlane.xlu0 %2779
  %v2781 = vsel %vm815, %v2684, -inf
  %2782 = vmax.xlane.f32.xlu0 %v2781
  %v2783 = vpop.xlane.xlu0 %2782
  %v2784 = vsel %vm815, %v2770, -inf
  %2785 = vmax.xlane.f32.xlu0 %v2784
  %v2786 = vpop.xlane.xlu0 %2785
  %v2787 = vsel %vm815, %v2775, -inf
  %2788 = vmax.xlane.f32.xlu0 %v2787
  %v2789 = vpop.xlane.xlu0 %2788
  %v2790 = vsub.f32 %v2679, %v2780
  %v2791 = vsub.f32 %v2684, %v2783
  %v2792 = vsub.f32 %v2770, %v2786
  %v2793 = vsub.f32 %v2775, %v2789
  %v2794 = vmul.f32 %v2790, 1.442695
  %v2795 = vpow.pop %v2794
  %v2796 = vmul.f32 %v2791, 1.442695
  %v2797 = vpow.pop %v2796
  %v2798 = vmul.f32 %v2792, 1.442695
  %v2799 = vpow.pop %v2798
  %v2800 = vmul.f32 %v2793, 1.442695
  %v2801 = vpow.pop %v2800
  %v2802 = vsel %vm815, %v2795, 0.0
  %2803 = vadd.xlane.f32.xlu0 %v2802
  %v2804 = vpop.xlane.xlu0 %2803
  %v2805 = vsel %vm815, %v2797, 0.0
  %2806 = vadd.xlane.f32.xlu0 %v2805
  %v2807 = vpop.xlane.xlu0 %2806
  %v2808 = vsel %vm815, %v2799, 0.0
  %2809 = vadd.xlane.f32.xlu0 %v2808
  %v2810 = vpop.xlane.xlu0 %2809
  %v2811 = vsel %vm815, %v2801, 0.0
  %2812 = vadd.xlane.f32.xlu0 %v2811
  %v2813 = vpop.xlane.xlu0 %2812
  %v2814 = vrcp.pop %v2804
  %v2815 = vrcp.pop %v2807
  %v2816 = vrcp.pop %v2810
  %v2817 = vrcp.pop %v2813
  %v2818 = vmul.f32 %v2795, %v2814
  %v2819 = vmul.f32 %v2797, %v2815
  %v2820 = vmul.f32 %v2799, %v2816
  %v2821 = vmul.f32 %v2801, %v2817
  %2822 = vrot.lane.b32.xlu0 %v2574, 64
  %v2823 = vpop.permute.xlu0 %2822
  %2824 = vrot.lane.b32.xlu0 %v2579, 64
  %v2825 = vpop.permute.xlu0 %2824
  %v2829 = vsel %vm815, %v2818, 0
  %v2832 = vsel %vm815, %v2819, 0
  %2834 = vmatprep.subr.mxu0 0.0
  %2835 = vmatpush1.msra.mxu0 0.0
  %2836 = vmatprep.subr.mxu0 0.0
  %2837 = vmatpush1.msra.mxu0 0.0
  %2838 = vmatprep.subr.mxu0 0.0
  %2839 = vmatpush1.msra.mxu0 0.0
  %2840 = vmatprep.subr.mxu0 0.0
  %2841 = vmatpush1.msra.mxu0 0.0
  %2842 = vmatprep.subr.mxu0 0.0
  %2843 = vmatpush1.msra.mxu0 0.0
  %2844 = vmatprep.subr.mxu0 0.0
  %2845 = vmatpush1.msra.mxu0 0.0
  %2846 = vmatprep.subr.mxu0 0.0
  %2847 = vmatpush1.msra.mxu0 0.0
  %2848 = vmatprep.subr.mxu0 0.0
  %2849 = vmatpush1.msra.mxu0 0.0
  %2850 = vmatprep.subr.mxu0 0.0
  %2851 = vmatpush1.msra.mxu0 0.0
  %2852 = vmatprep.subr.mxu0 0.0
  %2853 = vmatpush1.msra.mxu0 0.0
  %2854 = vmatprep.subr.mxu0 0.0
  %2855 = vmatpush1.msra.mxu0 0.0
  %2856 = vmatprep.subr.mxu0 0.0
  %2857 = vmatpush1.msra.mxu0 0.0
  %2858 = vmatprep.subr.mxu0 0.0
  %2859 = vmatpush1.msra.mxu0 0.0
  %2860 = vmatprep.subr.mxu0 0.0
  %2861 = vmatpush1.msra.mxu0 0.0
  %2862 = vmatprep.subr.mxu0 0.0
  %2863 = vmatpush1.msra.mxu0 %v2825
  %2864 = vmatprep.subr.mxu0 0.0
  %2865 = vmatpush1.msra.mxu0 %v2823
  %2866 = vmatprep.subr.mxu0 0.0
  %2867 = vmatpush2.msra.mxu0 0.0
  %2868 = vmatprep.subr.mxu0 0.0
  %2869 = vmatpush2.msra.mxu0 0.0
  %2870 = vmatprep.subr.mxu0 0.0
  %2871 = vmatpush2.msra.mxu0 0.0
  %2872 = vmatprep.subr.mxu0 0.0
  %2873 = vmatpush2.msra.mxu0 0.0
  %2874 = vmatprep.subr.mxu0 0.0
  %2875 = vmatpush2.msra.mxu0 0.0
  %2876 = vmatprep.subr.mxu0 0.0
  %2877 = vmatpush2.msra.mxu0 0.0
  %2878 = vmatprep.subr.mxu0 0.0
  %2879 = vmatpush2.msra.mxu0 0.0
  %2880 = vmatprep.subr.mxu0 0.0
  %2881 = vmatpush2.msra.mxu0 0.0
  %2882 = vmatprep.subr.mxu0 0.0
  %2883 = vmatpush2.msra.mxu0 0.0
  %2884 = vmatprep.subr.mxu0 0.0
  %2885 = vmatpush2.msra.mxu0 0.0
  %2886 = vmatprep.subr.mxu0 0.0
  %2887 = vmatpush2.msra.mxu0 0.0
  %2888 = vmatprep.subr.mxu0 0.0
  %2889 = vmatpush2.msra.mxu0 0.0
  %2890 = vmatprep.subr.mxu0 0.0
  %2891 = vmatpush2.msra.mxu0 0.0
  %2892 = vmatprep.subr.mxu0 0.0
  %2893 = vmatpush2.msra.mxu0 0.0
  %2894 = vmatprep.subr.mxu0 0.0
  %2895 = vmatpush2.msra.mxu0 0.0
  %2896 = vmatprep.subr.mxu0 0.0
  %2897 = vmatpush2.msra.mxu0 0.0
  %2898 = vmatprep.mubr.f32.mxu0 0.0
  %2899 = vmatmul.mubr.f32.gmra.mxu0 %v2829
  %v2900 = vpop.f32.mrf.mxu0
  %v2901 = vadd.f32 0.0, %v2900
  %v2902 = vpop.f32.mrf.mxu0
  %2903 = vmatprep.mubr.f32.mxu0 0.0
  %2904 = vmatmul.mubr.f32.gmra.mxu0 %v2832
  %v2905 = vpop.f32.mrf.mxu0
  %v2906 = vadd.f32 0.0, %v2905
  %v2907 = vpop.f32.mrf.mxu0
  %2908 = vdwg.mxu0
  %2909 = vrot.lane.b32.xlu0 %v2584, 64
  %v2910 = vpop.permute.xlu0 %2909
  %2911 = vrot.lane.b32.xlu0 %v2589, 64
  %v2912 = vpop.permute.xlu0 %2911
  %v2916 = vsel %vm815, %v2820, 0
  %v2919 = vsel %vm815, %v2821, 0
  %2921 = vmatprep.subr.mxu0 0.0
  %2922 = vmatpush1.msra.mxu0 0.0
  %2923 = vmatprep.subr.mxu0 0.0
  %2924 = vmatpush1.msra.mxu0 0.0
  %2925 = vmatprep.subr.mxu0 0.0
  %2926 = vmatpush1.msra.mxu0 0.0
  %2927 = vmatprep.subr.mxu0 0.0
  %2928 = vmatpush1.msra.mxu0 0.0
  %2929 = vmatprep.subr.mxu0 0.0
  %2930 = vmatpush1.msra.mxu0 0.0
  %2931 = vmatprep.subr.mxu0 0.0
  %2932 = vmatpush1.msra.mxu0 0.0
  %2933 = vmatprep.subr.mxu0 0.0
  %2934 = vmatpush1.msra.mxu0 0.0
  %2935 = vmatprep.subr.mxu0 0.0
  %2936 = vmatpush1.msra.mxu0 0.0
  %2937 = vmatprep.subr.mxu0 0.0
  %2938 = vmatpush1.msra.mxu0 0.0
  %2939 = vmatprep.subr.mxu0 0.0
  %2940 = vmatpush1.msra.mxu0 0.0
  %2941 = vmatprep.subr.mxu0 0.0
  %2942 = vmatpush1.msra.mxu0 0.0
  %2943 = vmatprep.subr.mxu0 0.0
  %2944 = vmatpush1.msra.mxu0 0.0
  %2945 = vmatprep.subr.mxu0 0.0
  %2946 = vmatpush1.msra.mxu0 0.0
  %2947 = vmatprep.subr.mxu0 0.0
  %2948 = vmatpush1.msra.mxu0 0.0
  %2949 = vmatprep.subr.mxu0 0.0
  %2950 = vmatpush1.msra.mxu0 %v2912
  %2951 = vmatprep.subr.mxu0 0.0
  %2952 = vmatpush1.msra.mxu0 %v2910
  %2953 = vmatprep.subr.mxu0 0.0
  %2954 = vmatpush2.msra.mxu0 0.0
  %2955 = vmatprep.subr.mxu0 0.0
  %2956 = vmatpush2.msra.mxu0 0.0
  %2957 = vmatprep.subr.mxu0 0.0
  %2958 = vmatpush2.msra.mxu0 0.0
  %2959 = vmatprep.subr.mxu0 0.0
  %2960 = vmatpush2.msra.mxu0 0.0
  %2961 = vmatprep.subr.mxu0 0.0
  %2962 = vmatpush2.msra.mxu0 0.0
  %2963 = vmatprep.subr.mxu0 0.0
  %2964 = vmatpush2.msra.mxu0 0.0
  %2965 = vmatprep.subr.mxu0 0.0
  %2966 = vmatpush2.msra.mxu0 0.0
  %2967 = vmatprep.subr.mxu0 0.0
  %2968 = vmatpush2.msra.mxu0 0.0
  %2969 = vmatprep.subr.mxu0 0.0
  %2970 = vmatpush2.msra.mxu0 0.0
  %2971 = vmatprep.subr.mxu0 0.0
  %2972 = vmatpush2.msra.mxu0 0.0
  %2973 = vmatprep.subr.mxu0 0.0
  %2974 = vmatpush2.msra.mxu0 0.0
  %2975 = vmatprep.subr.mxu0 0.0
  %2976 = vmatpush2.msra.mxu0 0.0
  %2977 = vmatprep.subr.mxu0 0.0
  %2978 = vmatpush2.msra.mxu0 0.0
  %2979 = vmatprep.subr.mxu0 0.0
  %2980 = vmatpush2.msra.mxu0 0.0
  %2981 = vmatprep.subr.mxu0 0.0
  %2982 = vmatpush2.msra.mxu0 0.0
  %2983 = vmatprep.subr.mxu0 0.0
  %2984 = vmatpush2.msra.mxu0 0.0
  %2985 = vmatprep.mubr.f32.mxu0 0.0
  %2986 = vmatmul.mubr.f32.gmra.mxu0 %v2916
  %v2987 = vpop.f32.mrf.mxu0
  %v2988 = vadd.f32 0.0, %v2987
  %v2989 = vpop.f32.mrf.mxu0
  %2990 = vmatprep.mubr.f32.mxu0 0.0
  %2991 = vmatmul.mubr.f32.gmra.mxu0 %v2919
  %v2992 = vpop.f32.mrf.mxu0
  %v2993 = vadd.f32 0.0, %v2992
  %v2994 = vpop.f32.mrf.mxu0
  %2995 = vdwg.mxu0
  %2996 = vrot.lane.b32.xlu0 %v2592, 120
  %v2997 = vpop.permute.xlu0 %2996
  %2998 = vrot.lane.b32.xlu0 %v2593, 120
  %v2999 = vpop.permute.xlu0 %2998
  %3000 = vrot.lane.b32.xlu0 %v2574, 88
  %v3001 = vpop.permute.xlu0 %3000
  %3002 = vrot.lane.b32.xlu0 %v2579, 88
  %v3003 = vpop.permute.xlu0 %3002
  %v3004 = vsel %vm638, %v2997, 0
  %v3006 = vsel %vm638, %v2999, 0
  %v3008 = vsel %vm638, %v3001, 0
  %v3010 = vsel %vm638, %v3003, 0
  %3012 = vmatprep.subr.mxu0 0.0
  %3013 = vmatpush1.xpose.msra.mxu0 0.0
  %3014 = vmatprep.subr.mxu0 0.0
  %3015 = vmatpush1.xpose.msra.mxu0 0.0
  %3016 = vmatprep.subr.mxu0 0.0
  %3017 = vmatpush1.xpose.msra.mxu0 0.0
  %3018 = vmatprep.subr.mxu0 0.0
  %3019 = vmatpush1.xpose.msra.mxu0 0.0
  %3020 = vmatprep.subr.mxu0 0.0
  %3021 = vmatpush1.xpose.msra.mxu0 0.0
  %3022 = vmatprep.subr.mxu0 0.0
  %3023 = vmatpush1.xpose.msra.mxu0 0.0
  %3024 = vmatprep.subr.mxu0 0.0
  %3025 = vmatpush1.xpose.msra.mxu0 0.0
  %3026 = vmatprep.subr.mxu0 0.0
  %3027 = vmatpush1.xpose.msra.mxu0 0.0
  %3028 = vmatprep.subr.mxu0 0.0
  %3029 = vmatpush1.xpose.msra.mxu0 0.0
  %3030 = vmatprep.subr.mxu0 0.0
  %3031 = vmatpush1.xpose.msra.mxu0 0.0
  %3032 = vmatprep.subr.mxu0 0.0
  %3033 = vmatpush1.xpose.msra.mxu0 0.0
  %3034 = vmatprep.subr.mxu0 0.0
  %3035 = vmatpush1.xpose.msra.mxu0 0.0
  %3036 = vmatprep.subr.mxu0 0.0
  %3037 = vmatpush1.xpose.msra.mxu0 0.0
  %3038 = vmatprep.subr.mxu0 0.0
  %3039 = vmatpush1.xpose.msra.mxu0 0.0
  %3040 = vmatprep.subr.mxu0 0.0
  %3041 = vmatpush1.xpose.msra.mxu0 %v3010
  %3042 = vmatprep.subr.mxu0 0.0
  %3043 = vmatpush1.xpose.msra.mxu0 %v3008
  %3044 = vmatprep.subr.mxu0 0.0
  %3045 = vmatpush2.xpose.msra.mxu0 0.0
  %3046 = vmatprep.subr.mxu0 0.0
  %3047 = vmatpush2.xpose.msra.mxu0 0.0
  %3048 = vmatprep.subr.mxu0 0.0
  %3049 = vmatpush2.xpose.msra.mxu0 0.0
  %3050 = vmatprep.subr.mxu0 0.0
  %3051 = vmatpush2.xpose.msra.mxu0 0.0
  %3052 = vmatprep.subr.mxu0 0.0
  %3053 = vmatpush2.xpose.msra.mxu0 0.0
  %3054 = vmatprep.subr.mxu0 0.0
  %3055 = vmatpush2.xpose.msra.mxu0 0.0
  %3056 = vmatprep.subr.mxu0 0.0
  %3057 = vmatpush2.xpose.msra.mxu0 0.0
  %3058 = vmatprep.subr.mxu0 0.0
  %3059 = vmatpush2.xpose.msra.mxu0 0.0
  %3060 = vmatprep.subr.mxu0 0.0
  %3061 = vmatpush2.xpose.msra.mxu0 0.0
  %3062 = vmatprep.subr.mxu0 0.0
  %3063 = vmatpush2.xpose.msra.mxu0 0.0
  %3064 = vmatprep.subr.mxu0 0.0
  %3065 = vmatpush2.xpose.msra.mxu0 0.0
  %3066 = vmatprep.subr.mxu0 0.0
  %3067 = vmatpush2.xpose.msra.mxu0 0.0
  %3068 = vmatprep.subr.mxu0 0.0
  %3069 = vmatpush2.xpose.msra.mxu0 0.0
  %3070 = vmatprep.subr.mxu0 0.0
  %3071 = vmatpush2.xpose.msra.mxu0 0.0
  %3072 = vmatprep.subr.mxu0 0.0
  %3073 = vmatpush2.xpose.msra.mxu0 0.0
  %3074 = vmatprep.subr.mxu0 0.0
  %3075 = vmatpush2.xpose.msra.mxu0 0.0
  %3076 = vmatprep.mubr.f32.mxu0 0.0
  %3077 = vmatmul.mubr.f32.gmra.mxu0 %v3004
  %v3078 = vpop.f32.mrf.mxu0
  %v3079 = vadd.f32 0.0, %v3078
  %v3080 = vpop.f32.mrf.mxu0
  %3081 = vmatprep.mubr.f32.mxu0 0.0
  %3082 = vmatmul.mubr.f32.gmra.mxu0 %v3006
  %v3083 = vpop.f32.mrf.mxu0
  %v3084 = vadd.f32 0.0, %v3083
  %v3085 = vpop.f32.mrf.mxu0
  %3086 = vdwg.mxu0
  %3087 = vrot.lane.b32.xlu0 %v2594, 120
  %v3088 = vpop.permute.xlu0 %3087
  %3089 = vrot.lane.b32.xlu0 %v2595, 120
  %v3090 = vpop.permute.xlu0 %3089
  %3091 = vrot.lane.b32.xlu0 %v2584, 88
  %v3092 = vpop.permute.xlu0 %3091
  %3093 = vrot.lane.b32.xlu0 %v2589, 88
  %v3094 = vpop.permute.xlu0 %3093
  %v3095 = vsel %vm638, %v3088, 0
  %v3097 = vsel %vm638, %v3090, 0
  %v3099 = vsel %vm638, %v3092, 0
  %v3101 = vsel %vm638, %v3094, 0
  %3103 = vmatprep.subr.mxu0 0.0
  %3104 = vmatpush1.xpose.msra.mxu0 0.0
  %3105 = vmatprep.subr.mxu0 0.0
  %3106 = vmatpush1.xpose.msra.mxu0 0.0
  %3107 = vmatprep.subr.mxu0 0.0
  %3108 = vmatpush1.xpose.msra.mxu0 0.0
  %3109 = vmatprep.subr.mxu0 0.0
  %3110 = vmatpush1.xpose.msra.mxu0 0.0
  %3111 = vmatprep.subr.mxu0 0.0
  %3112 = vmatpush1.xpose.msra.mxu0 0.0
  %3113 = vmatprep.subr.mxu0 0.0
  %3114 = vmatpush1.xpose.msra.mxu0 0.0
  %3115 = vmatprep.subr.mxu0 0.0
  %3116 = vmatpush1.xpose.msra.mxu0 0.0
  %3117 = vmatprep.subr.mxu0 0.0
  %3118 = vmatpush1.xpose.msra.mxu0 0.0
  %3119 = vmatprep.subr.mxu0 0.0
  %3120 = vmatpush1.xpose.msra.mxu0 0.0
  %3121 = vmatprep.subr.mxu0 0.0
  %3122 = vmatpush1.xpose.msra.mxu0 0.0
  %3123 = vmatprep.subr.mxu0 0.0
  %3124 = vmatpush1.xpose.msra.mxu0 0.0
  %3125 = vmatprep.subr.mxu0 0.0
  %3126 = vmatpush1.xpose.msra.mxu0 0.0
  %3127 = vmatprep.subr.mxu0 0.0
  %3128 = vmatpush1.xpose.msra.mxu0 0.0
  %3129 = vmatprep.subr.mxu0 0.0
  %3130 = vmatpush1.xpose.msra.mxu0 0.0
  %3131 = vmatprep.subr.mxu0 0.0
  %3132 = vmatpush1.xpose.msra.mxu0 %v3101
  %3133 = vmatprep.subr.mxu0 0.0
  %3134 = vmatpush1.xpose.msra.mxu0 %v3099
  %3135 = vmatprep.subr.mxu0 0.0
  %3136 = vmatpush2.xpose.msra.mxu0 0.0
  %3137 = vmatprep.subr.mxu0 0.0
  %3138 = vmatpush2.xpose.msra.mxu0 0.0
  %3139 = vmatprep.subr.mxu0 0.0
  %3140 = vmatpush2.xpose.msra.mxu0 0.0
  %3141 = vmatprep.subr.mxu0 0.0
  %3142 = vmatpush2.xpose.msra.mxu0 0.0
  %3143 = vmatprep.subr.mxu0 0.0
  %3144 = vmatpush2.xpose.msra.mxu0 0.0
  %3145 = vmatprep.subr.mxu0 0.0
  %3146 = vmatpush2.xpose.msra.mxu0 0.0
  %3147 = vmatprep.subr.mxu0 0.0
  %3148 = vmatpush2.xpose.msra.mxu0 0.0
  %3149 = vmatprep.subr.mxu0 0.0
  %3150 = vmatpush2.xpose.msra.mxu0 0.0
  %3151 = vmatprep.subr.mxu0 0.0
  %3152 = vmatpush2.xpose.msra.mxu0 0.0
  %3153 = vmatprep.subr.mxu0 0.0
  %3154 = vmatpush2.xpose.msra.mxu0 0.0
  %3155 = vmatprep.subr.mxu0 0.0
  %3156 = vmatpush2.xpose.msra.mxu0 0.0
  %3157 = vmatprep.subr.mxu0 0.0
  %3158 = vmatpush2.xpose.msra.mxu0 0.0
  %3159 = vmatprep.subr.mxu0 0.0
  %3160 = vmatpush2.xpose.msra.mxu0 0.0
  %3161 = vmatprep.subr.mxu0 0.0
  %3162 = vmatpush2.xpose.msra.mxu0 0.0
  %3163 = vmatprep.subr.mxu0 0.0
  %3164 = vmatpush2.xpose.msra.mxu0 0.0
  %3165 = vmatprep.subr.mxu0 0.0
  %3166 = vmatpush2.xpose.msra.mxu0 0.0
  %3167 = vmatprep.mubr.f32.mxu0 0.0
  %3168 = vmatmul.mubr.f32.gmra.mxu0 %v3095
  %v3169 = vpop.f32.mrf.mxu0
  %v3170 = vadd.f32 0.0, %v3169
  %v3171 = vpop.f32.mrf.mxu0
  %3172 = vmatprep.mubr.f32.mxu0 0.0
  %3173 = vmatmul.mubr.f32.gmra.mxu0 %v3097
  %v3174 = vpop.f32.mrf.mxu0
  %v3175 = vadd.f32 0.0, %v3174
  %v3176 = vpop.f32.mrf.mxu0
  %3177 = vdwg.mxu0
  %v3178 = vsel %vm815, %v3079, -inf
  %3179 = vmax.xlane.f32.xlu0 %v3178
  %v3180 = vpop.xlane.xlu0 %3179
  %v3181 = vsel %vm815, %v3084, -inf
  %3182 = vmax.xlane.f32.xlu0 %v3181
  %v3183 = vpop.xlane.xlu0 %3182
  %v3184 = vsel %vm815, %v3170, -inf
  %3185 = vmax.xlane.f32.xlu0 %v3184
  %v3186 = vpop.xlane.xlu0 %3185
  %v3187 = vsel %vm815, %v3175, -inf
  %3188 = vmax.xlane.f32.xlu0 %v3187
  %v3189 = vpop.xlane.xlu0 %3188
  %v3190 = vsub.f32 %v3079, %v3180
  %v3191 = vsub.f32 %v3084, %v3183
  %v3192 = vsub.f32 %v3170, %v3186
  %v3193 = vsub.f32 %v3175, %v3189
  %v3194 = vmul.f32 %v3190, 1.442695
  %v3195 = vpow.pop %v3194
  %v3196 = vmul.f32 %v3191, 1.442695
  %v3197 = vpow.pop %v3196
  %v3198 = vmul.f32 %v3192, 1.442695
  %v3199 = vpow.pop %v3198
  %v3200 = vmul.f32 %v3193, 1.442695
  %v3201 = vpow.pop %v3200
  %v3202 = vsel %vm815, %v3195, 0.0
  %3203 = vadd.xlane.f32.xlu0 %v3202
  %v3204 = vpop.xlane.xlu0 %3203
  %v3205 = vsel %vm815, %v3197, 0.0
  %3206 = vadd.xlane.f32.xlu0 %v3205
  %v3207 = vpop.xlane.xlu0 %3206
  %v3208 = vsel %vm815, %v3199, 0.0
  %3209 = vadd.xlane.f32.xlu0 %v3208
  %v3210 = vpop.xlane.xlu0 %3209
  %v3211 = vsel %vm815, %v3201, 0.0
  %3212 = vadd.xlane.f32.xlu0 %v3211
  %v3213 = vpop.xlane.xlu0 %3212
  %v3214 = vrcp.pop %v3204
  %v3215 = vrcp.pop %v3207
  %v3216 = vrcp.pop %v3210
  %v3217 = vrcp.pop %v3213
  %v3218 = vmul.f32 %v3195, %v3214
  %v3219 = vmul.f32 %v3197, %v3215
  %v3220 = vmul.f32 %v3199, %v3216
  %v3221 = vmul.f32 %v3201, %v3217
  %3222 = vrot.lane.b32.xlu0 %v2574, 56
  %v3223 = vpop.permute.xlu0 %3222
  %3224 = vrot.lane.b32.xlu0 %v2579, 56
  %v3225 = vpop.permute.xlu0 %3224
  %v3229 = vsel %vm815, %v3218, 0
  %v3232 = vsel %vm815, %v3219, 0
  %3234 = vmatprep.subr.mxu0 0.0
  %3235 = vmatpush1.msra.mxu0 0.0
  %3236 = vmatprep.subr.mxu0 0.0
  %3237 = vmatpush1.msra.mxu0 0.0
  %3238 = vmatprep.subr.mxu0 0.0
  %3239 = vmatpush1.msra.mxu0 0.0
  %3240 = vmatprep.subr.mxu0 0.0
  %3241 = vmatpush1.msra.mxu0 0.0
  %3242 = vmatprep.subr.mxu0 0.0
  %3243 = vmatpush1.msra.mxu0 0.0
  %3244 = vmatprep.subr.mxu0 0.0
  %3245 = vmatpush1.msra.mxu0 0.0
  %3246 = vmatprep.subr.mxu0 0.0
  %3247 = vmatpush1.msra.mxu0 0.0
  %3248 = vmatprep.subr.mxu0 0.0
  %3249 = vmatpush1.msra.mxu0 0.0
  %3250 = vmatprep.subr.mxu0 0.0
  %3251 = vmatpush1.msra.mxu0 0.0
  %3252 = vmatprep.subr.mxu0 0.0
  %3253 = vmatpush1.msra.mxu0 0.0
  %3254 = vmatprep.subr.mxu0 0.0
  %3255 = vmatpush1.msra.mxu0 0.0
  %3256 = vmatprep.subr.mxu0 0.0
  %3257 = vmatpush1.msra.mxu0 0.0
  %3258 = vmatprep.subr.mxu0 0.0
  %3259 = vmatpush1.msra.mxu0 0.0
  %3260 = vmatprep.subr.mxu0 0.0
  %3261 = vmatpush1.msra.mxu0 0.0
  %3262 = vmatprep.subr.mxu0 0.0
  %3263 = vmatpush1.msra.mxu0 %v3225
  %3264 = vmatprep.subr.mxu0 0.0
  %3265 = vmatpush1.msra.mxu0 %v3223
  %3266 = vmatprep.subr.mxu0 0.0
  %3267 = vmatpush2.msra.mxu0 0.0
  %3268 = vmatprep.subr.mxu0 0.0
  %3269 = vmatpush2.msra.mxu0 0.0
  %3270 = vmatprep.subr.mxu0 0.0
  %3271 = vmatpush2.msra.mxu0 0.0
  %3272 = vmatprep.subr.mxu0 0.0
  %3273 = vmatpush2.msra.mxu0 0.0
  %3274 = vmatprep.subr.mxu0 0.0
  %3275 = vmatpush2.msra.mxu0 0.0
  %3276 = vmatprep.subr.mxu0 0.0
  %3277 = vmatpush2.msra.mxu0 0.0
  %3278 = vmatprep.subr.mxu0 0.0
  %3279 = vmatpush2.msra.mxu0 0.0
  %3280 = vmatprep.subr.mxu0 0.0
  %3281 = vmatpush2.msra.mxu0 0.0
  %3282 = vmatprep.subr.mxu0 0.0
  %3283 = vmatpush2.msra.mxu0 0.0
  %3284 = vmatprep.subr.mxu0 0.0
  %3285 = vmatpush2.msra.mxu0 0.0
  %3286 = vmatprep.subr.mxu0 0.0
  %3287 = vmatpush2.msra.mxu0 0.0
  %3288 = vmatprep.subr.mxu0 0.0
  %3289 = vmatpush2.msra.mxu0 0.0
  %3290 = vmatprep.subr.mxu0 0.0
  %3291 = vmatpush2.msra.mxu0 0.0
  %3292 = vmatprep.subr.mxu0 0.0
  %3293 = vmatpush2.msra.mxu0 0.0
  %3294 = vmatprep.subr.mxu0 0.0
  %3295 = vmatpush2.msra.mxu0 0.0
  %3296 = vmatprep.subr.mxu0 0.0
  %3297 = vmatpush2.msra.mxu0 0.0
  %3298 = vmatprep.mubr.f32.mxu0 0.0
  %3299 = vmatmul.mubr.f32.gmra.mxu0 %v3229
  %v3300 = vpop.f32.mrf.mxu0
  %v3301 = vadd.f32 0.0, %v3300
  %v3302 = vpop.f32.mrf.mxu0
  %3303 = vmatprep.mubr.f32.mxu0 0.0
  %3304 = vmatmul.mubr.f32.gmra.mxu0 %v3232
  %v3305 = vpop.f32.mrf.mxu0
  %v3306 = vadd.f32 0.0, %v3305
  %v3307 = vpop.f32.mrf.mxu0
  %3308 = vdwg.mxu0
  %3309 = vrot.lane.b32.xlu0 %v2584, 56
  %v3310 = vpop.permute.xlu0 %3309
  %3311 = vrot.lane.b32.xlu0 %v2589, 56
  %v3312 = vpop.permute.xlu0 %3311
  %v3316 = vsel %vm815, %v3220, 0
  %v3319 = vsel %vm815, %v3221, 0
  %3321 = vmatprep.subr.mxu0 0.0
  %3322 = vmatpush1.msra.mxu0 0.0
  %3323 = vmatprep.subr.mxu0 0.0
  %3324 = vmatpush1.msra.mxu0 0.0
  %3325 = vmatprep.subr.mxu0 0.0
  %3326 = vmatpush1.msra.mxu0 0.0
  %3327 = vmatprep.subr.mxu0 0.0
  %3328 = vmatpush1.msra.mxu0 0.0
  %3329 = vmatprep.subr.mxu0 0.0
  %3330 = vmatpush1.msra.mxu0 0.0
  %3331 = vmatprep.subr.mxu0 0.0
  %3332 = vmatpush1.msra.mxu0 0.0
  %3333 = vmatprep.subr.mxu0 0.0
  %3334 = vmatpush1.msra.mxu0 0.0
  %3335 = vmatprep.subr.mxu0 0.0
  %3336 = vmatpush1.msra.mxu0 0.0
  %3337 = vmatprep.subr.mxu0 0.0
  %3338 = vmatpush1.msra.mxu0 0.0
  %3339 = vmatprep.subr.mxu0 0.0
  %3340 = vmatpush1.msra.mxu0 0.0
  %3341 = vmatprep.subr.mxu0 0.0
  %3342 = vmatpush1.msra.mxu0 0.0
  %3343 = vmatprep.subr.mxu0 0.0
  %3344 = vmatpush1.msra.mxu0 0.0
  %3345 = vmatprep.subr.mxu0 0.0
  %3346 = vmatpush1.msra.mxu0 0.0
  %3347 = vmatprep.subr.mxu0 0.0
  %3348 = vmatpush1.msra.mxu0 0.0
  %3349 = vmatprep.subr.mxu0 0.0
  %3350 = vmatpush1.msra.mxu0 %v3312
  %3351 = vmatprep.subr.mxu0 0.0
  %3352 = vmatpush1.msra.mxu0 %v3310
  %3353 = vmatprep.subr.mxu0 0.0
  %3354 = vmatpush2.msra.mxu0 0.0
  %3355 = vmatprep.subr.mxu0 0.0
  %3356 = vmatpush2.msra.mxu0 0.0
  %3357 = vmatprep.subr.mxu0 0.0
  %3358 = vmatpush2.msra.mxu0 0.0
  %3359 = vmatprep.subr.mxu0 0.0
  %3360 = vmatpush2.msra.mxu0 0.0
  %3361 = vmatprep.subr.mxu0 0.0
  %3362 = vmatpush2.msra.mxu0 0.0
  %3363 = vmatprep.subr.mxu0 0.0
  %3364 = vmatpush2.msra.mxu0 0.0
  %3365 = vmatprep.subr.mxu0 0.0
  %3366 = vmatpush2.msra.mxu0 0.0
  %3367 = vmatprep.subr.mxu0 0.0
  %3368 = vmatpush2.msra.mxu0 0.0
  %3369 = vmatprep.subr.mxu0 0.0
  %3370 = vmatpush2.msra.mxu0 0.0
  %3371 = vmatprep.subr.mxu0 0.0
  %3372 = vmatpush2.msra.mxu0 0.0
  %3373 = vmatprep.subr.mxu0 0.0
  %3374 = vmatpush2.msra.mxu0 0.0
  %3375 = vmatprep.subr.mxu0 0.0
  %3376 = vmatpush2.msra.mxu0 0.0
  %3377 = vmatprep.subr.mxu0 0.0
  %3378 = vmatpush2.msra.mxu0 0.0
  %3379 = vmatprep.subr.mxu0 0.0
  %3380 = vmatpush2.msra.mxu0 0.0
  %3381 = vmatprep.subr.mxu0 0.0
  %3382 = vmatpush2.msra.mxu0 0.0
  %3383 = vmatprep.subr.mxu0 0.0
  %3384 = vmatpush2.msra.mxu0 0.0
  %3385 = vmatprep.mubr.f32.mxu0 0.0
  %3386 = vmatmul.mubr.f32.gmra.mxu0 %v3316
  %v3387 = vpop.f32.mrf.mxu0
  %v3388 = vadd.f32 0.0, %v3387
  %v3389 = vpop.f32.mrf.mxu0
  %3390 = vmatprep.mubr.f32.mxu0 0.0
  %3391 = vmatmul.mubr.f32.gmra.mxu0 %v3319
  %v3392 = vpop.f32.mrf.mxu0
  %v3393 = vadd.f32 0.0, %v3392
  %v3394 = vpop.f32.mrf.mxu0
  %3395 = vdwg.mxu0
  %3396 = vrot.lane.b32.xlu0 %v2592, 112
  %v3397 = vpop.permute.xlu0 %3396
  %3398 = vrot.lane.b32.xlu0 %v2593, 112
  %v3399 = vpop.permute.xlu0 %3398
  %3400 = vrot.lane.b32.xlu0 %v2574, 80
  %v3401 = vpop.permute.xlu0 %3400
  %3402 = vrot.lane.b32.xlu0 %v2579, 80
  %v3403 = vpop.permute.xlu0 %3402
  %v3404 = vsel %vm638, %v3397, 0
  %v3406 = vsel %vm638, %v3399, 0
  %v3408 = vsel %vm638, %v3401, 0
  %v3410 = vsel %vm638, %v3403, 0
  %3412 = vmatprep.subr.mxu0 0.0
  %3413 = vmatpush1.xpose.msra.mxu0 0.0
  %3414 = vmatprep.subr.mxu0 0.0
  %3415 = vmatpush1.xpose.msra.mxu0 0.0
  %3416 = vmatprep.subr.mxu0 0.0
  %3417 = vmatpush1.xpose.msra.mxu0 0.0
  %3418 = vmatprep.subr.mxu0 0.0
  %3419 = vmatpush1.xpose.msra.mxu0 0.0
  %3420 = vmatprep.subr.mxu0 0.0
  %3421 = vmatpush1.xpose.msra.mxu0 0.0
  %3422 = vmatprep.subr.mxu0 0.0
  %3423 = vmatpush1.xpose.msra.mxu0 0.0
  %3424 = vmatprep.subr.mxu0 0.0
  %3425 = vmatpush1.xpose.msra.mxu0 0.0
  %3426 = vmatprep.subr.mxu0 0.0
  %3427 = vmatpush1.xpose.msra.mxu0 0.0
  %3428 = vmatprep.subr.mxu0 0.0
  %3429 = vmatpush1.xpose.msra.mxu0 0.0
  %3430 = vmatprep.subr.mxu0 0.0
  %3431 = vmatpush1.xpose.msra.mxu0 0.0
  %3432 = vmatprep.subr.mxu0 0.0
  %3433 = vmatpush1.xpose.msra.mxu0 0.0
  %3434 = vmatprep.subr.mxu0 0.0
  %3435 = vmatpush1.xpose.msra.mxu0 0.0
  %3436 = vmatprep.subr.mxu0 0.0
  %3437 = vmatpush1.xpose.msra.mxu0 0.0
  %3438 = vmatprep.subr.mxu0 0.0
  %3439 = vmatpush1.xpose.msra.mxu0 0.0
  %3440 = vmatprep.subr.mxu0 0.0
  %3441 = vmatpush1.xpose.msra.mxu0 %v3410
  %3442 = vmatprep.subr.mxu0 0.0
  %3443 = vmatpush1.xpose.msra.mxu0 %v3408
  %3444 = vmatprep.subr.mxu0 0.0
  %3445 = vmatpush2.xpose.msra.mxu0 0.0
  %3446 = vmatprep.subr.mxu0 0.0
  %3447 = vmatpush2.xpose.msra.mxu0 0.0
  %3448 = vmatprep.subr.mxu0 0.0
  %3449 = vmatpush2.xpose.msra.mxu0 0.0
  %3450 = vmatprep.subr.mxu0 0.0
  %3451 = vmatpush2.xpose.msra.mxu0 0.0
  %3452 = vmatprep.subr.mxu0 0.0
  %3453 = vmatpush2.xpose.msra.mxu0 0.0
  %3454 = vmatprep.subr.mxu0 0.0
  %3455 = vmatpush2.xpose.msra.mxu0 0.0
  %3456 = vmatprep.subr.mxu0 0.0
  %3457 = vmatpush2.xpose.msra.mxu0 0.0
  %3458 = vmatprep.subr.mxu0 0.0
  %3459 = vmatpush2.xpose.msra.mxu0 0.0
  %3460 = vmatprep.subr.mxu0 0.0
  %3461 = vmatpush2.xpose.msra.mxu0 0.0
  %3462 = vmatprep.subr.mxu0 0.0
  %3463 = vmatpush2.xpose.msra.mxu0 0.0
  %3464 = vmatprep.subr.mxu0 0.0
  %3465 = vmatpush2.xpose.msra.mxu0 0.0
  %3466 = vmatprep.subr.mxu0 0.0
  %3467 = vmatpush2.xpose.msra.mxu0 0.0
  %3468 = vmatprep.subr.mxu0 0.0
  %3469 = vmatpush2.xpose.msra.mxu0 0.0
  %3470 = vmatprep.subr.mxu0 0.0
  %3471 = vmatpush2.xpose.msra.mxu0 0.0
  %3472 = vmatprep.subr.mxu0 0.0
  %3473 = vmatpush2.xpose.msra.mxu0 0.0
  %3474 = vmatprep.subr.mxu0 0.0
  %3475 = vmatpush2.xpose.msra.mxu0 0.0
  %3476 = vmatprep.mubr.f32.mxu0 0.0
  %3477 = vmatmul.mubr.f32.gmra.mxu0 %v3404
  %v3478 = vpop.f32.mrf.mxu0
  %v3479 = vadd.f32 0.0, %v3478
  %v3480 = vpop.f32.mrf.mxu0
  %3481 = vmatprep.mubr.f32.mxu0 0.0
  %3482 = vmatmul.mubr.f32.gmra.mxu0 %v3406
  %v3483 = vpop.f32.mrf.mxu0
  %v3484 = vadd.f32 0.0, %v3483
  %v3485 = vpop.f32.mrf.mxu0
  %3486 = vdwg.mxu0
  %3487 = vrot.lane.b32.xlu0 %v2594, 112
  %v3488 = vpop.permute.xlu0 %3487
  %3489 = vrot.lane.b32.xlu0 %v2595, 112
  %v3490 = vpop.permute.xlu0 %3489
  %3491 = vrot.lane.b32.xlu0 %v2584, 80
  %v3492 = vpop.permute.xlu0 %3491
  %3493 = vrot.lane.b32.xlu0 %v2589, 80
  %v3494 = vpop.permute.xlu0 %3493
  %v3495 = vsel %vm638, %v3488, 0
  %v3497 = vsel %vm638, %v3490, 0
  %v3499 = vsel %vm638, %v3492, 0
  %v3501 = vsel %vm638, %v3494, 0
  %3503 = vmatprep.subr.mxu0 0.0
  %3504 = vmatpush1.xpose.msra.mxu0 0.0
  %3505 = vmatprep.subr.mxu0 0.0
  %3506 = vmatpush1.xpose.msra.mxu0 0.0
  %3507 = vmatprep.subr.mxu0 0.0
  %3508 = vmatpush1.xpose.msra.mxu0 0.0
  %3509 = vmatprep.subr.mxu0 0.0
  %3510 = vmatpush1.xpose.msra.mxu0 0.0
  %3511 = vmatprep.subr.mxu0 0.0
  %3512 = vmatpush1.xpose.msra.mxu0 0.0
  %3513 = vmatprep.subr.mxu0 0.0
  %3514 = vmatpush1.xpose.msra.mxu0 0.0
  %3515 = vmatprep.subr.mxu0 0.0
  %3516 = vmatpush1.xpose.msra.mxu0 0.0
  %3517 = vmatprep.subr.mxu0 0.0
  %3518 = vmatpush1.xpose.msra.mxu0 0.0
  %3519 = vmatprep.subr.mxu0 0.0
  %3520 = vmatpush1.xpose.msra.mxu0 0.0
  %3521 = vmatprep.subr.mxu0 0.0
  %3522 = vmatpush1.xpose.msra.mxu0 0.0
  %3523 = vmatprep.subr.mxu0 0.0
  %3524 = vmatpush1.xpose.msra.mxu0 0.0
  %3525 = vmatprep.subr.mxu0 0.0
  %3526 = vmatpush1.xpose.msra.mxu0 0.0
  %3527 = vmatprep.subr.mxu0 0.0
  %3528 = vmatpush1.xpose.msra.mxu0 0.0
  %3529 = vmatprep.subr.mxu0 0.0
  %3530 = vmatpush1.xpose.msra.mxu0 0.0
  %3531 = vmatprep.subr.mxu0 0.0
  %3532 = vmatpush1.xpose.msra.mxu0 %v3501
  %3533 = vmatprep.subr.mxu0 0.0
  %3534 = vmatpush1.xpose.msra.mxu0 %v3499
  %3535 = vmatprep.subr.mxu0 0.0
  %3536 = vmatpush2.xpose.msra.mxu0 0.0
  %3537 = vmatprep.subr.mxu0 0.0
  %3538 = vmatpush2.xpose.msra.mxu0 0.0
  %3539 = vmatprep.subr.mxu0 0.0
  %3540 = vmatpush2.xpose.msra.mxu0 0.0
  %3541 = vmatprep.subr.mxu0 0.0
  %3542 = vmatpush2.xpose.msra.mxu0 0.0
  %3543 = vmatprep.subr.mxu0 0.0
  %3544 = vmatpush2.xpose.msra.mxu0 0.0
  %3545 = vmatprep.subr.mxu0 0.0
  %3546 = vmatpush2.xpose.msra.mxu0 0.0
  %3547 = vmatprep.subr.mxu0 0.0
  %3548 = vmatpush2.xpose.msra.mxu0 0.0
  %3549 = vmatprep.subr.mxu0 0.0
  %3550 = vmatpush2.xpose.msra.mxu0 0.0
  %3551 = vmatprep.subr.mxu0 0.0
  %3552 = vmatpush2.xpose.msra.mxu0 0.0
  %3553 = vmatprep.subr.mxu0 0.0
  %3554 = vmatpush2.xpose.msra.mxu0 0.0
  %3555 = vmatprep.subr.mxu0 0.0
  %3556 = vmatpush2.xpose.msra.mxu0 0.0
  %3557 = vmatprep.subr.mxu0 0.0
  %3558 = vmatpush2.xpose.msra.mxu0 0.0
  %3559 = vmatprep.subr.mxu0 0.0
  %3560 = vmatpush2.xpose.msra.mxu0 0.0
  %3561 = vmatprep.subr.mxu0 0.0
  %3562 = vmatpush2.xpose.msra.mxu0 0.0
  %3563 = vmatprep.subr.mxu0 0.0
  %3564 = vmatpush2.xpose.msra.mxu0 0.0
  %3565 = vmatprep.subr.mxu0 0.0
  %3566 = vmatpush2.xpose.msra.mxu0 0.0
  %3567 = vmatprep.mubr.f32.mxu0 0.0
  %3568 = vmatmul.mubr.f32.gmra.mxu0 %v3495
  %v3569 = vpop.f32.mrf.mxu0
  %v3570 = vadd.f32 0.0, %v3569
  %v3571 = vpop.f32.mrf.mxu0
  %3572 = vmatprep.mubr.f32.mxu0 0.0
  %3573 = vmatmul.mubr.f32.gmra.mxu0 %v3497
  %v3574 = vpop.f32.mrf.mxu0
  %v3575 = vadd.f32 0.0, %v3574
  %v3576 = vpop.f32.mrf.mxu0
  %3577 = vdwg.mxu0
  %v3578 = vsel %vm815, %v3479, -inf
  %3579 = vmax.xlane.f32.xlu0 %v3578
  %v3580 = vpop.xlane.xlu0 %3579
  %v3581 = vsel %vm815, %v3484, -inf
  %3582 = vmax.xlane.f32.xlu0 %v3581
  %v3583 = vpop.xlane.xlu0 %3582
  %v3584 = vsel %vm815, %v3570, -inf
  %3585 = vmax.xlane.f32.xlu0 %v3584
  %v3586 = vpop.xlane.xlu0 %3585
  %v3587 = vsel %vm815, %v3575, -inf
  %3588 = vmax.xlane.f32.xlu0 %v3587
  %v3589 = vpop.xlane.xlu0 %3588
  %v3590 = vsub.f32 %v3479, %v3580
  %v3591 = vsub.f32 %v3484, %v3583
  %v3592 = vsub.f32 %v3570, %v3586
  %v3593 = vsub.f32 %v3575, %v3589
  %v3594 = vmul.f32 %v3590, 1.442695
  %v3595 = vpow.pop %v3594
  %v3596 = vmul.f32 %v3591, 1.442695
  %v3597 = vpow.pop %v3596
  %v3598 = vmul.f32 %v3592, 1.442695
  %v3599 = vpow.pop %v3598
  %v3600 = vmul.f32 %v3593, 1.442695
  %v3601 = vpow.pop %v3600
  %v3602 = vsel %vm815, %v3595, 0.0
  %3603 = vadd.xlane.f32.xlu0 %v3602
  %v3604 = vpop.xlane.xlu0 %3603
  %v3605 = vsel %vm815, %v3597, 0.0
  %3606 = vadd.xlane.f32.xlu0 %v3605
  %v3607 = vpop.xlane.xlu0 %3606
  %v3608 = vsel %vm815, %v3599, 0.0
  %3609 = vadd.xlane.f32.xlu0 %v3608
  %v3610 = vpop.xlane.xlu0 %3609
  %v3611 = vsel %vm815, %v3601, 0.0
  %3612 = vadd.xlane.f32.xlu0 %v3611
  %v3613 = vpop.xlane.xlu0 %3612
  %v3614 = vrcp.pop %v3604
  %v3615 = vrcp.pop %v3607
  %v3616 = vrcp.pop %v3610
  %v3617 = vrcp.pop %v3613
  %v3618 = vmul.f32 %v3595, %v3614
  %v3619 = vmul.f32 %v3597, %v3615
  %v3620 = vmul.f32 %v3599, %v3616
  %v3621 = vmul.f32 %v3601, %v3617
  %3622 = vrot.lane.b32.xlu0 %v2574, 48
  %v3623 = vpop.permute.xlu0 %3622
  %3624 = vrot.lane.b32.xlu0 %v2579, 48
  %v3625 = vpop.permute.xlu0 %3624
  %v3629 = vsel %vm815, %v3618, 0
  %v3632 = vsel %vm815, %v3619, 0
  %3634 = vmatprep.subr.mxu0 0.0
  %3635 = vmatpush1.msra.mxu0 0.0
  %3636 = vmatprep.subr.mxu0 0.0
  %3637 = vmatpush1.msra.mxu0 0.0
  %3638 = vmatprep.subr.mxu0 0.0
  %3639 = vmatpush1.msra.mxu0 0.0
  %3640 = vmatprep.subr.mxu0 0.0
  %3641 = vmatpush1.msra.mxu0 0.0
  %3642 = vmatprep.subr.mxu0 0.0
  %3643 = vmatpush1.msra.mxu0 0.0
  %3644 = vmatprep.subr.mxu0 0.0
  %3645 = vmatpush1.msra.mxu0 0.0
  %3646 = vmatprep.subr.mxu0 0.0
  %3647 = vmatpush1.msra.mxu0 0.0
  %3648 = vmatprep.subr.mxu0 0.0
  %3649 = vmatpush1.msra.mxu0 0.0
  %3650 = vmatprep.subr.mxu0 0.0
  %3651 = vmatpush1.msra.mxu0 0.0
  %3652 = vmatprep.subr.mxu0 0.0
  %3653 = vmatpush1.msra.mxu0 0.0
  %3654 = vmatprep.subr.mxu0 0.0
  %3655 = vmatpush1.msra.mxu0 0.0
  %3656 = vmatprep.subr.mxu0 0.0
  %3657 = vmatpush1.msra.mxu0 0.0
  %3658 = vmatprep.subr.mxu0 0.0
  %3659 = vmatpush1.msra.mxu0 0.0
  %3660 = vmatprep.subr.mxu0 0.0
  %3661 = vmatpush1.msra.mxu0 0.0
  %3662 = vmatprep.subr.mxu0 0.0
  %3663 = vmatpush1.msra.mxu0 %v3625
  %3664 = vmatprep.subr.mxu0 0.0
  %3665 = vmatpush1.msra.mxu0 %v3623
  %3666 = vmatprep.subr.mxu0 0.0
  %3667 = vmatpush2.msra.mxu0 0.0
  %3668 = vmatprep.subr.mxu0 0.0
  %3669 = vmatpush2.msra.mxu0 0.0
  %3670 = vmatprep.subr.mxu0 0.0
  %3671 = vmatpush2.msra.mxu0 0.0
  %3672 = vmatprep.subr.mxu0 0.0
  %3673 = vmatpush2.msra.mxu0 0.0
  %3674 = vmatprep.subr.mxu0 0.0
  %3675 = vmatpush2.msra.mxu0 0.0
  %3676 = vmatprep.subr.mxu0 0.0
  %3677 = vmatpush2.msra.mxu0 0.0
  %3678 = vmatprep.subr.mxu0 0.0
  %3679 = vmatpush2.msra.mxu0 0.0
  %3680 = vmatprep.subr.mxu0 0.0
  %3681 = vmatpush2.msra.mxu0 0.0
  %3682 = vmatprep.subr.mxu0 0.0
  %3683 = vmatpush2.msra.mxu0 0.0
  %3684 = vmatprep.subr.mxu0 0.0
  %3685 = vmatpush2.msra.mxu0 0.0
  %3686 = vmatprep.subr.mxu0 0.0
  %3687 = vmatpush2.msra.mxu0 0.0
  %3688 = vmatprep.subr.mxu0 0.0
  %3689 = vmatpush2.msra.mxu0 0.0
  %3690 = vmatprep.subr.mxu0 0.0
  %3691 = vmatpush2.msra.mxu0 0.0
  %3692 = vmatprep.subr.mxu0 0.0
  %3693 = vmatpush2.msra.mxu0 0.0
  %3694 = vmatprep.subr.mxu0 0.0
  %3695 = vmatpush2.msra.mxu0 0.0
  %3696 = vmatprep.subr.mxu0 0.0
  %3697 = vmatpush2.msra.mxu0 0.0
  %3698 = vmatprep.mubr.f32.mxu0 0.0
  %3699 = vmatmul.mubr.f32.gmra.mxu0 %v3629
  %v3700 = vpop.f32.mrf.mxu0
  %v3701 = vadd.f32 0.0, %v3700
  %v3702 = vpop.f32.mrf.mxu0
  %3703 = vmatprep.mubr.f32.mxu0 0.0
  %3704 = vmatmul.mubr.f32.gmra.mxu0 %v3632
  %v3705 = vpop.f32.mrf.mxu0
  %v3706 = vadd.f32 0.0, %v3705
  %v3707 = vpop.f32.mrf.mxu0
  %3708 = vdwg.mxu0
  %3709 = vrot.lane.b32.xlu0 %v2584, 48
  %v3710 = vpop.permute.xlu0 %3709
  %3711 = vrot.lane.b32.xlu0 %v2589, 48
  %v3712 = vpop.permute.xlu0 %3711
  %v3716 = vsel %vm815, %v3620, 0
  %v3719 = vsel %vm815, %v3621, 0
  %3721 = vmatprep.subr.mxu0 0.0
  %3722 = vmatpush1.msra.mxu0 0.0
  %3723 = vmatprep.subr.mxu0 0.0
  %3724 = vmatpush1.msra.mxu0 0.0
  %3725 = vmatprep.subr.mxu0 0.0
  %3726 = vmatpush1.msra.mxu0 0.0
  %3727 = vmatprep.subr.mxu0 0.0
  %3728 = vmatpush1.msra.mxu0 0.0
  %3729 = vmatprep.subr.mxu0 0.0
  %3730 = vmatpush1.msra.mxu0 0.0
  %3731 = vmatprep.subr.mxu0 0.0
  %3732 = vmatpush1.msra.mxu0 0.0
  %3733 = vmatprep.subr.mxu0 0.0
  %3734 = vmatpush1.msra.mxu0 0.0
  %3735 = vmatprep.subr.mxu0 0.0
  %3736 = vmatpush1.msra.mxu0 0.0
  %3737 = vmatprep.subr.mxu0 0.0
  %3738 = vmatpush1.msra.mxu0 0.0
  %3739 = vmatprep.subr.mxu0 0.0
  %3740 = vmatpush1.msra.mxu0 0.0
  %3741 = vmatprep.subr.mxu0 0.0
  %3742 = vmatpush1.msra.mxu0 0.0
  %3743 = vmatprep.subr.mxu0 0.0
  %3744 = vmatpush1.msra.mxu0 0.0
  %3745 = vmatprep.subr.mxu0 0.0
  %3746 = vmatpush1.msra.mxu0 0.0
  %3747 = vmatprep.subr.mxu0 0.0
  %3748 = vmatpush1.msra.mxu0 0.0
  %3749 = vmatprep.subr.mxu0 0.0
  %3750 = vmatpush1.msra.mxu0 %v3712
  %3751 = vmatprep.subr.mxu0 0.0
  %3752 = vmatpush1.msra.mxu0 %v3710
  %3753 = vmatprep.subr.mxu0 0.0
  %3754 = vmatpush2.msra.mxu0 0.0
  %3755 = vmatprep.subr.mxu0 0.0
  %3756 = vmatpush2.msra.mxu0 0.0
  %3757 = vmatprep.subr.mxu0 0.0
  %3758 = vmatpush2.msra.mxu0 0.0
  %3759 = vmatprep.subr.mxu0 0.0
  %3760 = vmatpush2.msra.mxu0 0.0
  %3761 = vmatprep.subr.mxu0 0.0
  %3762 = vmatpush2.msra.mxu0 0.0
  %3763 = vmatprep.subr.mxu0 0.0
  %3764 = vmatpush2.msra.mxu0 0.0
  %3765 = vmatprep.subr.mxu0 0.0
  %3766 = vmatpush2.msra.mxu0 0.0
  %3767 = vmatprep.subr.mxu0 0.0
  %3768 = vmatpush2.msra.mxu0 0.0
  %3769 = vmatprep.subr.mxu0 0.0
  %3770 = vmatpush2.msra.mxu0 0.0
  %3771 = vmatprep.subr.mxu0 0.0
  %3772 = vmatpush2.msra.mxu0 0.0
  %3773 = vmatprep.subr.mxu0 0.0
  %3774 = vmatpush2.msra.mxu0 0.0
  %3775 = vmatprep.subr.mxu0 0.0
  %3776 = vmatpush2.msra.mxu0 0.0
  %3777 = vmatprep.subr.mxu0 0.0
  %3778 = vmatpush2.msra.mxu0 0.0
  %3779 = vmatprep.subr.mxu0 0.0
  %3780 = vmatpush2.msra.mxu0 0.0
  %3781 = vmatprep.subr.mxu0 0.0
  %3782 = vmatpush2.msra.mxu0 0.0
  %3783 = vmatprep.subr.mxu0 0.0
  %3784 = vmatpush2.msra.mxu0 0.0
  %3785 = vmatprep.mubr.f32.mxu0 0.0
  %3786 = vmatmul.mubr.f32.gmra.mxu0 %v3716
  %v3787 = vpop.f32.mrf.mxu0
  %v3788 = vadd.f32 0.0, %v3787
  %v3789 = vpop.f32.mrf.mxu0
  %3790 = vmatprep.mubr.f32.mxu0 0.0
  %3791 = vmatmul.mubr.f32.gmra.mxu0 %v3719
  %v3792 = vpop.f32.mrf.mxu0
  %v3793 = vadd.f32 0.0, %v3792
  %v3794 = vpop.f32.mrf.mxu0
  %3795 = vdwg.mxu0
  %3796 = vrot.lane.b32.xlu0 %v2592, 104
  %v3797 = vpop.permute.xlu0 %3796
  %3798 = vrot.lane.b32.xlu0 %v2593, 104
  %v3799 = vpop.permute.xlu0 %3798
  %3800 = vrot.lane.b32.xlu0 %v2574, 72
  %v3801 = vpop.permute.xlu0 %3800
  %3802 = vrot.lane.b32.xlu0 %v2579, 72
  %v3803 = vpop.permute.xlu0 %3802
  %v3804 = vsel %vm638, %v3797, 0
  %v3806 = vsel %vm638, %v3799, 0
  %v3808 = vsel %vm638, %v3801, 0
  %v3810 = vsel %vm638, %v3803, 0
  %3812 = vmatprep.subr.mxu0 0.0
  %3813 = vmatpush1.xpose.msra.mxu0 0.0
  %3814 = vmatprep.subr.mxu0 0.0
  %3815 = vmatpush1.xpose.msra.mxu0 0.0
  %3816 = vmatprep.subr.mxu0 0.0
  %3817 = vmatpush1.xpose.msra.mxu0 0.0
  %3818 = vmatprep.subr.mxu0 0.0
  %3819 = vmatpush1.xpose.msra.mxu0 0.0
  %3820 = vmatprep.subr.mxu0 0.0
  %3821 = vmatpush1.xpose.msra.mxu0 0.0
  %3822 = vmatprep.subr.mxu0 0.0
  %3823 = vmatpush1.xpose.msra.mxu0 0.0
  %3824 = vmatprep.subr.mxu0 0.0
  %3825 = vmatpush1.xpose.msra.mxu0 0.0
  %3826 = vmatprep.subr.mxu0 0.0
  %3827 = vmatpush1.xpose.msra.mxu0 0.0
  %3828 = vmatprep.subr.mxu0 0.0
  %3829 = vmatpush1.xpose.msra.mxu0 0.0
  %3830 = vmatprep.subr.mxu0 0.0
  %3831 = vmatpush1.xpose.msra.mxu0 0.0
  %3832 = vmatprep.subr.mxu0 0.0
  %3833 = vmatpush1.xpose.msra.mxu0 0.0
  %3834 = vmatprep.subr.mxu0 0.0
  %3835 = vmatpush1.xpose.msra.mxu0 0.0
  %3836 = vmatprep.subr.mxu0 0.0
  %3837 = vmatpush1.xpose.msra.mxu0 0.0
  %3838 = vmatprep.subr.mxu0 0.0
  %3839 = vmatpush1.xpose.msra.mxu0 0.0
  %3840 = vmatprep.subr.mxu0 0.0
  %3841 = vmatpush1.xpose.msra.mxu0 %v3810
  %3842 = vmatprep.subr.mxu0 0.0
  %3843 = vmatpush1.xpose.msra.mxu0 %v3808
  %3844 = vmatprep.subr.mxu0 0.0
  %3845 = vmatpush2.xpose.msra.mxu0 0.0
  %3846 = vmatprep.subr.mxu0 0.0
  %3847 = vmatpush2.xpose.msra.mxu0 0.0
  %3848 = vmatprep.subr.mxu0 0.0
  %3849 = vmatpush2.xpose.msra.mxu0 0.0
  %3850 = vmatprep.subr.mxu0 0.0
  %3851 = vmatpush2.xpose.msra.mxu0 0.0
  %3852 = vmatprep.subr.mxu0 0.0
  %3853 = vmatpush2.xpose.msra.mxu0 0.0
  %3854 = vmatprep.subr.mxu0 0.0
  %3855 = vmatpush2.xpose.msra.mxu0 0.0
  %3856 = vmatprep.subr.mxu0 0.0
  %3857 = vmatpush2.xpose.msra.mxu0 0.0
  %3858 = vmatprep.subr.mxu0 0.0
  %3859 = vmatpush2.xpose.msra.mxu0 0.0
  %3860 = vmatprep.subr.mxu0 0.0
  %3861 = vmatpush2.xpose.msra.mxu0 0.0
  %3862 = vmatprep.subr.mxu0 0.0
  %3863 = vmatpush2.xpose.msra.mxu0 0.0
  %3864 = vmatprep.subr.mxu0 0.0
  %3865 = vmatpush2.xpose.msra.mxu0 0.0
  %3866 = vmatprep.subr.mxu0 0.0
  %3867 = vmatpush2.xpose.msra.mxu0 0.0
  %3868 = vmatprep.subr.mxu0 0.0
  %3869 = vmatpush2.xpose.msra.mxu0 0.0
  %3870 = vmatprep.subr.mxu0 0.0
  %3871 = vmatpush2.xpose.msra.mxu0 0.0
  %3872 = vmatprep.subr.mxu0 0.0
  %3873 = vmatpush2.xpose.msra.mxu0 0.0
  %3874 = vmatprep.subr.mxu0 0.0
  %3875 = vmatpush2.xpose.msra.mxu0 0.0
  %3876 = vmatprep.mubr.f32.mxu0 0.0
  %3877 = vmatmul.mubr.f32.gmra.mxu0 %v3804
  %v3878 = vpop.f32.mrf.mxu0
  %v3879 = vadd.f32 0.0, %v3878
  %v3880 = vpop.f32.mrf.mxu0
  %3881 = vmatprep.mubr.f32.mxu0 0.0
  %3882 = vmatmul.mubr.f32.gmra.mxu0 %v3806
  %v3883 = vpop.f32.mrf.mxu0
  %v3884 = vadd.f32 0.0, %v3883
  %v3885 = vpop.f32.mrf.mxu0
  %3886 = vdwg.mxu0
  %3887 = vrot.lane.b32.xlu0 %v2594, 104
  %v3888 = vpop.permute.xlu0 %3887
  %3889 = vrot.lane.b32.xlu0 %v2595, 104
  %v3890 = vpop.permute.xlu0 %3889
  %3891 = vrot.lane.b32.xlu0 %v2584, 72
  %v3892 = vpop.permute.xlu0 %3891
  %3893 = vrot.lane.b32.xlu0 %v2589, 72
  %v3894 = vpop.permute.xlu0 %3893
  %v3895 = vsel %vm638, %v3888, 0
  %v3897 = vsel %vm638, %v3890, 0
  %v3899 = vsel %vm638, %v3892, 0
  %v3901 = vsel %vm638, %v3894, 0
  %3903 = vmatprep.subr.mxu0 0.0
  %3904 = vmatpush1.xpose.msra.mxu0 0.0
  %3905 = vmatprep.subr.mxu0 0.0
  %3906 = vmatpush1.xpose.msra.mxu0 0.0
  %3907 = vmatprep.subr.mxu0 0.0
  %3908 = vmatpush1.xpose.msra.mxu0 0.0
  %3909 = vmatprep.subr.mxu0 0.0
  %3910 = vmatpush1.xpose.msra.mxu0 0.0
  %3911 = vmatprep.subr.mxu0 0.0
  %3912 = vmatpush1.xpose.msra.mxu0 0.0
  %3913 = vmatprep.subr.mxu0 0.0
  %3914 = vmatpush1.xpose.msra.mxu0 0.0
  %3915 = vmatprep.subr.mxu0 0.0
  %3916 = vmatpush1.xpose.msra.mxu0 0.0
  %3917 = vmatprep.subr.mxu0 0.0
  %3918 = vmatpush1.xpose.msra.mxu0 0.0
  %3919 = vmatprep.subr.mxu0 0.0
  %3920 = vmatpush1.xpose.msra.mxu0 0.0
  %3921 = vmatprep.subr.mxu0 0.0
  %3922 = vmatpush1.xpose.msra.mxu0 0.0
  %3923 = vmatprep.subr.mxu0 0.0
  %3924 = vmatpush1.xpose.msra.mxu0 0.0
  %3925 = vmatprep.subr.mxu0 0.0
  %3926 = vmatpush1.xpose.msra.mxu0 0.0
  %3927 = vmatprep.subr.mxu0 0.0
  %3928 = vmatpush1.xpose.msra.mxu0 0.0
  %3929 = vmatprep.subr.mxu0 0.0
  %3930 = vmatpush1.xpose.msra.mxu0 0.0
  %3931 = vmatprep.subr.mxu0 0.0
  %3932 = vmatpush1.xpose.msra.mxu0 %v3901
  %3933 = vmatprep.subr.mxu0 0.0
  %3934 = vmatpush1.xpose.msra.mxu0 %v3899
  %3935 = vmatprep.subr.mxu0 0.0
  %3936 = vmatpush2.xpose.msra.mxu0 0.0
  %3937 = vmatprep.subr.mxu0 0.0
  %3938 = vmatpush2.xpose.msra.mxu0 0.0
  %3939 = vmatprep.subr.mxu0 0.0
  %3940 = vmatpush2.xpose.msra.mxu0 0.0
  %3941 = vmatprep.subr.mxu0 0.0
  %3942 = vmatpush2.xpose.msra.mxu0 0.0
  %3943 = vmatprep.subr.mxu0 0.0
  %3944 = vmatpush2.xpose.msra.mxu0 0.0
  %3945 = vmatprep.subr.mxu0 0.0
  %3946 = vmatpush2.xpose.msra.mxu0 0.0
  %3947 = vmatprep.subr.mxu0 0.0
  %3948 = vmatpush2.xpose.msra.mxu0 0.0
  %3949 = vmatprep.subr.mxu0 0.0
  %3950 = vmatpush2.xpose.msra.mxu0 0.0
  %3951 = vmatprep.subr.mxu0 0.0
  %3952 = vmatpush2.xpose.msra.mxu0 0.0
  %3953 = vmatprep.subr.mxu0 0.0
  %3954 = vmatpush2.xpose.msra.mxu0 0.0
  %3955 = vmatprep.subr.mxu0 0.0
  %3956 = vmatpush2.xpose.msra.mxu0 0.0
  %3957 = vmatprep.subr.mxu0 0.0
  %3958 = vmatpush2.xpose.msra.mxu0 0.0
  %3959 = vmatprep.subr.mxu0 0.0
  %3960 = vmatpush2.xpose.msra.mxu0 0.0
  %3961 = vmatprep.subr.mxu0 0.0
  %3962 = vmatpush2.xpose.msra.mxu0 0.0
  %3963 = vmatprep.subr.mxu0 0.0
  %3964 = vmatpush2.xpose.msra.mxu0 0.0
  %3965 = vmatprep.subr.mxu0 0.0
  %3966 = vmatpush2.xpose.msra.mxu0 0.0
  %3967 = vmatprep.mubr.f32.mxu0 0.0
  %3968 = vmatmul.mubr.f32.gmra.mxu0 %v3895
  %v3969 = vpop.f32.mrf.mxu0
  %v3970 = vadd.f32 0.0, %v3969
  %v3971 = vpop.f32.mrf.mxu0
  %3972 = vmatprep.mubr.f32.mxu0 0.0
  %3973 = vmatmul.mubr.f32.gmra.mxu0 %v3897
  %v3974 = vpop.f32.mrf.mxu0
  %v3975 = vadd.f32 0.0, %v3974
  %v3976 = vpop.f32.mrf.mxu0
  %3977 = vdwg.mxu0
  %v3978 = vsel %vm815, %v3879, -inf
  %3979 = vmax.xlane.f32.xlu0 %v3978
  %v3980 = vpop.xlane.xlu0 %3979
  %v3981 = vsel %vm815, %v3884, -inf
  %3982 = vmax.xlane.f32.xlu0 %v3981
  %v3983 = vpop.xlane.xlu0 %3982
  %v3984 = vsel %vm815, %v3970, -inf
  %3985 = vmax.xlane.f32.xlu0 %v3984
  %v3986 = vpop.xlane.xlu0 %3985
  %v3987 = vsel %vm815, %v3975, -inf
  %3988 = vmax.xlane.f32.xlu0 %v3987
  %v3989 = vpop.xlane.xlu0 %3988
  %v3990 = vsub.f32 %v3879, %v3980
  %v3991 = vsub.f32 %v3884, %v3983
  %v3992 = vsub.f32 %v3970, %v3986
  %v3993 = vsub.f32 %v3975, %v3989
  %v3994 = vmul.f32 %v3990, 1.442695
  %v3995 = vpow.pop %v3994
  %v3996 = vmul.f32 %v3991, 1.442695
  %v3997 = vpow.pop %v3996
  %v3998 = vmul.f32 %v3992, 1.442695
  %v3999 = vpow.pop %v3998
  %v4000 = vmul.f32 %v3993, 1.442695
  %v4001 = vpow.pop %v4000
  %v4002 = vsel %vm815, %v3995, 0.0
  %4003 = vadd.xlane.f32.xlu0 %v4002
  %v4004 = vpop.xlane.xlu0 %4003
  %v4005 = vsel %vm815, %v3997, 0.0
  %4006 = vadd.xlane.f32.xlu0 %v4005
  %v4007 = vpop.xlane.xlu0 %4006
  %v4008 = vsel %vm815, %v3999, 0.0
  %4009 = vadd.xlane.f32.xlu0 %v4008
  %v4010 = vpop.xlane.xlu0 %4009
  %v4011 = vsel %vm815, %v4001, 0.0
  %4012 = vadd.xlane.f32.xlu0 %v4011
  %v4013 = vpop.xlane.xlu0 %4012
  %v4014 = vrcp.pop %v4004
  %v4015 = vrcp.pop %v4007
  %v4016 = vrcp.pop %v4010
  %v4017 = vrcp.pop %v4013
  %v4018 = vmul.f32 %v3995, %v4014
  %v4019 = vmul.f32 %v3997, %v4015
  %v4020 = vmul.f32 %v3999, %v4016
  %v4021 = vmul.f32 %v4001, %v4017
  %4022 = vrot.lane.b32.xlu0 %v2574, 40
  %v4023 = vpop.permute.xlu0 %4022
  %4024 = vrot.lane.b32.xlu0 %v2579, 40
  %v4025 = vpop.permute.xlu0 %4024
  %v4029 = vsel %vm815, %v4018, 0
  %v4032 = vsel %vm815, %v4019, 0
  %4034 = vmatprep.subr.mxu0 0.0
  %4035 = vmatpush1.msra.mxu0 0.0
  %4036 = vmatprep.subr.mxu0 0.0
  %4037 = vmatpush1.msra.mxu0 0.0
  %4038 = vmatprep.subr.mxu0 0.0
  %4039 = vmatpush1.msra.mxu0 0.0
  %4040 = vmatprep.subr.mxu0 0.0
  %4041 = vmatpush1.msra.mxu0 0.0
  %4042 = vmatprep.subr.mxu0 0.0
  %4043 = vmatpush1.msra.mxu0 0.0
  %4044 = vmatprep.subr.mxu0 0.0
  %4045 = vmatpush1.msra.mxu0 0.0
  %4046 = vmatprep.subr.mxu0 0.0
  %4047 = vmatpush1.msra.mxu0 0.0
  %4048 = vmatprep.subr.mxu0 0.0
  %4049 = vmatpush1.msra.mxu0 0.0
  %4050 = vmatprep.subr.mxu0 0.0
  %4051 = vmatpush1.msra.mxu0 0.0
  %4052 = vmatprep.subr.mxu0 0.0
  %4053 = vmatpush1.msra.mxu0 0.0
  %4054 = vmatprep.subr.mxu0 0.0
  %4055 = vmatpush1.msra.mxu0 0.0
  %4056 = vmatprep.subr.mxu0 0.0
  %4057 = vmatpush1.msra.mxu0 0.0
  %4058 = vmatprep.subr.mxu0 0.0
  %4059 = vmatpush1.msra.mxu0 0.0
  %4060 = vmatprep.subr.mxu0 0.0
  %4061 = vmatpush1.msra.mxu0 0.0
  %4062 = vmatprep.subr.mxu0 0.0
  %4063 = vmatpush1.msra.mxu0 %v4025
  %4064 = vmatprep.subr.mxu0 0.0
  %4065 = vmatpush1.msra.mxu0 %v4023
  %4066 = vmatprep.subr.mxu0 0.0
  %4067 = vmatpush2.msra.mxu0 0.0
  %4068 = vmatprep.subr.mxu0 0.0
  %4069 = vmatpush2.msra.mxu0 0.0
  %4070 = vmatprep.subr.mxu0 0.0
  %4071 = vmatpush2.msra.mxu0 0.0
  %4072 = vmatprep.subr.mxu0 0.0
  %4073 = vmatpush2.msra.mxu0 0.0
  %4074 = vmatprep.subr.mxu0 0.0
  %4075 = vmatpush2.msra.mxu0 0.0
  %4076 = vmatprep.subr.mxu0 0.0
  %4077 = vmatpush2.msra.mxu0 0.0
  %4078 = vmatprep.subr.mxu0 0.0
  %4079 = vmatpush2.msra.mxu0 0.0
  %4080 = vmatprep.subr.mxu0 0.0
  %4081 = vmatpush2.msra.mxu0 0.0
  %4082 = vmatprep.subr.mxu0 0.0
  %4083 = vmatpush2.msra.mxu0 0.0
  %4084 = vmatprep.subr.mxu0 0.0
  %4085 = vmatpush2.msra.mxu0 0.0
  %4086 = vmatprep.subr.mxu0 0.0
  %4087 = vmatpush2.msra.mxu0 0.0
  %4088 = vmatprep.subr.mxu0 0.0
  %4089 = vmatpush2.msra.mxu0 0.0
  %4090 = vmatprep.subr.mxu0 0.0
  %4091 = vmatpush2.msra.mxu0 0.0
  %4092 = vmatprep.subr.mxu0 0.0
  %4093 = vmatpush2.msra.mxu0 0.0
  %4094 = vmatprep.subr.mxu0 0.0
  %4095 = vmatpush2.msra.mxu0 0.0
  %4096 = vmatprep.subr.mxu0 0.0
  %4097 = vmatpush2.msra.mxu0 0.0
  %4098 = vmatprep.mubr.f32.mxu0 0.0
  %4099 = vmatmul.mubr.f32.gmra.mxu0 %v4029
  %v4100 = vpop.f32.mrf.mxu0
  %v4101 = vadd.f32 0.0, %v4100
  %v4102 = vpop.f32.mrf.mxu0
  %4103 = vmatprep.mubr.f32.mxu0 0.0
  %4104 = vmatmul.mubr.f32.gmra.mxu0 %v4032
  %v4105 = vpop.f32.mrf.mxu0
  %v4106 = vadd.f32 0.0, %v4105
  %v4107 = vpop.f32.mrf.mxu0
  %4108 = vdwg.mxu0
  %4109 = vrot.lane.b32.xlu0 %v2584, 40
  %v4110 = vpop.permute.xlu0 %4109
  %4111 = vrot.lane.b32.xlu0 %v2589, 40
  %v4112 = vpop.permute.xlu0 %4111
  %v4116 = vsel %vm815, %v4020, 0
  %v4119 = vsel %vm815, %v4021, 0
  %4121 = vmatprep.subr.mxu0 0.0
  %4122 = vmatpush1.msra.mxu0 0.0
  %4123 = vmatprep.subr.mxu0 0.0
  %4124 = vmatpush1.msra.mxu0 0.0
  %4125 = vmatprep.subr.mxu0 0.0
  %4126 = vmatpush1.msra.mxu0 0.0
  %4127 = vmatprep.subr.mxu0 0.0
  %4128 = vmatpush1.msra.mxu0 0.0
  %4129 = vmatprep.subr.mxu0 0.0
  %4130 = vmatpush1.msra.mxu0 0.0
  %4131 = vmatprep.subr.mxu0 0.0
  %4132 = vmatpush1.msra.mxu0 0.0
  %4133 = vmatprep.subr.mxu0 0.0
  %4134 = vmatpush1.msra.mxu0 0.0
  %4135 = vmatprep.subr.mxu0 0.0
  %4136 = vmatpush1.msra.mxu0 0.0
  %4137 = vmatprep.subr.mxu0 0.0
  %4138 = vmatpush1.msra.mxu0 0.0
  %4139 = vmatprep.subr.mxu0 0.0
  %4140 = vmatpush1.msra.mxu0 0.0
  %4141 = vmatprep.subr.mxu0 0.0
  %4142 = vmatpush1.msra.mxu0 0.0
  %4143 = vmatprep.subr.mxu0 0.0
  %4144 = vmatpush1.msra.mxu0 0.0
  %4145 = vmatprep.subr.mxu0 0.0
  %4146 = vmatpush1.msra.mxu0 0.0
  %4147 = vmatprep.subr.mxu0 0.0
  %4148 = vmatpush1.msra.mxu0 0.0
  %4149 = vmatprep.subr.mxu0 0.0
  %4150 = vmatpush1.msra.mxu0 %v4112
  %4151 = vmatprep.subr.mxu0 0.0
  %4152 = vmatpush1.msra.mxu0 %v4110
  %4153 = vmatprep.subr.mxu0 0.0
  %4154 = vmatpush2.msra.mxu0 0.0
  %4155 = vmatprep.subr.mxu0 0.0
  %4156 = vmatpush2.msra.mxu0 0.0
  %4157 = vmatprep.subr.mxu0 0.0
  %4158 = vmatpush2.msra.mxu0 0.0
  %4159 = vmatprep.subr.mxu0 0.0
  %4160 = vmatpush2.msra.mxu0 0.0
  %4161 = vmatprep.subr.mxu0 0.0
  %4162 = vmatpush2.msra.mxu0 0.0
  %4163 = vmatprep.subr.mxu0 0.0
  %4164 = vmatpush2.msra.mxu0 0.0
  %4165 = vmatprep.subr.mxu0 0.0
  %4166 = vmatpush2.msra.mxu0 0.0
  %4167 = vmatprep.subr.mxu0 0.0
  %4168 = vmatpush2.msra.mxu0 0.0
  %4169 = vmatprep.subr.mxu0 0.0
  %4170 = vmatpush2.msra.mxu0 0.0
  %4171 = vmatprep.subr.mxu0 0.0
  %4172 = vmatpush2.msra.mxu0 0.0
  %4173 = vmatprep.subr.mxu0 0.0
  %4174 = vmatpush2.msra.mxu0 0.0
  %4175 = vmatprep.subr.mxu0 0.0
  %4176 = vmatpush2.msra.mxu0 0.0
  %4177 = vmatprep.subr.mxu0 0.0
  %4178 = vmatpush2.msra.mxu0 0.0
  %4179 = vmatprep.subr.mxu0 0.0
  %4180 = vmatpush2.msra.mxu0 0.0
  %4181 = vmatprep.subr.mxu0 0.0
  %4182 = vmatpush2.msra.mxu0 0.0
  %4183 = vmatprep.subr.mxu0 0.0
  %4184 = vmatpush2.msra.mxu0 0.0
  %4185 = vmatprep.mubr.f32.mxu0 0.0
  %4186 = vmatmul.mubr.f32.gmra.mxu0 %v4116
  %v4187 = vpop.f32.mrf.mxu0
  %v4188 = vadd.f32 0.0, %v4187
  %v4189 = vpop.f32.mrf.mxu0
  %4190 = vmatprep.mubr.f32.mxu0 0.0
  %4191 = vmatmul.mubr.f32.gmra.mxu0 %v4119
  %v4192 = vpop.f32.mrf.mxu0
  %v4193 = vadd.f32 0.0, %v4192
  %v4194 = vpop.f32.mrf.mxu0
  %4195 = vdwg.mxu0
  %4200 = vrot.lane.b32.xlu0 %v3301, 8
  %v4201 = vpop.permute.xlu0 %4200
  %4202 = vrot.lane.b32.xlu0 %v3306, 8
  %v4203 = vpop.permute.xlu0 %4202
  %4204 = vrot.lane.b32.xlu0 %v3388, 8
  %v4205 = vpop.permute.xlu0 %4204
  %4206 = vrot.lane.b32.xlu0 %v3393, 8
  %v4207 = vpop.permute.xlu0 %4206
  %4216 = vrot.lane.b32.xlu0 %v3701, 16
  %v4217 = vpop.permute.xlu0 %4216
  %4218 = vrot.lane.b32.xlu0 %v3706, 16
  %v4219 = vpop.permute.xlu0 %4218
  %4220 = vrot.lane.b32.xlu0 %v3788, 16
  %v4221 = vpop.permute.xlu0 %4220
  %4222 = vrot.lane.b32.xlu0 %v3793, 16
  %v4223 = vpop.permute.xlu0 %4222
  %4232 = vrot.lane.b32.xlu0 %v4101, 24
  %v4233 = vpop.permute.xlu0 %4232
  %4234 = vrot.lane.b32.xlu0 %v4106, 24
  %v4235 = vpop.permute.xlu0 %4234
  %4236 = vrot.lane.b32.xlu0 %v4188, 24
  %v4237 = vpop.permute.xlu0 %4236
  %4238 = vrot.lane.b32.xlu0 %v4193, 24
  %v4239 = vpop.permute.xlu0 %4238
  %v4244 = vsel %vm638, %v2901, %v4201
  %v4245 = vsel %vm638, %v2906, %v4203
  %v4246 = vsel %vm638, %v2988, %v4205
  %v4247 = vsel %vm638, %v2993, %v4207
  %v4248 = vsel %vm815, %v4244, %v4217
  %v4249 = vsel %vm815, %v4245, %v4219
  %v4250 = vsel %vm815, %v4246, %v4221
  %v4251 = vsel %vm815, %v4247, %v4223
  %v4252 = vsel %vm2290, %v4248, %v4233
  %v4253 = vsel %vm2290, %v4249, %v4235
  %v4254 = vsel %vm2290, %v4250, %v4237
  %v4255 = vsel %vm2290, %v4251, %v4239
  %s4256 = scalar_lea.vmem %s10, 32
  %v4257 = vld [vmem:[%s4256] sm:$0xff]
  %v4258 = vld [vmem:[%s4256 + $0x8] sm:$0xff]
  %v4259 = vld [vmem:[%s4256 + $0x10] sm:$0xff]
  %v4260 = vld [vmem:[%s4256 + $0x18] sm:$0xff]
  %s4261 = scalar_lea.vmem %s11, 1
  %v4262 = vld [vmem:[%s4261] sm:$0x1]
  %v4264 = vlaneseq
  %v4265 = vshrl.u32 %v4264, 7
  %v4266 = vsub.s32 0, %v4265
  %v4267 = vrot.slane %v4262, %v4266
  %v4270 = vsel %vm530, %v4252, 0
  %v4273 = vsel %vm530, %v4253, 0
  %v4276 = vsel %vm530, %v4254, 0
  %v4279 = vsel %vm530, %v4255, 0
  %4281 = vmatprep.subr.mxu0 0.0
  %4282 = vmatpush1.msra.mxu0 0.0
  %4283 = vmatprep.subr.mxu0 0.0
  %4284 = vmatpush1.msra.mxu0 0.0
  %4285 = vmatprep.subr.mxu0 0.0
  %4286 = vmatpush1.msra.mxu0 0.0
  %4287 = vmatprep.subr.mxu0 0.0
  %4288 = vmatpush1.msra.mxu0 0.0
  %4289 = vmatprep.subr.mxu0 0.0
  %4290 = vmatpush1.msra.mxu0 0.0
  %4291 = vmatprep.subr.mxu0 0.0
  %4292 = vmatpush1.msra.mxu0 0.0
  %4293 = vmatprep.subr.mxu0 0.0
  %4294 = vmatpush1.msra.mxu0 0.0
  %4295 = vmatprep.subr.mxu0 0.0
  %4296 = vmatpush1.msra.mxu0 0.0
  %4297 = vmatprep.subr.mxu0 0.0
  %4298 = vmatpush1.msra.mxu0 0.0
  %4299 = vmatprep.subr.mxu0 0.0
  %4300 = vmatpush1.msra.mxu0 0.0
  %4301 = vmatprep.subr.mxu0 0.0
  %4302 = vmatpush1.msra.mxu0 0.0
  %4303 = vmatprep.subr.mxu0 0.0
  %4304 = vmatpush1.msra.mxu0 0.0
  %4305 = vmatprep.subr.mxu0 0.0
  %4306 = vmatpush1.msra.mxu0 %v4260
  %4307 = vmatprep.subr.mxu0 0.0
  %4308 = vmatpush1.msra.mxu0 %v4259
  %4309 = vmatprep.subr.mxu0 0.0
  %4310 = vmatpush1.msra.mxu0 %v4258
  %4311 = vmatprep.subr.mxu0 0.0
  %4312 = vmatpush1.msra.mxu0 %v4257
  %4313 = vmatprep.subr.mxu0 0.0
  %4314 = vmatpush2.msra.mxu0 0.0
  %4315 = vmatprep.subr.mxu0 0.0
  %4316 = vmatpush2.msra.mxu0 0.0
  %4317 = vmatprep.subr.mxu0 0.0
  %4318 = vmatpush2.msra.mxu0 0.0
  %4319 = vmatprep.subr.mxu0 0.0
  %4320 = vmatpush2.msra.mxu0 0.0
  %4321 = vmatprep.subr.mxu0 0.0
  %4322 = vmatpush2.msra.mxu0 0.0
  %4323 = vmatprep.subr.mxu0 0.0
  %4324 = vmatpush2.msra.mxu0 0.0
  %4325 = vmatprep.subr.mxu0 0.0
  %4326 = vmatpush2.msra.mxu0 0.0
  %4327 = vmatprep.subr.mxu0 0.0
  %4328 = vmatpush2.msra.mxu0 0.0
  %4329 = vmatprep.subr.mxu0 0.0
  %4330 = vmatpush2.msra.mxu0 0.0
  %4331 = vmatprep.subr.mxu0 0.0
  %4332 = vmatpush2.msra.mxu0 0.0
  %4333 = vmatprep.subr.mxu0 0.0
  %4334 = vmatpush2.msra.mxu0 0.0
  %4335 = vmatprep.subr.mxu0 0.0
  %4336 = vmatpush2.msra.mxu0 0.0
  %4337 = vmatprep.subr.mxu0 0.0
  %4338 = vmatpush2.msra.mxu0 0.0
  %4339 = vmatprep.subr.mxu0 0.0
  %4340 = vmatpush2.msra.mxu0 0.0
  %4341 = vmatprep.subr.mxu0 0.0
  %4342 = vmatpush2.msra.mxu0 0.0
  %4343 = vmatprep.subr.mxu0 0.0
  %4344 = vmatpush2.msra.mxu0 0.0
  %4345 = vmatprep.mubr.f32.mxu0 0.0
  %4346 = vmatmul.mubr.f32.gmra.mxu0 %v4270
  %v4347 = vpop.f32.mrf.mxu0
  %v4348 = vadd.f32 %v4267, %v4347
  %v4349 = vpop.f32.mrf.mxu0
  %4350 = vmatprep.mubr.f32.mxu0 0.0
  %4351 = vmatmul.mubr.f32.gmra.mxu0 %v4273
  %v4352 = vpop.f32.mrf.mxu0
  %v4353 = vadd.f32 %v4267, %v4352
  %v4354 = vpop.f32.mrf.mxu0
  %4355 = vmatprep.mubr.f32.mxu0 0.0
  %4356 = vmatmul.mubr.f32.gmra.mxu0 %v4276
  %v4357 = vpop.f32.mrf.mxu0
  %v4358 = vadd.f32 %v4267, %v4357
  %v4359 = vpop.f32.mrf.mxu0
  %4360 = vmatprep.mubr.f32.mxu0 0.0
  %4361 = vmatmul.mubr.f32.gmra.mxu0 %v4279
  %v4362 = vpop.f32.mrf.mxu0
  %v4363 = vadd.f32 %v4267, %v4362
  %v4364 = vpop.f32.mrf.mxu0
  %4365 = vdwg.mxu0
  %v4366 = vadd.f32 %v2478, %v4348
  %v4367 = vadd.f32 %v2479, %v4353
  %v4368 = vadd.f32 %v2480, %v4358
  %v4369 = vadd.f32 %v2481, %v4363
  %v4370 = vsel %vm530, %v4366, 0.0
  %4371 = vadd.xlane.f32.xlu0 %v4370
  %v4372 = vpop.xlane.xlu0 %4371
  %v4373 = vsel %vm530, %v4367, 0.0
  %4374 = vadd.xlane.f32.xlu0 %v4373
  %v4375 = vpop.xlane.xlu0 %4374
  %v4376 = vsel %vm530, %v4368, 0.0
  %4377 = vadd.xlane.f32.xlu0 %v4376
  %v4378 = vpop.xlane.xlu0 %4377
  %v4379 = vsel %vm530, %v4369, 0.0
  %4380 = vadd.xlane.f32.xlu0 %v4379
  %v4381 = vpop.xlane.xlu0 %4380
  %v4382 = vmul.f32 %v4372, %v2419
  %v4383 = vmul.f32 %v4375, %v2419
  %v4384 = vmul.f32 %v4378, %v2419
  %v4385 = vmul.f32 %v4381, %v2419
  %v4386 = vsub.f32 %v4366, %v4382
  %v4387 = vsub.f32 %v4367, %v4383
  %v4388 = vsub.f32 %v4368, %v4384
  %v4389 = vsub.f32 %v4369, %v4385
  %v4390 = vmul.f32 %v4386, %v4386
  %v4391 = vmul.f32 %v4387, %v4387
  %v4392 = vmul.f32 %v4388, %v4388
  %v4393 = vmul.f32 %v4389, %v4389
  %v4394 = vsel %vm530, %v4390, 0.0
  %4395 = vadd.xlane.f32.xlu0 %v4394
  %v4396 = vpop.xlane.xlu0 %4395
  %v4397 = vsel %vm530, %v4391, 0.0
  %4398 = vadd.xlane.f32.xlu0 %v4397
  %v4399 = vpop.xlane.xlu0 %4398
  %v4400 = vsel %vm530, %v4392, 0.0
  %4401 = vadd.xlane.f32.xlu0 %v4400
  %v4402 = vpop.xlane.xlu0 %4401
  %v4403 = vsel %vm530, %v4393, 0.0
  %4404 = vadd.xlane.f32.xlu0 %v4403
  %v4405 = vpop.xlane.xlu0 %4404
  %v4406 = vmul.f32 %v4396, %v2419
  %v4407 = vmul.f32 %v4399, %v2419
  %v4408 = vmul.f32 %v4402, %v2419
  %v4409 = vmul.f32 %v4405, %v2419
  %v4410 = vadd.f32 %v4406, 1e-05
  %v4411 = vadd.f32 %v4407, 1e-05
  %v4412 = vadd.f32 %v4408, 1e-05
  %v4413 = vadd.f32 %v4409, 1e-05
  %v4414 = vrsqrt.pop %v4410
  %v4415 = vrsqrt.pop %v4411
  %v4416 = vrsqrt.pop %v4412
  %v4417 = vrsqrt.pop %v4413
  %v4418 = vmul.f32 %v4386, %v4414
  %v4419 = vmul.f32 %v4387, %v4415
  %v4420 = vmul.f32 %v4388, %v4416
  %v4421 = vmul.f32 %v4389, %v4417
  %s4422 = scalar_lea.vmem %s12, 1
  %v4423 = vld [vmem:[%s4422] sm:$0x1]
  %v4425 = vlaneseq
  %v4426 = vshrl.u32 %v4425, 7
  %v4427 = vsub.s32 0, %v4426
  %v4428 = vrot.slane %v4423, %v4427
  %v4430 = vmul.f32 %v4418, %v4428
  %v4431 = vmul.f32 %v4419, %v4428
  %v4432 = vmul.f32 %v4420, %v4428
  %v4433 = vmul.f32 %v4421, %v4428
  %s4434 = scalar_lea.vmem %s13, 1
  %v4435 = vld [vmem:[%s4434] sm:$0x1]
  %v4437 = vlaneseq
  %v4438 = vshrl.u32 %v4437, 7
  %v4439 = vsub.s32 0, %v4438
  %v4440 = vrot.slane %v4435, %v4439
  %v4442 = vadd.f32 %v4430, %v4440
  %v4443 = vadd.f32 %v4431, %v4440
  %v4444 = vadd.f32 %v4432, %v4440
  %v4445 = vadd.f32 %v4433, %v4440
  %v4446 = vsel %vm530, %v4442, 0.0
  %v4447 = vsel %vm530, %v4443, 0.0
  %v4448 = vadd.f32 %v4446, %v4447
  %v4449 = vrot.slane %v4448, 4
  %v4450 = vadd.f32 %v4448, %v4449
  %v4451 = vrot.slane %v4450, 2
  %v4452 = vadd.f32 %v4450, %v4451
  %v4453 = vrot.slane %v4452, 1
  %v4454 = vadd.f32 %v4452, %v4453
  %v4455 = vsel %vm530, %v4444, 0.0
  %v4456 = vsel %vm530, %v4445, 0.0
  %v4457 = vadd.f32 %v4455, %v4456
  %v4458 = vrot.slane %v4457, 4
  %v4459 = vadd.f32 %v4457, %v4458
  %v4460 = vrot.slane %v4459, 2
  %v4461 = vadd.f32 %v4459, %v4460
  %v4462 = vrot.slane %v4461, 1
  %v4463 = vadd.f32 %v4461, %v4462
  %v4464 = vmul.f32 %v4454, 0.0625
  %v4465 = vmul.f32 %v4463, 0.0625
  %v4466 = vld [vmem:[%s14] sm:$0xff]
  %v4467 = vld [vmem:[%s14 + $0x8] sm:$0xff]
  %v4468 = vld [vmem:[%s14 + $0x10] sm:$0xff]
  %v4469 = vld [vmem:[%s14 + $0x18] sm:$0xff]
  %v4470 = vld [vmem:[#allocation2] sm:$0x1]
  %v4472 = vlaneseq
  %v4473 = vshrl.u32 %v4472, 7
  %v4474 = vsub.s32 0, %v4473
  %v4475 = vrot.slane %v4470, %v4474
  %vm4479 = vcmask 1041409
  %v4480 = vsel %vm4479, %v4465, %v4464
  %v4481 = vsel %vm530, %v4480, 0
  %4483 = vmatprep.subr.mxu0 0.0
  %4484 = vmatpush1.msra.mxu0 0.0
  %4485 = vmatprep.subr.mxu0 0.0
  %4486 = vmatpush1.msra.mxu0 0.0
  %4487 = vmatprep.subr.mxu0 0.0
  %4488 = vmatpush1.msra.mxu0 0.0
  %4489 = vmatprep.subr.mxu0 0.0
  %4490 = vmatpush1.msra.mxu0 0.0
  %4491 = vmatprep.subr.mxu0 0.0
  %4492 = vmatpush1.msra.mxu0 0.0
  %4493 = vmatprep.subr.mxu0 0.0
  %4494 = vmatpush1.msra.mxu0 0.0
  %4495 = vmatprep.subr.mxu0 0.0
  %4496 = vmatpush1.msra.mxu0 0.0
  %4497 = vmatprep.subr.mxu0 0.0
  %4498 = vmatpush1.msra.mxu0 0.0
  %4499 = vmatprep.subr.mxu0 0.0
  %4500 = vmatpush1.msra.mxu0 0.0
  %4501 = vmatprep.subr.mxu0 0.0
  %4502 = vmatpush1.msra.mxu0 0.0
  %4503 = vmatprep.subr.mxu0 0.0
  %4504 = vmatpush1.msra.mxu0 0.0
  %4505 = vmatprep.subr.mxu0 0.0
  %4506 = vmatpush1.msra.mxu0 0.0
  %4507 = vmatprep.subr.mxu0 0.0
  %4508 = vmatpush1.msra.mxu0 %v4469
  %4509 = vmatprep.subr.mxu0 0.0
  %4510 = vmatpush1.msra.mxu0 %v4468
  %4511 = vmatprep.subr.mxu0 0.0
  %4512 = vmatpush1.msra.mxu0 %v4467
  %4513 = vmatprep.subr.mxu0 0.0
  %4514 = vmatpush1.msra.mxu0 %v4466
  %4515 = vmatprep.subr.mxu0 0.0
  %4516 = vmatpush2.msra.mxu0 0.0
  %4517 = vmatprep.subr.mxu0 0.0
  %4518 = vmatpush2.msra.mxu0 0.0
  %4519 = vmatprep.subr.mxu0 0.0
  %4520 = vmatpush2.msra.mxu0 0.0
  %4521 = vmatprep.subr.mxu0 0.0
  %4522 = vmatpush2.msra.mxu0 0.0
  %4523 = vmatprep.subr.mxu0 0.0
  %4524 = vmatpush2.msra.mxu0 0.0
  %4525 = vmatprep.subr.mxu0 0.0
  %4526 = vmatpush2.msra.mxu0 0.0
  %4527 = vmatprep.subr.mxu0 0.0
  %4528 = vmatpush2.msra.mxu0 0.0
  %4529 = vmatprep.subr.mxu0 0.0
  %4530 = vmatpush2.msra.mxu0 0.0
  %4531 = vmatprep.subr.mxu0 0.0
  %4532 = vmatpush2.msra.mxu0 0.0
  %4533 = vmatprep.subr.mxu0 0.0
  %4534 = vmatpush2.msra.mxu0 0.0
  %4535 = vmatprep.subr.mxu0 0.0
  %4536 = vmatpush2.msra.mxu0 0.0
  %4537 = vmatprep.subr.mxu0 0.0
  %4538 = vmatpush2.msra.mxu0 0.0
  %4539 = vmatprep.subr.mxu0 0.0
  %4540 = vmatpush2.msra.mxu0 0.0
  %4541 = vmatprep.subr.mxu0 0.0
  %4542 = vmatpush2.msra.mxu0 0.0
  %4543 = vmatprep.subr.mxu0 0.0
  %4544 = vmatpush2.msra.mxu0 0.0
  %4545 = vmatprep.subr.mxu0 0.0
  %4546 = vmatpush2.msra.mxu0 0.0
  %4547 = vmatprep.mubr.f32.mxu0 0.0
  %4548 = vmatmul.mubr.f32.gmra.mxu0 %v4481
  %v4549 = vpop.f32.mrf.mxu0
  %v4550 = vadd.f32 %v4475, %v4549
  %v4551 = vpop.f32.mrf.mxu0
  %4552 = vdwg.mxu0
  %vm4553 = vcmask 1024
  %4554 = vst.msk [vmem:[%s16] sm:$0x3] %vm4553, %v4550
  // Predicated region
  $region66: #{tcr_epitope_transformer.1} parent=0 // pred_check
    _
  $region67: #{tcr_epitope_transformer.1} parent=0 // pred_check_branch
    %4556 = sbr.rel (0) target = $region69
  $region68: #{tcr_epitope_transformer.1} parent=0 // pred_region
    _
  $region69: #{tcr_epitope_transformer.1} parent=0 // pred_fallthru
    _
  // Predicated region
  $region70: #{tcr_epitope_transformer.1} parent=0 // pred_check
    _
  $region71: #{tcr_epitope_transformer.1} parent=0 // pred_check_branch
    %4558 = sbr.rel (0) target = $region73
  $region72: #{tcr_epitope_transformer.1} parent=0 // pred_region
    _
  $region73: #{tcr_epitope_transformer.1} parent=0 // pred_fallthru
    _

</llo_original>
